<compile_context>
chip_gen: v7x
topology: tpu7x:2x2x1
jax: 0.10.0
libtpu: 0.0.40
codegen_flags: <defaults>
</compile_context>

<pallas_src>
import jax
import jax.numpy as jnp
from jax.experimental import pallas as pl
from jax.experimental.pallas import tpu as pltpu


# ----------------------------- linear kernel -------------------------------

def _linear_kernel(x_ref, wT_ref, b_ref, o_ref):
    o_ref[...] = (jnp.dot(x_ref[...], wT_ref[...],
                          preferred_element_type=jnp.float32) + b_ref[...])


def linear(x, wT, b, tile_m=256):
    """x: [N, K] f32, wT: [K, M] (pre-transposed at init), b: [M] -> [N, M]."""
    N, K = x.shape
    M = wT.shape[1]
    b2 = b.reshape(1, M)
    if N <= tile_m:
        return pl.pallas_call(
            _linear_kernel,
            out_shape=jax.ShapeDtypeStruct((N, M), jnp.float32),
        )(x, wT, b2)
    # TODO(synk): add K/N tiling + bf16 MXU operands for production-size GEMMs.
    return pl.pallas_call(
        _linear_kernel,
        grid=(pl.cdiv(N, tile_m),),
        in_specs=[pl.BlockSpec((tile_m, K), lambda i: (i, 0)),
                  pl.BlockSpec((K, M), lambda i: (0, 0)),
                  pl.BlockSpec((1, M), lambda i: (0, 0))],
        out_specs=pl.BlockSpec((tile_m, M), lambda i: (i, 0)),
        out_shape=jax.ShapeDtypeStruct((N, M), jnp.float32),
        compiler_params=pltpu.CompilerParams(dimension_semantics=("parallel",)),
    )(x, wT, b2)


# ------------------------- fused bidirectional GRU --------------------------

def _bigru_kernel(lens_ref, xg_ref, whh_ref, bhh_ref,
                  outf_ref, outb_ref, hid_ref):
    """Single-launch bidirectional GRU over both (src, ans) streams.

    xg_ref:  [T, 2B, 6H]  precomputed x-gates; cols [:3H]=fwd, [3H:]=bwd.
    whh_ref: [2H, 6H]     block-diagonal recurrent weight (fwd | bwd).
    lens_ref:[2B, 1]      int32 lengths (src batch rows then ans batch rows).
    outf_ref/outb_ref: [T, 2B, H] per-direction outputs (bwd stored at real t).
    hid_ref: [2B, 2H]     final hidden, cols [:H]=fwd, [H:]=bwd.
    """
    T, B2, G = xg_ref.shape
    H = G // 6
    lens = lens_ref[...]                      # [2B, 1] int32, resident
    whh = whh_ref[...]                        # [2H, 6H]
    bhh = bhh_ref[...]                        # [1, 6H]

    def gru_half(gx, gh, h_prev, m):
        r = jax.nn.sigmoid(gx[:, :H] + gh[:, :H])
        z = jax.nn.sigmoid(gx[:, H:2 * H] + gh[:, H:2 * H])
        n = jnp.tanh(gx[:, 2 * H:] + r * gh[:, 2 * H:])
        h_new = (1.0 - z) * n + z * h_prev
        h_next = m * h_new + (1.0 - m) * h_prev   # freeze past length (pack)
        return h_next, m * h_new                  # padded outputs = 0 (unpack)

    def step(t, h):
        # one fused recurrent matmul for both directions (block-diag weights)
        gh = jnp.dot(h, whh, preferred_element_type=jnp.float32) + bhh  # [2B,6H]
        rt = T - 1 - t
        xf = xg_ref[t]                         # [2B, 6H] (use fwd cols)
        xb = xg_ref[rt]                        # [2B, 6H] (use bwd cols)
        mf = (t < lens).astype(jnp.float32)    # [2B, 1]
        mb = (rt < lens).astype(jnp.float32)
        hf_next, of = gru_half(xf[:, :3 * H], gh[:, :3 * H], h[:, :H], mf)
        hb_next, ob = gru_half(xb[:, 3 * H:], gh[:, 3 * H:], h[:, H:], mb)
        outf_ref[t] = of
        outb_ref[rt] = ob
        return jnp.concatenate([hf_next, hb_next], axis=-1)

    h0 = jnp.zeros((B2, 2 * H), jnp.float32)
    h_final = jax.lax.fori_loop(0, T, step, h0, unroll=True)
    hid_ref[...] = h_final


def bidir_gru_fused(x_all, lengths, w_ih_T, b_ih, whh_blk, b_hh):
    """x_all: [T, 2B, E] (src batch rows then ans batch rows, time-padded).
    Returns outputs [T, 2B, 2H] (fwd|bwd features), hidden [2B, 2H]."""
    T, B2, E = x_all.shape
    G = w_ih_T.shape[1]                       # 6H
    H = G // 6
    # fused input projection for both directions and both streams (one matmul)
    xg = linear(x_all.reshape(T * B2, E), w_ih_T, b_ih).reshape(T, B2, G)
    lens2 = lengths.astype(jnp.int32).reshape(B2, 1)
    out_f, out_b, hid = pl.pallas_call(
        _bigru_kernel,
        out_shape=(
            jax.ShapeDtypeStruct((T, B2, H), jnp.float32),
            jax.ShapeDtypeStruct((T, B2, H), jnp.float32),
            jax.ShapeDtypeStruct((B2, 2 * H), jnp.float32),
        ),
    )(lens2, xg, whh_blk, b_hh.reshape(1, G))
    outputs = jnp.concatenate([out_f, out_b], axis=-1)     # [T, 2B, 2H]
    return outputs, hid


# ----------------- bi-attention fused with combine_output -------------------

def _biatt_combine_kernel(lens_ref, src_ref, ans_ref, w1_ref, w2_ref, b_ref,
                          osrc_ref, oans_ref):
    b = pl.program_id(0)
    nb = pl.num_programs(0)
    src = src_ref[0]                          # [S, D]
    ans = ans_ref[0]                          # [A, D]
    S, _ = src.shape
    A = ans.shape[0]
    s_len = lens_ref[b]
    a_len = lens_ref[b + nb]
    NEG = jnp.float32(-1e30)                  # finite mask (no NaN if len == 0)

    dn = (((1,), (1,)), ((), ()))             # contract feature dim, no batch

    # src attends over ans
    scores_s = jax.lax.dot_general(src, ans, dn, preferred_element_type=jnp.float32)
    ans_valid = jax.lax.broadcasted_iota(jnp.int32, (S, A), 1) < a_len
    alpha_s = jax.nn.softmax(jnp.where(ans_valid, scores_s, NEG), axis=-1)
    src_matched = jnp.dot(alpha_s, ans, preferred_element_type=jnp.float32)

    # ans attends over src
    scores_a = jax.lax.dot_general(ans, src, dn, preferred_element_type=jnp.float32)
    src_valid = jax.lax.broadcasted_iota(jnp.int32, (A, S), 1) < s_len
    alpha_a = jax.nn.softmax(jnp.where(src_valid, scores_a, NEG), axis=-1)
    ans_matched = jnp.dot(alpha_a, src, preferred_element_type=jnp.float32)

    # fused combine_output: [rnn_out | matched] @ W^T == rnn@W1^T + matched@W2^T
    w1 = w1_ref[...]
    w2 = w2_ref[...]
    bias = b_ref[...]
    osrc_ref[0] = (jnp.dot(src, w1, preferred_element_type=jnp.float32)
                   + jnp.dot(src_matched, w2, preferred_element_type=jnp.float32)
                   + bias)
    oans_ref[0] = (jnp.dot(ans, w1, preferred_element_type=jnp.float32)
                   + jnp.dot(ans_matched, w2, preferred_element_type=jnp.float32)
                   + bias)


def bi_attention_combine(src_bf, ans_bf, lens_all, w1_T, w2_T, b_out):
    """src_bf: [B, S, D], ans_bf: [B, A, D] -> projected outputs, batch-first."""
    B, S, D = src_bf.shape
    A = ans_bf.shape[1]
    Dout = w1_T.shape[1]
    grid_spec = pltpu.PrefetchScalarGridSpec(
        num_scalar_prefetch=1,
        grid=(B,),
        in_specs=[
            pl.BlockSpec((1, S, D), lambda b, ln: (b, 0, 0)),
            pl.BlockSpec((1, A, D), lambda b, ln: (b, 0, 0)),
            pl.BlockSpec((D, Dout), lambda b, ln: (0, 0)),
            pl.BlockSpec((D, Dout), lambda b, ln: (0, 0)),
            pl.BlockSpec((1, Dout), lambda b, ln: (0, 0)),
        ],
        out_specs=[
            pl.BlockSpec((1, S, Dout), lambda b, ln: (b, 0, 0)),
            pl.BlockSpec((1, A, Dout), lambda b, ln: (b, 0, 0)),
        ],
    )
    return pl.pallas_call(
        _biatt_combine_kernel,
        grid_spec=grid_spec,
        out_shape=(
            jax.ShapeDtypeStruct((B, S, Dout), jnp.float32),
            jax.ShapeDtypeStruct((B, A, Dout), jnp.float32),
        ),
        compiler_params=pltpu.CompilerParams(dimension_semantics=("parallel",)),
    )(lens_all.astype(jnp.int32), src_bf, ans_bf, w1_T, w2_T,
      b_out.reshape(1, Dout))


# ------------------------------ model glue ---------------------------------

def init_params(key, vocab, emb_dim, hidden_size):
    h = hidden_size // 2                      # real_hidden_size
    ks = jax.random.split(key, 12)
    u = lambda k, shape: jax.random.uniform(k, shape, jnp.float32, -0.1, 0.1)
    return {
        "embedding": u(ks[0], (vocab, emb_dim)),
        "rnn": {                              # single bidirectional GRU layer
            "w_ih_f": u(ks[1], (3 * h, emb_dim)),
            "w_hh_f": u(ks[2], (3 * h, h)),
            "b_ih_f": u(ks[3], (3 * h,)),
            "b_hh_f": u(ks[4], (3 * h,)),
            "w_ih_b": u(ks[5], (3 * h, emb_dim)),
            "w_hh_b": u(ks[6], (3 * h, h)),
            "b_ih_b": u(ks[7], (3 * h,)),
            "b_hh_b": u(ks[8], (3 * h,)),
        },
        "combine_output_w": u(ks[9], (2 * h, 4 * h)),   # Linear(4h -> 2h)
        "combine_output_b": u(ks[10], (2 * h,)),
        "combine_hidden_w": u(ks[11], (h, 2 * h)),      # Linear(2h -> h)
        "combine_hidden_b": jnp.zeros((h,), jnp.float32),
    }


def prepare_params(p):
    """One-time weight fusion / transposition (not done per forward call)."""
    r = p["rnn"]
    h = r["w_hh_f"].shape[1]
    # fused input projection: [E, 6h] (cols: fwd r,z,n | bwd r,z,n)
    w_ih_T = jnp.concatenate([r["w_ih_f"], r["w_ih_b"]], axis=0).T
    b_ih = jnp.concatenate([r["b_ih_f"], r["b_ih_b"]], axis=0)
    # block-diagonal recurrent weight: [2h, 6h]
    zeros = jnp.zeros((h, 3 * h), jnp.float32)
    whh_blk = jnp.concatenate([
        jnp.concatenate([r["w_hh_f"].T, zeros], axis=1),
        jnp.concatenate([zeros, r["w_hh_b"].T], axis=1)], axis=0)
    b_hh = jnp.concatenate([r["b_hh_f"], r["b_hh_b"]], axis=0)
    # combine_output split:  out = rnn_out @ W[:, :2h]^T + matched @ W[:, 2h:]^T
    W = p["combine_output_w"]
    return {
        "embedding": p["embedding"],
        "w_ih_T": w_ih_T, "b_ih": b_ih,
        "w_hh_blk": whh_blk, "b_hh": b_hh,
        "w1_T": W[:, :2 * h].T, "w2_T": W[:, 2 * h:].T,
        "b_out": p["combine_output_b"],
        "w_hid_T": p["combine_hidden_w"].T, "b_hid": p["combine_hidden_b"],
    }


def biatt_encoder_forward(params, src_ids, ans_ids, src_lengths, ans_lengths):
    emb = params["embedding"]
    S, B = src_ids.shape
    A = ans_ids.shape[0]
    T = max(S, A)
    h2 = params["w_hh_blk"].shape[0]          # 2h
    h = h2 // 2

    src_emb = jnp.take(emb, src_ids, axis=0)  # [S, B, E]
    ans_emb = jnp.take(emb, ans_ids, axis=0)  # [A, B, E]
    E = src_emb.shape[-1]

    # fuse the two streams: pad to T in time, stack along batch -> [T, 2B, E]
    x_all = jnp.concatenate([
        jnp.concatenate([src_emb, jnp.zeros((T - S, B, E), jnp.float32)], axis=0),
        jnp.concatenate([ans_emb, jnp.zeros((T - A, B, E), jnp.float32)], axis=0)],
        axis=1)
    lens_all = jnp.concatenate([src_lengths, ans_lengths]).astype(jnp.int32)

    # single-launch fused bidirectional GRU for both streams
    rnn_out, hid = bidir_gru_fused(x_all, lens_all, params["w_ih_T"],
                                   params["b_ih"], params["w_hh_blk"],
                                   params["b_hh"])                 # [T,2B,2h], [2B,2h]

    # bi-attention + combine_output fused in one batch-gridded kernel
    src_bf = jnp.transpose(rnn_out[:S, :B, :], (1, 0, 2))          # [B, S, 2h]
    ans_bf = jnp.transpose(rnn_out[:A, B:, :], (1, 0, 2))          # [B, A, 2h]
    out_src_bf, out_ans_bf = bi_attention_combine(
        src_bf, ans_bf, lens_all, params["w1_T"], params["w2_T"], params["b_out"])
    outputs = jnp.concatenate([jnp.transpose(out_src_bf, (1, 0, 2)),
                               jnp.transpose(out_ans_bf, (1, 0, 2))], axis=0)

    # final hidden: per direction, concat src & ans hidden, then combine_hidden
    src_hid, ans_hid = hid[:B], hid[B:]
    hid_cat = jnp.stack([
        jnp.concatenate([src_hid[:, :h], ans_hid[:, :h]], axis=-1),   # forward
        jnp.concatenate([src_hid[:, h:], ans_hid[:, h:]], axis=-1),   # backward
    ], axis=0)                                                        # [2, B, 2h]
    hidden = linear(hid_cat.reshape(2 * B, 2 * h),
                    params["w_hid_T"], params["b_hid"]).reshape(2, B, h)
    return hidden, outputs


if __name__ == "__main__":
    key = jax.random.PRNGKey(0)
    vocab, emb_dim, hidden_size = 50, 32, 32      # hidden_size=32 -> real h = 16
    B, S, A = 2, 10, 8
    k1, k2 = jax.random.split(key)
    src_ids = jax.random.randint(k1, (S, B), 0, vocab, dtype=jnp.int32)
    ans_ids = jax.random.randint(k2, (A, B), 0, vocab, dtype=jnp.int32)
    # max(length) == padded length per stream, as required by pack/unpack usage
    src_lengths = jnp.array([S, 7], dtype=jnp.int32)
    ans_lengths = jnp.array([5, A], dtype=jnp.int32)

    params = prepare_params(init_params(jax.random.PRNGKey(42),
                                        vocab, emb_dim, hidden_size))

    fwd = jax.jit(biatt_encoder_forward)
    hidden, outputs = fwd(params, src_ids, ans_ids, src_lengths, ans_lengths)
    jax.block_until_ready((hidden, outputs))
    assert hidden.shape == (2, B, hidden_size // 2)
    assert outputs.shape == (S + A, B, hidden_size)
    assert bool(jnp.isfinite(hidden).all()) and bool(jnp.isfinite(outputs).all())
    print("KERNEL_OK")
</pallas_src>

<mosaic_0001>
module attributes {stable_mosaic.version = 11 : i64} {
  func.func @_linear_kernel(%arg0: memref<40x32xf32, #tpu.memory_space<vmem>>, %arg1: memref<32x96xf32, #tpu.memory_space<vmem>>, %arg2: memref<1x96xf32, #tpu.memory_space<vmem>>, %arg3: memref<40x96xf32, #tpu.memory_space<vmem>>) attributes {dimension_semantics = [], scalar_prefetch = 0 : i64, scratch_operands = 0 : i64, tpu.core_type = #tpu.core_type<tc>} {
    %c0 = arith.constant 0 : index
    %c0_0 = arith.constant 0 : index
    %0 = vector.load %arg0[%c0, %c0_0] : memref<40x32xf32, #tpu.memory_space<vmem>>, vector<40x32xf32>
    %c0_1 = arith.constant 0 : index
    %c0_2 = arith.constant 0 : index
    %1 = vector.load %arg1[%c0_1, %c0_2] : memref<32x96xf32, #tpu.memory_space<vmem>>, vector<32x96xf32>
    %cst = arith.constant dense<0.000000e+00> : vector<40x96xf32>
    %2 = tpu.matmul %0, %1, %cst {dimension_numbers = #tpu.dot_dimension_numbers<[1], [0], [0], [1], [0, 0, 1, 1], [], []>} : vector<40x32xf32>, vector<32x96xf32>, vector<40x96xf32> -> vector<40x96xf32>
    %c0_3 = arith.constant 0 : index
    %c0_4 = arith.constant 0 : index
    %3 = vector.load %arg2[%c0_3, %c0_4] : memref<1x96xf32, #tpu.memory_space<vmem>>, vector<1x96xf32>
    %4 = vector.broadcast %3 : vector<1x96xf32> to vector<40x96xf32>
    %5 = arith.addf %2, %4 : vector<40x96xf32>
    %c0_5 = arith.constant 0 : index
    %c0_6 = arith.constant 0 : index
    %6 = vector.load %arg3[%c0_5, %c0_6] : memref<40x96xf32, #tpu.memory_space<vmem>>, vector<40x96xf32>
    tpu.vector_store %arg3[%c0_5, %c0_6], %5 {strides = array<i32>} : memref<40x96xf32, #tpu.memory_space<vmem>>, vector<40x96xf32>,
    return
  }
}

module attributes {stable_mosaic.version = 11 : i64} {
  func.func @_linear_kernel(%arg0: memref<4x32xf32, #tpu.memory_space<vmem>>, %arg1: memref<32x16xf32, #tpu.memory_space<vmem>>, %arg2: memref<1x16xf32, #tpu.memory_space<vmem>>, %arg3: memref<4x16xf32, #tpu.memory_space<vmem>>) attributes {dimension_semantics = [], scalar_prefetch = 0 : i64, scratch_operands = 0 : i64, tpu.core_type = #tpu.core_type<tc>} {
    %c0 = arith.constant 0 : index
    %c0_0 = arith.constant 0 : index
    %0 = vector.load %arg0[%c0, %c0_0] : memref<4x32xf32, #tpu.memory_space<vmem>>, vector<4x32xf32>
    %c0_1 = arith.constant 0 : index
    %c0_2 = arith.constant 0 : index
    %1 = vector.load %arg1[%c0_1, %c0_2] : memref<32x16xf32, #tpu.memory_space<vmem>>, vector<32x16xf32>
    %cst = arith.constant dense<0.000000e+00> : vector<4x16xf32>
    %2 = tpu.matmul %0, %1, %cst {dimension_numbers = #tpu.dot_dimension_numbers<[1], [0], [0], [1], [0, 0, 1, 1], [], []>} : vector<4x32xf32>, vector<32x16xf32>, vector<4x16xf32> -> vector<4x16xf32>
    %c0_3 = arith.constant 0 : index
    %c0_4 = arith.constant 0 : index
    %3 = vector.load %arg2[%c0_3, %c0_4] : memref<1x16xf32, #tpu.memory_space<vmem>>, vector<1x16xf32>
    %4 = vector.broadcast %3 : vector<1x16xf32> to vector<4x16xf32>
    %5 = arith.addf %2, %4 : vector<4x16xf32>
    %c0_5 = arith.constant 0 : index
    %c0_6 = arith.constant 0 : index
    %6 = vector.load %arg3[%c0_5, %c0_6] : memref<4x16xf32, #tpu.memory_space<vmem>>, vector<4x16xf32>
    tpu.vector_store %arg3[%c0_5, %c0_6], %5 {strides = array<i32>} : memref<4x16xf32, #tpu.memory_space<vmem>>, vector<4x16xf32>,
    return
  }
}

module attributes {stable_mosaic.version = 11 : i64} {
  func.func @_bigru_kernel(%arg0: memref<4x1xi32, #tpu.memory_space<vmem>>, %arg1: memref<10x4x96xf32, #tpu.memory_space<vmem>>, %arg2: memref<32x96xf32, #tpu.memory_space<vmem>>, %arg3: memref<1x96xf32, #tpu.memory_space<vmem>>, %arg4: memref<10x4x16xf32, #tpu.memory_space<vmem>>, %arg5: memref<10x4x16xf32, #tpu.memory_space<vmem>>, %arg6: memref<4x32xf32, #tpu.memory_space<vmem>>) attributes {dimension_semantics = [], scalar_prefetch = 0 : i64, scratch_operands = 0 : i64, tpu.core_type = #tpu.core_type<tc>} {
    %c0 = arith.constant 0 : index
    %c0_0 = arith.constant 0 : index
    %0 = vector.load %arg0[%c0, %c0_0] : memref<4x1xi32, #tpu.memory_space<vmem>>, vector<4x1xi32>
    %c0_1 = arith.constant 0 : index
    %c0_2 = arith.constant 0 : index
    %1 = vector.load %arg2[%c0_1, %c0_2] : memref<32x96xf32, #tpu.memory_space<vmem>>, vector<32x96xf32>
    %c0_3 = arith.constant 0 : index
    %c0_4 = arith.constant 0 : index
    %2 = vector.load %arg3[%c0_3, %c0_4] : memref<1x96xf32, #tpu.memory_space<vmem>>, vector<1x96xf32>
    %cst = arith.constant 0.000000e+00 : f32
    %3 = vector.broadcast %cst : f32 to vector<4x32xf32>
    %c0_i32 = arith.constant 0 : i32
    %cst_5 = arith.constant dense<0.000000e+00> : vector<4x96xf32>
    %4 = tpu.matmul %3, %1, %cst_5 {dimension_numbers = #tpu.dot_dimension_numbers<[1], [0], [0], [1], [0, 0, 1, 1], [], []>} : vector<4x32xf32>, vector<32x96xf32>, vector<4x96xf32> -> vector<4x96xf32>
    %5 = vector.broadcast %2 : vector<1x96xf32> to vector<4x96xf32>
    %6 = arith.addf %4, %5 : vector<4x96xf32>
    %c9_i32 = arith.constant 9 : i32
    %7 = arith.subi %c9_i32, %c0_i32 : i32
    %8 = arith.index_cast %c0_i32 : i32 to index
    %c0_6 = arith.constant 0 : index
    %c0_7 = arith.constant 0 : index
    %9 = vector.load %arg1[%8, %c0_6, %c0_7] : memref<10x4x96xf32, #tpu.memory_space<vmem>>, vector<1x4x96xf32>
    %10 = vector.shape_cast %9 : vector<1x4x96xf32> to vector<4x96xf32>
    %11 = arith.index_cast %7 : i32 to index
    %c0_8 = arith.constant 0 : index
    %c0_9 = arith.constant 0 : index
    %12 = vector.load %arg1[%11, %c0_8, %c0_9] : memref<10x4x96xf32, #tpu.memory_space<vmem>>, vector<1x4x96xf32>
    %13 = vector.shape_cast %12 : vector<1x4x96xf32> to vector<4x96xf32>
    %14 = vector.broadcast %c0_i32 : i32 to vector<4x1xi32>
    %15 = arith.cmpi slt, %14, %0 : vector<4x1xi32>
    %16 = arith.extui %15 : vector<4x1xi1> to vector<4x1xi32>
    %17 = arith.sitofp %16 : vector<4x1xi32> to vector<4x1xf32>
    %18 = vector.broadcast %7 : i32 to vector<4x1xi32>
    %19 = arith.cmpi slt, %18, %0 : vector<4x1xi32>
    %20 = arith.extui %19 : vector<4x1xi1> to vector<4x1xi32>
    %21 = arith.sitofp %20 : vector<4x1xi32> to vector<4x1xf32>
    %22 = vector.extract_strided_slice %10 {offsets = [0, 0], sizes = [4, 48], strides = [1, 1]} : vector<4x96xf32> to vector<4x48xf32>
    %23 = vector.extract_strided_slice %6 {offsets = [0, 0], sizes = [4, 48], strides = [1, 1]} : vector<4x96xf32> to vector<4x48xf32>
    %24 = vector.extract_strided_slice %3 {offsets = [0, 0], sizes = [4, 16], strides = [1, 1]} : vector<4x32xf32> to vector<4x16xf32>
    %25 = vector.extract_strided_slice %22 {offsets = [0, 0], sizes = [4, 16], strides = [1, 1]} : vector<4x48xf32> to vector<4x16xf32>
    %26 = vector.extract_strided_slice %23 {offsets = [0, 0], sizes = [4, 16], strides = [1, 1]} : vector<4x48xf32> to vector<4x16xf32>
    %27 = arith.addf %25, %26 : vector<4x16xf32>
    %28 = arith.negf %27 : vector<4x16xf32>
    %29 = math.exp %28 : vector<4x16xf32>
    %cst_10 = arith.constant 1.000000e+00 : f32
    %30 = vector.broadcast %cst_10 : f32 to vector<4x16xf32>
    %31 = arith.addf %30, %29 : vector<4x16xf32>
    %32 = arith.divf %30, %31 : vector<4x16xf32>
    %33 = vector.extract_strided_slice %22 {offsets = [0, 16], sizes = [4, 16], strides = [1, 1]} : vector<4x48xf32> to vector<4x16xf32>
    %34 = vector.extract_strided_slice %23 {offsets = [0, 16], sizes = [4, 16], strides = [1, 1]} : vector<4x48xf32> to vector<4x16xf32>
    %35 = arith.addf %33, %34 : vector<4x16xf32>
    %36 = arith.negf %35 : vector<4x16xf32>
    %37 = math.exp %36 : vector<4x16xf32>
    %cst_11 = arith.constant 1.000000e+00 : f32
    %38 = vector.broadcast %cst_11 : f32 to vector<4x16xf32>
    %39 = arith.addf %38, %37 : vector<4x16xf32>
    %40 = arith.divf %38, %39 : vector<4x16xf32>
    %41 = vector.extract_strided_slice %22 {offsets = [0, 32], sizes = [4, 16], strides = [1, 1]} : vector<4x48xf32> to vector<4x16xf32>
    %42 = vector.extract_strided_slice %23 {offsets = [0, 32], sizes = [4, 16], strides = [1, 1]} : vector<4x48xf32> to vector<4x16xf32>
    %43 = arith.mulf %32, %42 : vector<4x16xf32>
    %44 = arith.addf %41, %43 : vector<4x16xf32>
    %45 = math.tanh %44 : vector<4x16xf32>
    %cst_12 = arith.constant 1.000000e+00 : f32
    %46 = vector.broadcast %cst_12 : f32 to vector<4x16xf32>
    %47 = arith.subf %46, %40 : vector<4x16xf32>
    %48 = arith.mulf %47, %45 : vector<4x16xf32>
    %49 = arith.mulf %40, %24 : vector<4x16xf32>
    %50 = arith.addf %48, %49 : vector<4x16xf32>
    %51 = vector.broadcast %17 : vector<4x1xf32> to vector<4x16xf32>
    %52 = arith.mulf %51, %50 : vector<4x16xf32>
    %cst_13 = arith.constant 1.000000e+00 : f32
    %53 = vector.broadcast %cst_13 : f32 to vector<4x1xf32>
    %54 = arith.subf %53, %17 : vector<4x1xf32>
    %55 = vector.broadcast %54 : vector<4x1xf32> to vector<4x16xf32>
    %56 = arith.mulf %55, %24 : vector<4x16xf32>
    %57 = arith.addf %52, %56 : vector<4x16xf32>
    %58 = vector.broadcast %17 : vector<4x1xf32> to vector<4x16xf32>
    %59 = arith.mulf %58, %50 : vector<4x16xf32>
    %60 = vector.extract_strided_slice %13 {offsets = [0, 48], sizes = [4, 48], strides = [1, 1]} : vector<4x96xf32> to vector<4x48xf32>
    %61 = vector.extract_strided_slice %6 {offsets = [0, 48], sizes = [4, 48], strides = [1, 1]} : vector<4x96xf32> to vector<4x48xf32>
    %62 = vector.extract_strided_slice %3 {offsets = [0, 16], sizes = [4, 16], strides = [1, 1]} : vector<4x32xf32> to vector<4x16xf32>
    %63 = vector.extract_strided_slice %60 {offsets = [0, 0], sizes = [4, 16], strides = [1, 1]} : vector<4x48xf32> to vector<4x16xf32>
    %64 = vector.extract_strided_slice %61 {offsets = [0, 0], sizes = [4, 16], strides = [1, 1]} : vector<4x48xf32> to vector<4x16xf32>
    %65 = arith.addf %63, %64 : vector<4x16xf32>
    %66 = arith.negf %65 : vector<4x16xf32>
    %67 = math.exp %66 : vector<4x16xf32>
    %cst_14 = arith.constant 1.000000e+00 : f32
    %68 = vector.broadcast %cst_14 : f32 to vector<4x16xf32>
    %69 = arith.addf %68, %67 : vector<4x16xf32>
    %70 = arith.divf %68, %69 : vector<4x16xf32>
    %71 = vector.extract_strided_slice %60 {offsets = [0, 16], sizes = [4, 16], strides = [1, 1]} : vector<4x48xf32> to vector<4x16xf32>
    %72 = vector.extract_strided_slice %61 {offsets = [0, 16], sizes = [4, 16], strides = [1, 1]} : vector<4x48xf32> to vector<4x16xf32>
    %73 = arith.addf %71, %72 : vector<4x16xf32>
    %74 = arith.negf %73 : vector<4x16xf32>
    %75 = math.exp %74 : vector<4x16xf32>
    %cst_15 = arith.constant 1.000000e+00 : f32
    %76 = vector.broadcast %cst_15 : f32 to vector<4x16xf32>
    %77 = arith.addf %76, %75 : vector<4x16xf32>
    %78 = arith.divf %76, %77 : vector<4x16xf32>
    %79 = vector.extract_strided_slice %60 {offsets = [0, 32], sizes = [4, 16], strides = [1, 1]} : vector<4x48xf32> to vector<4x16xf32>
    %80 = vector.extract_strided_slice %61 {offsets = [0, 32], sizes = [4, 16], strides = [1, 1]} : vector<4x48xf32> to vector<4x16xf32>
    %81 = arith.mulf %70, %80 : vector<4x16xf32>
    %82 = arith.addf %79, %81 : vector<4x16xf32>
    %83 = math.tanh %82 : vector<4x16xf32>
    %cst_16 = arith.constant 1.000000e+00 : f32
    %84 = vector.broadcast %cst_16 : f32 to vector<4x16xf32>
    %85 = arith.subf %84, %78 : vector<4x16xf32>
    %86 = arith.mulf %85, %83 : vector<4x16xf32>
    %87 = arith.mulf %78, %62 : vector<4x16xf32>
    %88 = arith.addf %86, %87 : vector<4x16xf32>
    %89 = vector.broadcast %21 : vector<4x1xf32> to vector<4x16xf32>
    %90 = arith.mulf %89, %88 : vector<4x16xf32>
    %cst_17 = arith.constant 1.000000e+00 : f32
    %91 = vector.broadcast %cst_17 : f32 to vector<4x1xf32>
    %92 = arith.subf %91, %21 : vector<4x1xf32>
    %93 = vector.broadcast %92 : vector<4x1xf32> to vector<4x16xf32>
    %94 = arith.mulf %93, %62 : vector<4x16xf32>
    %95 = arith.addf %90, %94 : vector<4x16xf32>
    %96 = vector.broadcast %21 : vector<4x1xf32> to vector<4x16xf32>
    %97 = arith.mulf %96, %88 : vector<4x16xf32>
    %98 = arith.index_cast %c0_i32 : i32 to index
    %c0_18 = arith.constant 0 : index
    %c0_19 = arith.constant 0 : index
    %99 = vector.load %arg4[%98, %c0_18, %c0_19] : memref<10x4x16xf32, #tpu.memory_space<vmem>>, vector<1x4x16xf32>
    %100 = vector.shape_cast %99 : vector<1x4x16xf32> to vector<4x16xf32>
    %101 = vector.shape_cast %59 : vector<4x16xf32> to vector<1x4x16xf32>
    tpu.vector_store %arg4[%98, %c0_18, %c0_19], %101 {strides = array<i32>} : memref<10x4x16xf32, #tpu.memory_space<vmem>>, vector<1x4x16xf32>,
    %102 = arith.index_cast %7 : i32 to index
    %c0_20 = arith.constant 0 : index
    %c0_21 = arith.constant 0 : index
    %103 = vector.load %arg5[%102, %c0_20, %c0_21] : memref<10x4x16xf32, #tpu.memory_space<vmem>>, vector<1x4x16xf32>
    %104 = vector.shape_cast %103 : vector<1x4x16xf32> to vector<4x16xf32>
    %105 = vector.shape_cast %97 : vector<4x16xf32> to vector<1x4x16xf32>
    tpu.vector_store %arg5[%102, %c0_20, %c0_21], %105 {strides = array<i32>} : memref<10x4x16xf32, #tpu.memory_space<vmem>>, vector<1x4x16xf32>,
    %106 = tpu.concatenate %57, %95 in 1 : vector<4x16xf32>, vector<4x16xf32> -> vector<4x32xf32>
    %c1_i32 = arith.constant 1 : i32
    %cst_22 = arith.constant dense<0.000000e+00> : vector<4x96xf32>
    %107 = tpu.matmul %106, %1, %cst_22 {dimension_numbers = #tpu.dot_dimension_numbers<[1], [0], [0], [1], [0, 0, 1, 1], [], []>} : vector<4x32xf32>, vector<32x96xf32>, vector<4x96xf32> -> vector<4x96xf32>
    %108 = vector.broadcast %2 : vector<1x96xf32> to vector<4x96xf32>
    %109 = arith.addf %107, %108 : vector<4x96xf32>
    %c9_i32_23 = arith.constant 9 : i32
    %110 = arith.subi %c9_i32_23, %c1_i32 : i32
    %111 = arith.index_cast %c1_i32 : i32 to index
    %c0_24 = arith.constant 0 : index
    %c0_25 = arith.constant 0 : index
    %112 = vector.load %arg1[%111, %c0_24, %c0_25] : memref<10x4x96xf32, #tpu.memory_space<vmem>>, vector<1x4x96xf32>
    %113 = vector.shape_cast %112 : vector<1x4x96xf32> to vector<4x96xf32>
    %114 = arith.index_cast %110 : i32 to index
    %c0_26 = arith.constant 0 : index
    %c0_27 = arith.constant 0 : index
    %115 = vector.load %arg1[%114, %c0_26, %c0_27] : memref<10x4x96xf32, #tpu.memory_space<vmem>>, vector<1x4x96xf32>
    %116 = vector.shape_cast %115 : vector<1x4x96xf32> to vector<4x96xf32>
    %117 = vector.broadcast %c1_i32 : i32 to vector<4x1xi32>
    %118 = arith.cmpi slt, %117, %0 : vector<4x1xi32>
    %119 = arith.extui %118 : vector<4x1xi1> to vector<4x1xi32>
    %120 = arith.sitofp %119 : vector<4x1xi32> to vector<4x1xf32>
    %121 = vector.broadcast %110 : i32 to vector<4x1xi32>
    %122 = arith.cmpi slt, %121, %0 : vector<4x1xi32>
    %123 = arith.extui %122 : vector<4x1xi1> to vector<4x1xi32>
    %124 = arith.sitofp %123 : vector<4x1xi32> to vector<4x1xf32>
    %125 = vector.extract_strided_slice %113 {offsets = [0, 0], sizes = [4, 48], strides = [1, 1]} : vector<4x96xf32> to vector<4x48xf32>
    %126 = vector.extract_strided_slice %109 {offsets = [0, 0], sizes = [4, 48], strides = [1, 1]} : vector<4x96xf32> to vector<4x48xf32>
    %127 = vector.extract_strided_slice %106 {offsets = [0, 0], sizes = [4, 16], strides = [1, 1]} : vector<4x32xf32> to vector<4x16xf32>
    %128 = vector.extract_strided_slice %125 {offsets = [0, 0], sizes = [4, 16], strides = [1, 1]} : vector<4x48xf32> to vector<4x16xf32>
    %129 = vector.extract_strided_slice %126 {offsets = [0, 0], sizes = [4, 16], strides = [1, 1]} : vector<4x48xf32> to vector<4x16xf32>
    %130 = arith.addf %128, %129 : vector<4x16xf32>
    %131 = arith.negf %130 : vector<4x16xf32>
    %132 = math.exp %131 : vector<4x16xf32>
    %cst_28 = arith.constant 1.000000e+00 : f32
    %133 = vector.broadcast %cst_28 : f32 to vector<4x16xf32>
    %134 = arith.addf %133, %132 : vector<4x16xf32>
    %135 = arith.divf %133, %134 : vector<4x16xf32>
    %136 = vector.extract_strided_slice %125 {offsets = [0, 16], sizes = [4, 16], strides = [1, 1]} : vector<4x48xf32> to vector<4x16xf32>
    %137 = vector.extract_strided_slice %126 {offsets = [0, 16], sizes = [4, 16], strides = [1, 1]} : vector<4x48xf32> to vector<4x16xf32>
    %138 = arith.addf %136, %137 : vector<4x16xf32>
    %139 = arith.negf %138 : vector<4x16xf32>
    %140 = math.exp %139 : vector<4x16xf32>
    %cst_29 = arith.constant 1.000000e+00 : f32
    %141 = vector.broadcast %cst_29 : f32 to vector<4x16xf32>
    %142 = arith.addf %141, %140 : vector<4x16xf32>
    %143 = arith.divf %141, %142 : vector<4x16xf32>
    %144 = vector.extract_strided_slice %125 {offsets = [0, 32], sizes = [4, 16], strides = [1, 1]} : vector<4x48xf32> to vector<4x16xf32>
    %145 = vector.extract_strided_slice %126 {offsets = [0, 32], sizes = [4, 16], strides = [1, 1]} : vector<4x48xf32> to vector<4x16xf32>
    %146 = arith.mulf %135, %145 : vector<4x16xf32>
    %147 = arith.addf %144, %146 : vector<4x16xf32>
    %148 = math.tanh %147 : vector<4x16xf32>
    %cst_30 = arith.constant 1.000000e+00 : f32
    %149 = vector.broadcast %cst_30 : f32 to vector<4x16xf32>
    %150 = arith.subf %149, %143 : vector<4x16xf32>
    %151 = arith.mulf %150, %148 : vector<4x16xf32>
    %152 = arith.mulf %143, %127 : vector<4x16xf32>
    %153 = arith.addf %151, %152 : vector<4x16xf32>
    %154 = vector.broadcast %120 : vector<4x1xf32> to vector<4x16xf32>
    %155 = arith.mulf %154, %153 : vector<4x16xf32>
    %cst_31 = arith.constant 1.000000e+00 : f32
    %156 = vector.broadcast %cst_31 : f32 to vector<4x1xf32>
    %157 = arith.subf %156, %120 : vector<4x1xf32>
    %158 = vector.broadcast %157 : vector<4x1xf32> to vector<4x16xf32>
    %159 = arith.mulf %158, %127 : vector<4x16xf32>
    %160 = arith.addf %155, %159 : vector<4x16xf32>
    %161 = vector.broadcast %120 : vector<4x1xf32> to vector<4x16xf32>
    %162 = arith.mulf %161, %153 : vector<4x16xf32>
    %163 = vector.extract_strided_slice %116 {offsets = [0, 48], sizes = [4, 48], strides = [1, 1]} : vector<4x96xf32> to vector<4x48xf32>
    %164 = vector.extract_strided_slice %109 {offsets = [0, 48], sizes = [4, 48], strides = [1, 1]} : vector<4x96xf32> to vector<4x48xf32>
    %165 = vector.extract_strided_slice %106 {offsets = [0, 16], sizes = [4, 16], strides = [1, 1]} : vector<4x32xf32> to vector<4x16xf32>
    %166 = vector.extract_strided_slice %163 {offsets = [0, 0], sizes = [4, 16], strides = [1, 1]} : vector<4x48xf32> to vector<4x16xf32>
    %167 = vector.extract_strided_slice %164 {offsets = [0, 0], sizes = [4, 16], strides = [1, 1]} : vector<4x48xf32> to vector<4x16xf32>
    %168 = arith.addf %166, %167 : vector<4x16xf32>
    %169 = arith.negf %168 : vector<4x16xf32>
    %170 = math.exp %169 : vector<4x16xf32>
    %cst_32 = arith.constant 1.000000e+00 : f32
    %171 = vector.broadcast %cst_32 : f32 to vector<4x16xf32>
    %172 = arith.addf %171, %170 : vector<4x16xf32>
    %173 = arith.divf %171, %172 : vector<4x16xf32>
    %174 = vector.extract_strided_slice %163 {offsets = [0, 16], sizes = [4, 16], strides = [1, 1]} : vector<4x48xf32> to vector<4x16xf32>
    %175 = vector.extract_strided_slice %164 {offsets = [0, 16], sizes = [4, 16], strides = [1, 1]} : vector<4x48xf32> to vector<4x16xf32>
    %176 = arith.addf %174, %175 : vector<4x16xf32>
    %177 = arith.negf %176 : vector<4x16xf32>
    %178 = math.exp %177 : vector<4x16xf32>
    %cst_33 = arith.constant 1.000000e+00 : f32
    %179 = vector.broadcast %cst_33 : f32 to vector<4x16xf32>
    %180 = arith.addf %179, %178 : vector<4x16xf32>
    %181 = arith.divf %179, %180 : vector<4x16xf32>
    %182 = vector.extract_strided_slice %163 {offsets = [0, 32], sizes = [4, 16], strides = [1, 1]} : vector<4x48xf32> to vector<4x16xf32>
    %183 = vector.extract_strided_slice %164 {offsets = [0, 32], sizes = [4, 16], strides = [1, 1]} : vector<4x48xf32> to vector<4x16xf32>
    %184 = arith.mulf %173, %183 : vector<4x16xf32>
    %185 = arith.addf %182, %184 : vector<4x16xf32>
    %186 = math.tanh %185 : vector<4x16xf32>
    %cst_34 = arith.constant 1.000000e+00 : f32
    %187 = vector.broadcast %cst_34 : f32 to vector<4x16xf32>
    %188 = arith.subf %187, %181 : vector<4x16xf32>
    %189 = arith.mulf %188, %186 : vector<4x16xf32>
    %190 = arith.mulf %181, %165 : vector<4x16xf32>
    %191 = arith.addf %189, %190 : vector<4x16xf32>
    %192 = vector.broadcast %124 : vector<4x1xf32> to vector<4x16xf32>
    %193 = arith.mulf %192, %191 : vector<4x16xf32>
    %cst_35 = arith.constant 1.000000e+00 : f32
    %194 = vector.broadcast %cst_35 : f32 to vector<4x1xf32>
    %195 = arith.subf %194, %124 : vector<4x1xf32>
    %196 = vector.broadcast %195 : vector<4x1xf32> to vector<4x16xf32>
    %197 = arith.mulf %196, %165 : vector<4x16xf32>
    %198 = arith.addf %193, %197 : vector<4x16xf32>
    %199 = vector.broadcast %124 : vector<4x1xf32> to vector<4x16xf32>
    %200 = arith.mulf %199, %191 : vector<4x16xf32>
    %201 = arith.index_cast %c1_i32 : i32 to index
    %c0_36 = arith.constant 0 : index
    %c0_37 = arith.constant 0 : index
    %202 = vector.load %arg4[%201, %c0_36, %c0_37] : memref<10x4x16xf32, #tpu.memory_space<vmem>>, vector<1x4x16xf32>
    %203 = vector.shape_cast %202 : vector<1x4x16xf32> to vector<4x16xf32>
    %204 = vector.shape_cast %162 : vector<4x16xf32> to vector<1x4x16xf32>
    tpu.vector_store %arg4[%201, %c0_36, %c0_37], %204 {strides = array<i32>} : memref<10x4x16xf32, #tpu.memory_space<vmem>>, vector<1x4x16xf32>,
    %205 = arith.index_cast %110 : i32 to index
    %c0_38 = arith.constant 0 : index
    %c0_39 = arith.constant 0 : index
    %206 = vector.load %arg5[%205, %c0_38, %c0_39] : memref<10x4x16xf32, #tpu.memory_space<vmem>>, vector<1x4x16xf32>
    %207 = vector.shape_cast %206 : vector<1x4x16xf32> to vector<4x16xf32>
    %208 = vector.shape_cast %200 : vector<4x16xf32> to vector<1x4x16xf32>
    tpu.vector_store %arg5[%205, %c0_38, %c0_39], %208 {strides = array<i32>} : memref<10x4x16xf32, #tpu.memory_space<vmem>>, vector<1x4x16xf32>,
    %209 = tpu.concatenate %160, %198 in 1 : vector<4x16xf32>, vector<4x16xf32> -> vector<4x32xf32>
    %c2_i32 = arith.constant 2 : i32
    %cst_40 = arith.constant dense<0.000000e+00> : vector<4x96xf32>
    %210 = tpu.matmul %209, %1, %cst_40 {dimension_numbers = #tpu.dot_dimension_numbers<[1], [0], [0], [1], [0, 0, 1, 1], [], []>} : vector<4x32xf32>, vector<32x96xf32>, vector<4x96xf32> -> vector<4x96xf32>
    %211 = vector.broadcast %2 : vector<1x96xf32> to vector<4x96xf32>
    %212 = arith.addf %210, %211 : vector<4x96xf32>
    %c9_i32_41 = arith.constant 9 : i32
    %213 = arith.subi %c9_i32_41, %c2_i32 : i32
    %214 = arith.index_cast %c2_i32 : i32 to index
    %c0_42 = arith.constant 0 : index
    %c0_43 = arith.constant 0 : index
    %215 = vector.load %arg1[%214, %c0_42, %c0_43] : memref<10x4x96xf32, #tpu.memory_space<vmem>>, vector<1x4x96xf32>
    %216 = vector.shape_cast %215 : vector<1x4x96xf32> to vector<4x96xf32>
    %217 = arith.index_cast %213 : i32 to index
    %c0_44 = arith.constant 0 : index
    %c0_45 = arith.constant 0 : index
    %218 = vector.load %arg1[%217, %c0_44, %c0_45] : memref<10x4x96xf32, #tpu.memory_space<vmem>>, vector<1x4x96xf32>
    %219 = vector.shape_cast %218 : vector<1x4x96xf32> to vector<4x96xf32>
    %220 = vector.broadcast %c2_i32 : i32 to vector<4x1xi32>
    %221 = arith.cmpi slt, %220, %0 : vector<4x1xi32>
    %222 = arith.extui %221 : vector<4x1xi1> to vector<4x1xi32>
    %223 = arith.sitofp %222 : vector<4x1xi32> to vector<4x1xf32>
    %224 = vector.broadcast %213 : i32 to vector<4x1xi32>
    %225 = arith.cmpi slt, %224, %0 : vector<4x1xi32>
    %226 = arith.extui %225 : vector<4x1xi1> to vector<4x1xi32>
    %227 = arith.sitofp %226 : vector<4x1xi32> to vector<4x1xf32>
    %228 = vector.extract_strided_slice %216 {offsets = [0, 0], sizes = [4, 48], strides = [1, 1]} : vector<4x96xf32> to vector<4x48xf32>
    %229 = vector.extract_strided_slice %212 {offsets = [0, 0], sizes = [4, 48], strides = [1, 1]} : vector<4x96xf32> to vector<4x48xf32>
    %230 = vector.extract_strided_slice %209 {offsets = [0, 0], sizes = [4, 16], strides = [1, 1]} : vector<4x32xf32> to vector<4x16xf32>
    %231 = vector.extract_strided_slice %228 {offsets = [0, 0], sizes = [4, 16], strides = [1, 1]} : vector<4x48xf32> to vector<4x16xf32>
    %232 = vector.extract_strided_slice %229 {offsets = [0, 0], sizes = [4, 16], strides = [1, 1]} : vector<4x48xf32> to vector<4x16xf32>
    %233 = arith.addf %231, %232 : vector<4x16xf32>
    %234 = arith.negf %233 : vector<4x16xf32>
    %235 = math.exp %234 : vector<4x16xf32>
    %cst_46 = arith.constant 1.000000e+00 : f32
    %236 = vector.broadcast %cst_46 : f32 to vector<4x16xf32>
    %237 = arith.addf %236, %235 : vector<4x16xf32>
    %238 = arith.divf %236, %237 : vector<4x16xf32>
    %239 = vector.extract_strided_slice %228 {offsets = [0, 16], sizes = [4, 16], strides = [1, 1]} : vector<4x48xf32> to vector<4x16xf32>
    %240 = vector.extract_strided_slice %229 {offsets = [0, 16], sizes = [4, 16], strides = [1, 1]} : vector<4x48xf32> to vector<4x16xf32>
    %241 = arith.addf %239, %240 : vector<4x16xf32>
    %242 = arith.negf %241 : vector<4x16xf32>
    %243 = math.exp %242 : vector<4x16xf32>
    %cst_47 = arith.constant 1.000000e+00 : f32
    %244 = vector.broadcast %cst_47 : f32 to vector<4x16xf32>
    %245 = arith.addf %244, %243 : vector<4x16xf32>
    %246 = arith.divf %244, %245 : vector<4x16xf32>
    %247 = vector.extract_strided_slice %228 {offsets = [0, 32], sizes = [4, 16], strides = [1, 1]} : vector<4x48xf32> to vector<4x16xf32>
    %248 = vector.extract_strided_slice %229 {offsets = [0, 32], sizes = [4, 16], strides = [1, 1]} : vector<4x48xf32> to vector<4x16xf32>
    %249 = arith.mulf %238, %248 : vector<4x16xf32>
    %250 = arith.addf %247, %249 : vector<4x16xf32>
    %251 = math.tanh %250 : vector<4x16xf32>
    %cst_48 = arith.constant 1.000000e+00 : f32
    %252 = vector.broadcast %cst_48 : f32 to vector<4x16xf32>
    %253 = arith.subf %252, %246 : vector<4x16xf32>
    %254 = arith.mulf %253, %251 : vector<4x16xf32>
    %255 = arith.mulf %246, %230 : vector<4x16xf32>
    %256 = arith.addf %254, %255 : vector<4x16xf32>
    %257 = vector.broadcast %223 : vector<4x1xf32> to vector<4x16xf32>
    %258 = arith.mulf %257, %256 : vector<4x16xf32>
    %cst_49 = arith.constant 1.000000e+00 : f32
    %259 = vector.broadcast %cst_49 : f32 to vector<4x1xf32>
    %260 = arith.subf %259, %223 : vector<4x1xf32>
    %261 = vector.broadcast %260 : vector<4x1xf32> to vector<4x16xf32>
    %262 = arith.mulf %261, %230 : vector<4x16xf32>
    %263 = arith.addf %258, %262 : vector<4x16xf32>
    %264 = vector.broadcast %223 : vector<4x1xf32> to vector<4x16xf32>
    %265 = arith.mulf %264, %256 : vector<4x16xf32>
    %266 = vector.extract_strided_slice %219 {offsets = [0, 48], sizes = [4, 48], strides = [1, 1]} : vector<4x96xf32> to vector<4x48xf32>
    %267 = vector.extract_strided_slice %212 {offsets = [0, 48], sizes = [4, 48], strides = [1, 1]} : vector<4x96xf32> to vector<4x48xf32>
    %268 = vector.extract_strided_slice %209 {offsets = [0, 16], sizes = [4, 16], strides = [1, 1]} : vector<4x32xf32> to vector<4x16xf32>
    %269 = vector.extract_strided_slice %266 {offsets = [0, 0], sizes = [4, 16], strides = [1, 1]} : vector<4x48xf32> to vector<4x16xf32>
    %270 = vector.extract_strided_slice %267 {offsets = [0, 0], sizes = [4, 16], strides = [1, 1]} : vector<4x48xf32> to vector<4x16xf32>
    %271 = arith.addf %269, %270 : vector<4x16xf32>
    %272 = arith.negf %271 : vector<4x16xf32>
    %273 = math.exp %272 : vector<4x16xf32>
    %cst_50 = arith.constant 1.000000e+00 : f32
    %274 = vector.broadcast %cst_50 : f32 to vector<4x16xf32>
    %275 = arith.addf %274, %273 : vector<4x16xf32>
    %276 = arith.divf %274, %275 : vector<4x16xf32>
    %277 = vector.extract_strided_slice %266 {offsets = [0, 16], sizes = [4, 16], strides = [1, 1]} : vector<4x48xf32> to vector<4x16xf32>
    %278 = vector.extract_strided_slice %267 {offsets = [0, 16], sizes = [4, 16], strides = [1, 1]} : vector<4x48xf32> to vector<4x16xf32>
    %279 = arith.addf %277, %278 : vector<4x16xf32>
    %280 = arith.negf %279 : vector<4x16xf32>
    %281 = math.exp %280 : vector<4x16xf32>
    %cst_51 = arith.constant 1.000000e+00 : f32
    %282 = vector.broadcast %cst_51 : f32 to vector<4x16xf32>
    %283 = arith.addf %282, %281 : vector<4x16xf32>
    %284 = arith.divf %282, %283 : vector<4x16xf32>
    %285 = vector.extract_strided_slice %266 {offsets = [0, 32], sizes = [4, 16], strides = [1, 1]} : vector<4x48xf32> to vector<4x16xf32>
    %286 = vector.extract_strided_slice %267 {offsets = [0, 32], sizes = [4, 16], strides = [1, 1]} : vector<4x48xf32> to vector<4x16xf32>
    %287 = arith.mulf %276, %286 : vector<4x16xf32>
    %288 = arith.addf %285, %287 : vector<4x16xf32>
    %289 = math.tanh %288 : vector<4x16xf32>
    %cst_52 = arith.constant 1.000000e+00 : f32
    %290 = vector.broadcast %cst_52 : f32 to vector<4x16xf32>
    %291 = arith.subf %290, %284 : vector<4x16xf32>
    %292 = arith.mulf %291, %289 : vector<4x16xf32>
    %293 = arith.mulf %284, %268 : vector<4x16xf32>
    %294 = arith.addf %292, %293 : vector<4x16xf32>
    %295 = vector.broadcast %227 : vector<4x1xf32> to vector<4x16xf32>
    %296 = arith.mulf %295, %294 : vector<4x16xf32>
    %cst_53 = arith.constant 1.000000e+00 : f32
    %297 = vector.broadcast %cst_53 : f32 to vector<4x1xf32>
    %298 = arith.subf %297, %227 : vector<4x1xf32>
    %299 = vector.broadcast %298 : vector<4x1xf32> to vector<4x16xf32>
    %300 = arith.mulf %299, %268 : vector<4x16xf32>
    %301 = arith.addf %296, %300 : vector<4x16xf32>
    %302 = vector.broadcast %227 : vector<4x1xf32> to vector<4x16xf32>
    %303 = arith.mulf %302, %294 : vector<4x16xf32>
    %304 = arith.index_cast %c2_i32 : i32 to index
    %c0_54 = arith.constant 0 : index
    %c0_55 = arith.constant 0 : index
    %305 = vector.load %arg4[%304, %c0_54, %c0_55] : memref<10x4x16xf32, #tpu.memory_space<vmem>>, vector<1x4x16xf32>
    %306 = vector.shape_cast %305 : vector<1x4x16xf32> to vector<4x16xf32>
    %307 = vector.shape_cast %265 : vector<4x16xf32> to vector<1x4x16xf32>
    tpu.vector_store %arg4[%304, %c0_54, %c0_55], %307 {strides = array<i32>} : memref<10x4x16xf32, #tpu.memory_space<vmem>>, vector<1x4x16xf32>,
    %308 = arith.index_cast %213 : i32 to index
    %c0_56 = arith.constant 0 : index
    %c0_57 = arith.constant 0 : index
    %309 = vector.load %arg5[%308, %c0_56, %c0_57] : memref<10x4x16xf32, #tpu.memory_space<vmem>>, vector<1x4x16xf32>
    %310 = vector.shape_cast %309 : vector<1x4x16xf32> to vector<4x16xf32>
    %311 = vector.shape_cast %303 : vector<4x16xf32> to vector<1x4x16xf32>
    tpu.vector_store %arg5[%308, %c0_56, %c0_57], %311 {strides = array<i32>} : memref<10x4x16xf32, #tpu.memory_space<vmem>>, vector<1x4x16xf32>,
    %312 = tpu.concatenate %263, %301 in 1 : vector<4x16xf32>, vector<4x16xf32> -> vector<4x32xf32>
    %c3_i32 = arith.constant 3 : i32
    %cst_58 = arith.constant dense<0.000000e+00> : vector<4x96xf32>
    %313 = tpu.matmul %312, %1, %cst_58 {dimension_numbers = #tpu.dot_dimension_numbers<[1], [0], [0], [1], [0, 0, 1, 1], [], []>} : vector<4x32xf32>, vector<32x96xf32>, vector<4x96xf32> -> vector<4x96xf32>
    %314 = vector.broadcast %2 : vector<1x96xf32> to vector<4x96xf32>
    %315 = arith.addf %313, %314 : vector<4x96xf32>
    %c9_i32_59 = arith.constant 9 : i32
    %316 = arith.subi %c9_i32_59, %c3_i32 : i32
    %317 = arith.index_cast %c3_i32 : i32 to index
    %c0_60 = arith.constant 0 : index
    %c0_61 = arith.constant 0 : index
    %318 = vector.load %arg1[%317, %c0_60, %c0_61] : memref<10x4x96xf32, #tpu.memory_space<vmem>>, vector<1x4x96xf32>
    %319 = vector.shape_cast %318 : vector<1x4x96xf32> to vector<4x96xf32>
    %320 = arith.index_cast %316 : i32 to index
    %c0_62 = arith.constant 0 : index
    %c0_63 = arith.constant 0 : index
    %321 = vector.load %arg1[%320, %c0_62, %c0_63] : memref<10x4x96xf32, #tpu.memory_space<vmem>>, vector<1x4x96xf32>
    %322 = vector.shape_cast %321 : vector<1x4x96xf32> to vector<4x96xf32>
    %323 = vector.broadcast %c3_i32 : i32 to vector<4x1xi32>
    %324 = arith.cmpi slt, %323, %0 : vector<4x1xi32>
    %325 = arith.extui %324 : vector<4x1xi1> to vector<4x1xi32>
    %326 = arith.sitofp %325 : vector<4x1xi32> to vector<4x1xf32>
    %327 = vector.broadcast %316 : i32 to vector<4x1xi32>
    %328 = arith.cmpi slt, %327, %0 : vector<4x1xi32>
    %329 = arith.extui %328 : vector<4x1xi1> to vector<4x1xi32>
    %330 = arith.sitofp %329 : vector<4x1xi32> to vector<4x1xf32>
    %331 = vector.extract_strided_slice %319 {offsets = [0, 0], sizes = [4, 48], strides = [1, 1]} : vector<4x96xf32> to vector<4x48xf32>
    %332 = vector.extract_strided_slice %315 {offsets = [0, 0], sizes = [4, 48], strides = [1, 1]} : vector<4x96xf32> to vector<4x48xf32>
    %333 = vector.extract_strided_slice %312 {offsets = [0, 0], sizes = [4, 16], strides = [1, 1]} : vector<4x32xf32> to vector<4x16xf32>
    %334 = vector.extract_strided_slice %331 {offsets = [0, 0], sizes = [4, 16], strides = [1, 1]} : vector<4x48xf32> to vector<4x16xf32>
    %335 = vector.extract_strided_slice %332 {offsets = [0, 0], sizes = [4, 16], strides = [1, 1]} : vector<4x48xf32> to vector<4x16xf32>
    %336 = arith.addf %334, %335 : vector<4x16xf32>
    %337 = arith.negf %336 : vector<4x16xf32>
    %338 = math.exp %337 : vector<4x16xf32>
    %cst_64 = arith.constant 1.000000e+00 : f32
    %339 = vector.broadcast %cst_64 : f32 to vector<4x16xf32>
    %340 = arith.addf %339, %338 : vector<4x16xf32>
    %341 = arith.divf %339, %340 : vector<4x16xf32>
    %342 = vector.extract_strided_slice %331 {offsets = [0, 16], sizes = [4, 16], strides = [1, 1]} : vector<4x48xf32> to vector<4x16xf32>
    %343 = vector.extract_strided_slice %332 {offsets = [0, 16], sizes = [4, 16], strides = [1, 1]} : vector<4x48xf32> to vector<4x16xf32>
    %344 = arith.addf %342, %343 : vector<4x16xf32>
    %345 = arith.negf %344 : vector<4x16xf32>
    %346 = math.exp %345 : vector<4x16xf32>
    %cst_65 = arith.constant 1.000000e+00 : f32
    %347 = vector.broadcast %cst_65 : f32 to vector<4x16xf32>
    %348 = arith.addf %347, %346 : vector<4x16xf32>
    %349 = arith.divf %347, %348 : vector<4x16xf32>
    %350 = vector.extract_strided_slice %331 {offsets = [0, 32], sizes = [4, 16], strides = [1, 1]} : vector<4x48xf32> to vector<4x16xf32>
    %351 = vector.extract_strided_slice %332 {offsets = [0, 32], sizes = [4, 16], strides = [1, 1]} : vector<4x48xf32> to vector<4x16xf32>
    %352 = arith.mulf %341, %351 : vector<4x16xf32>
    %353 = arith.addf %350, %352 : vector<4x16xf32>
    %354 = math.tanh %353 : vector<4x16xf32>
    %cst_66 = arith.constant 1.000000e+00 : f32
    %355 = vector.broadcast %cst_66 : f32 to vector<4x16xf32>
    %356 = arith.subf %355, %349 : vector<4x16xf32>
    %357 = arith.mulf %356, %354 : vector<4x16xf32>
    %358 = arith.mulf %349, %333 : vector<4x16xf32>
    %359 = arith.addf %357, %358 : vector<4x16xf32>
    %360 = vector.broadcast %326 : vector<4x1xf32> to vector<4x16xf32>
    %361 = arith.mulf %360, %359 : vector<4x16xf32>
    %cst_67 = arith.constant 1.000000e+00 : f32
    %362 = vector.broadcast %cst_67 : f32 to vector<4x1xf32>
    %363 = arith.subf %362, %326 : vector<4x1xf32>
    %364 = vector.broadcast %363 : vector<4x1xf32> to vector<4x16xf32>
    %365 = arith.mulf %364, %333 : vector<4x16xf32>
    %366 = arith.addf %361, %365 : vector<4x16xf32>
    %367 = vector.broadcast %326 : vector<4x1xf32> to vector<4x16xf32>
    %368 = arith.mulf %367, %359 : vector<4x16xf32>
    %369 = vector.extract_strided_slice %322 {offsets = [0, 48], sizes = [4, 48], strides = [1, 1]} : vector<4x96xf32> to vector<4x48xf32>
    %370 = vector.extract_strided_slice %315 {offsets = [0, 48], sizes = [4, 48], strides = [1, 1]} : vector<4x96xf32> to vector<4x48xf32>
    %371 = vector.extract_strided_slice %312 {offsets = [0, 16], sizes = [4, 16], strides = [1, 1]} : vector<4x32xf32> to vector<4x16xf32>
    %372 = vector.extract_strided_slice %369 {offsets = [0, 0], sizes = [4, 16], strides = [1, 1]} : vector<4x48xf32> to vector<4x16xf32>
    %373 = vector.extract_strided_slice %370 {offsets = [0, 0], sizes = [4, 16], strides = [1, 1]} : vector<4x48xf32> to vector<4x16xf32>
    %374 = arith.addf %372, %373 : vector<4x16xf32>
    %375 = arith.negf %374 : vector<4x16xf32>
    %376 = math.exp %375 : vector<4x16xf32>
    %cst_68 = arith.constant 1.000000e+00 : f32
    %377 = vector.broadcast %cst_68 : f32 to vector<4x16xf32>
    %378 = arith.addf %377, %376 : vector<4x16xf32>
    %379 = arith.divf %377, %378 : vector<4x16xf32>
    %380 = vector.extract_strided_slice %369 {offsets = [0, 16], sizes = [4, 16], strides = [1, 1]} : vector<4x48xf32> to vector<4x16xf32>
    %381 = vector.extract_strided_slice %370 {offsets = [0, 16], sizes = [4, 16], strides = [1, 1]} : vector<4x48xf32> to vector<4x16xf32>
    %382 = arith.addf %380, %381 : vector<4x16xf32>
    %383 = arith.negf %382 : vector<4x16xf32>
    %384 = math.exp %383 : vector<4x16xf32>
    %cst_69 = arith.constant 1.000000e+00 : f32
    %385 = vector.broadcast %cst_69 : f32 to vector<4x16xf32>
    %386 = arith.addf %385, %384 : vector<4x16xf32>
    %387 = arith.divf %385, %386 : vector<4x16xf32>
    %388 = vector.extract_strided_slice %369 {offsets = [0, 32], sizes = [4, 16], strides = [1, 1]} : vector<4x48xf32> to vector<4x16xf32>
    %389 = vector.extract_strided_slice %370 {offsets = [0, 32], sizes = [4, 16], strides = [1, 1]} : vector<4x48xf32> to vector<4x16xf32>
    %390 = arith.mulf %379, %389 : vector<4x16xf32>
    %391 = arith.addf %388, %390 : vector<4x16xf32>
    %392 = math.tanh %391 : vector<4x16xf32>
    %cst_70 = arith.constant 1.000000e+00 : f32
    %393 = vector.broadcast %cst_70 : f32 to vector<4x16xf32>
    %394 = arith.subf %393, %387 : vector<4x16xf32>
    %395 = arith.mulf %394, %392 : vector<4x16xf32>
    %396 = arith.mulf %387, %371 : vector<4x16xf32>
    %397 = arith.addf %395, %396 : vector<4x16xf32>
    %398 = vector.broadcast %330 : vector<4x1xf32> to vector<4x16xf32>
    %399 = arith.mulf %398, %397 : vector<4x16xf32>
    %cst_71 = arith.constant 1.000000e+00 : f32
    %400 = vector.broadcast %cst_71 : f32 to vector<4x1xf32>
    %401 = arith.subf %400, %330 : vector<4x1xf32>
    %402 = vector.broadcast %401 : vector<4x1xf32> to vector<4x16xf32>
    %403 = arith.mulf %402, %371 : vector<4x16xf32>
    %404 = arith.addf %399, %403 : vector<4x16xf32>
    %405 = vector.broadcast %330 : vector<4x1xf32> to vector<4x16xf32>
    %406 = arith.mulf %405, %397 : vector<4x16xf32>
    %407 = arith.index_cast %c3_i32 : i32 to index
    %c0_72 = arith.constant 0 : index
    %c0_73 = arith.constant 0 : index
    %408 = vector.load %arg4[%407, %c0_72, %c0_73] : memref<10x4x16xf32, #tpu.memory_space<vmem>>, vector<1x4x16xf32>
    %409 = vector.shape_cast %408 : vector<1x4x16xf32> to vector<4x16xf32>
    %410 = vector.shape_cast %368 : vector<4x16xf32> to vector<1x4x16xf32>
    tpu.vector_store %arg4[%407, %c0_72, %c0_73], %410 {strides = array<i32>} : memref<10x4x16xf32, #tpu.memory_space<vmem>>, vector<1x4x16xf32>,
    %411 = arith.index_cast %316 : i32 to index
    %c0_74 = arith.constant 0 : index
    %c0_75 = arith.constant 0 : index
    %412 = vector.load %arg5[%411, %c0_74, %c0_75] : memref<10x4x16xf32, #tpu.memory_space<vmem>>, vector<1x4x16xf32>
    %413 = vector.shape_cast %412 : vector<1x4x16xf32> to vector<4x16xf32>
    %414 = vector.shape_cast %406 : vector<4x16xf32> to vector<1x4x16xf32>
    tpu.vector_store %arg5[%411, %c0_74, %c0_75], %414 {strides = array<i32>} : memref<10x4x16xf32, #tpu.memory_space<vmem>>, vector<1x4x16xf32>,
    %415 = tpu.concatenate %366, %404 in 1 : vector<4x16xf32>, vector<4x16xf32> -> vector<4x32xf32>
    %c4_i32 = arith.constant 4 : i32
    %cst_76 = arith.constant dense<0.000000e+00> : vector<4x96xf32>
    %416 = tpu.matmul %415, %1, %cst_76 {dimension_numbers = #tpu.dot_dimension_numbers<[1], [0], [0], [1], [0, 0, 1, 1], [], []>} : vector<4x32xf32>, vector<32x96xf32>, vector<4x96xf32> -> vector<4x96xf32>
    %417 = vector.broadcast %2 : vector<1x96xf32> to vector<4x96xf32>
    %418 = arith.addf %416, %417 : vector<4x96xf32>
    %c9_i32_77 = arith.constant 9 : i32
    %419 = arith.subi %c9_i32_77, %c4_i32 : i32
    %420 = arith.index_cast %c4_i32 : i32 to index
    %c0_78 = arith.constant 0 : index
    %c0_79 = arith.constant 0 : index
    %421 = vector.load %arg1[%420, %c0_78, %c0_79] : memref<10x4x96xf32, #tpu.memory_space<vmem>>, vector<1x4x96xf32>
    %422 = vector.shape_cast %421 : vector<1x4x96xf32> to vector<4x96xf32>
    %423 = arith.index_cast %419 : i32 to index
    %c0_80 = arith.constant 0 : index
    %c0_81 = arith.constant 0 : index
    %424 = vector.load %arg1[%423, %c0_80, %c0_81] : memref<10x4x96xf32, #tpu.memory_space<vmem>>, vector<1x4x96xf32>
    %425 = vector.shape_cast %424 : vector<1x4x96xf32> to vector<4x96xf32>
    %426 = vector.broadcast %c4_i32 : i32 to vector<4x1xi32>
    %427 = arith.cmpi slt, %426, %0 : vector<4x1xi32>
    %428 = arith.extui %427 : vector<4x1xi1> to vector<4x1xi32>
    %429 = arith.sitofp %428 : vector<4x1xi32> to vector<4x1xf32>
    %430 = vector.broadcast %419 : i32 to vector<4x1xi32>
    %431 = arith.cmpi slt, %430, %0 : vector<4x1xi32>
    %432 = arith.extui %431 : vector<4x1xi1> to vector<4x1xi32>
    %433 = arith.sitofp %432 : vector<4x1xi32> to vector<4x1xf32>
    %434 = vector.extract_strided_slice %422 {offsets = [0, 0], sizes = [4, 48], strides = [1, 1]} : vector<4x96xf32> to vector<4x48xf32>
    %435 = vector.extract_strided_slice %418 {offsets = [0, 0], sizes = [4, 48], strides = [1, 1]} : vector<4x96xf32> to vector<4x48xf32>
    %436 = vector.extract_strided_slice %415 {offsets = [0, 0], sizes = [4, 16], strides = [1, 1]} : vector<4x32xf32> to vector<4x16xf32>
    %437 = vector.extract_strided_slice %434 {offsets = [0, 0], sizes = [4, 16], strides = [1, 1]} : vector<4x48xf32> to vector<4x16xf32>
    %438 = vector.extract_strided_slice %435 {offsets = [0, 0], sizes = [4, 16], strides = [1, 1]} : vector<4x48xf32> to vector<4x16xf32>
    %439 = arith.addf %437, %438 : vector<4x16xf32>
    %440 = arith.negf %439 : vector<4x16xf32>
    %441 = math.exp %440 : vector<4x16xf32>
    %cst_82 = arith.constant 1.000000e+00 : f32
    %442 = vector.broadcast %cst_82 : f32 to vector<4x16xf32>
    %443 = arith.addf %442, %441 : vector<4x16xf32>
    %444 = arith.divf %442, %443 : vector<4x16xf32>
    %445 = vector.extract_strided_slice %434 {offsets = [0, 16], sizes = [4, 16], strides = [1, 1]} : vector<4x48xf32> to vector<4x16xf32>
    %446 = vector.extract_strided_slice %435 {offsets = [0, 16], sizes = [4, 16], strides = [1, 1]} : vector<4x48xf32> to vector<4x16xf32>
    %447 = arith.addf %445, %446 : vector<4x16xf32>
    %448 = arith.negf %447 : vector<4x16xf32>
    %449 = math.exp %448 : vector<4x16xf32>
    %cst_83 = arith.constant 1.000000e+00 : f32
    %450 = vector.broadcast %cst_83 : f32 to vector<4x16xf32>
    %451 = arith.addf %450, %449 : vector<4x16xf32>
    %452 = arith.divf %450, %451 : vector<4x16xf32>
    %453 = vector.extract_strided_slice %434 {offsets = [0, 32], sizes = [4, 16], strides = [1, 1]} : vector<4x48xf32> to vector<4x16xf32>
    %454 = vector.extract_strided_slice %435 {offsets = [0, 32], sizes = [4, 16], strides = [1, 1]} : vector<4x48xf32> to vector<4x16xf32>
    %455 = arith.mulf %444, %454 : vector<4x16xf32>
    %456 = arith.addf %453, %455 : vector<4x16xf32>
    %457 = math.tanh %456 : vector<4x16xf32>
    %cst_84 = arith.constant 1.000000e+00 : f32
    %458 = vector.broadcast %cst_84 : f32 to vector<4x16xf32>
    %459 = arith.subf %458, %452 : vector<4x16xf32>
    %460 = arith.mulf %459, %457 : vector<4x16xf32>
    %461 = arith.mulf %452, %436 : vector<4x16xf32>
    %462 = arith.addf %460, %461 : vector<4x16xf32>
    %463 = vector.broadcast %429 : vector<4x1xf32> to vector<4x16xf32>
    %464 = arith.mulf %463, %462 : vector<4x16xf32>
    %cst_85 = arith.constant 1.000000e+00 : f32
    %465 = vector.broadcast %cst_85 : f32 to vector<4x1xf32>
    %466 = arith.subf %465, %429 : vector<4x1xf32>
    %467 = vector.broadcast %466 : vector<4x1xf32> to vector<4x16xf32>
    %468 = arith.mulf %467, %436 : vector<4x16xf32>
    %469 = arith.addf %464, %468 : vector<4x16xf32>
    %470 = vector.broadcast %429 : vector<4x1xf32> to vector<4x16xf32>
    %471 = arith.mulf %470, %462 : vector<4x16xf32>
    %472 = vector.extract_strided_slice %425 {offsets = [0, 48], sizes = [4, 48], strides = [1, 1]} : vector<4x96xf32> to vector<4x48xf32>
    %473 = vector.extract_strided_slice %418 {offsets = [0, 48], sizes = [4, 48], strides = [1, 1]} : vector<4x96xf32> to vector<4x48xf32>
    %474 = vector.extract_strided_slice %415 {offsets = [0, 16], sizes = [4, 16], strides = [1, 1]} : vector<4x32xf32> to vector<4x16xf32>
    %475 = vector.extract_strided_slice %472 {offsets = [0, 0], sizes = [4, 16], strides = [1, 1]} : vector<4x48xf32> to vector<4x16xf32>
    %476 = vector.extract_strided_slice %473 {offsets = [0, 0], sizes = [4, 16], strides = [1, 1]} : vector<4x48xf32> to vector<4x16xf32>
    %477 = arith.addf %475, %476 : vector<4x16xf32>
    %478 = arith.negf %477 : vector<4x16xf32>
    %479 = math.exp %478 : vector<4x16xf32>
    %cst_86 = arith.constant 1.000000e+00 : f32
    %480 = vector.broadcast %cst_86 : f32 to vector<4x16xf32>
    %481 = arith.addf %480, %479 : vector<4x16xf32>
    %482 = arith.divf %480, %481 : vector<4x16xf32>
    %483 = vector.extract_strided_slice %472 {offsets = [0, 16], sizes = [4, 16], strides = [1, 1]} : vector<4x48xf32> to vector<4x16xf32>
    %484 = vector.extract_strided_slice %473 {offsets = [0, 16], sizes = [4, 16], strides = [1, 1]} : vector<4x48xf32> to vector<4x16xf32>
    %485 = arith.addf %483, %484 : vector<4x16xf32>
    %486 = arith.negf %485 : vector<4x16xf32>
    %487 = math.exp %486 : vector<4x16xf32>
    %cst_87 = arith.constant 1.000000e+00 : f32
    %488 = vector.broadcast %cst_87 : f32 to vector<4x16xf32>
    %489 = arith.addf %488, %487 : vector<4x16xf32>
    %490 = arith.divf %488, %489 : vector<4x16xf32>
    %491 = vector.extract_strided_slice %472 {offsets = [0, 32], sizes = [4, 16], strides = [1, 1]} : vector<4x48xf32> to vector<4x16xf32>
    %492 = vector.extract_strided_slice %473 {offsets = [0, 32], sizes = [4, 16], strides = [1, 1]} : vector<4x48xf32> to vector<4x16xf32>
    %493 = arith.mulf %482, %492 : vector<4x16xf32>
    %494 = arith.addf %491, %493 : vector<4x16xf32>
    %495 = math.tanh %494 : vector<4x16xf32>
    %cst_88 = arith.constant 1.000000e+00 : f32
    %496 = vector.broadcast %cst_88 : f32 to vector<4x16xf32>
    %497 = arith.subf %496, %490 : vector<4x16xf32>
    %498 = arith.mulf %497, %495 : vector<4x16xf32>
    %499 = arith.mulf %490, %474 : vector<4x16xf32>
    %500 = arith.addf %498, %499 : vector<4x16xf32>
    %501 = vector.broadcast %433 : vector<4x1xf32> to vector<4x16xf32>
    %502 = arith.mulf %501, %500 : vector<4x16xf32>
    %cst_89 = arith.constant 1.000000e+00 : f32
    %503 = vector.broadcast %cst_89 : f32 to vector<4x1xf32>
    %504 = arith.subf %503, %433 : vector<4x1xf32>
    %505 = vector.broadcast %504 : vector<4x1xf32> to vector<4x16xf32>
    %506 = arith.mulf %505, %474 : vector<4x16xf32>
    %507 = arith.addf %502, %506 : vector<4x16xf32>
    %508 = vector.broadcast %433 : vector<4x1xf32> to vector<4x16xf32>
    %509 = arith.mulf %508, %500 : vector<4x16xf32>
    %510 = arith.index_cast %c4_i32 : i32 to index
    %c0_90 = arith.constant 0 : index
    %c0_91 = arith.constant 0 : index
    %511 = vector.load %arg4[%510, %c0_90, %c0_91] : memref<10x4x16xf32, #tpu.memory_space<vmem>>, vector<1x4x16xf32>
    %512 = vector.shape_cast %511 : vector<1x4x16xf32> to vector<4x16xf32>
    %513 = vector.shape_cast %471 : vector<4x16xf32> to vector<1x4x16xf32>
    tpu.vector_store %arg4[%510, %c0_90, %c0_91], %513 {strides = array<i32>} : memref<10x4x16xf32, #tpu.memory_space<vmem>>, vector<1x4x16xf32>,
    %514 = arith.index_cast %419 : i32 to index
    %c0_92 = arith.constant 0 : index
    %c0_93 = arith.constant 0 : index
    %515 = vector.load %arg5[%514, %c0_92, %c0_93] : memref<10x4x16xf32, #tpu.memory_space<vmem>>, vector<1x4x16xf32>
    %516 = vector.shape_cast %515 : vector<1x4x16xf32> to vector<4x16xf32>
    %517 = vector.shape_cast %509 : vector<4x16xf32> to vector<1x4x16xf32>
    tpu.vector_store %arg5[%514, %c0_92, %c0_93], %517 {strides = array<i32>} : memref<10x4x16xf32, #tpu.memory_space<vmem>>, vector<1x4x16xf32>,
    %518 = tpu.concatenate %469, %507 in 1 : vector<4x16xf32>, vector<4x16xf32> -> vector<4x32xf32>
    %c5_i32 = arith.constant 5 : i32
    %cst_94 = arith.constant dense<0.000000e+00> : vector<4x96xf32>
    %519 = tpu.matmul %518, %1, %cst_94 {dimension_numbers = #tpu.dot_dimension_numbers<[1], [0], [0], [1], [0, 0, 1, 1], [], []>} : vector<4x32xf32>, vector<32x96xf32>, vector<4x96xf32> -> vector<4x96xf32>
    %520 = vector.broadcast %2 : vector<1x96xf32> to vector<4x96xf32>
    %521 = arith.addf %519, %520 : vector<4x96xf32>
    %c9_i32_95 = arith.constant 9 : i32
    %522 = arith.subi %c9_i32_95, %c5_i32 : i32
    %523 = arith.index_cast %c5_i32 : i32 to index
    %c0_96 = arith.constant 0 : index
    %c0_97 = arith.constant 0 : index
    %524 = vector.load %arg1[%523, %c0_96, %c0_97] : memref<10x4x96xf32, #tpu.memory_space<vmem>>, vector<1x4x96xf32>
    %525 = vector.shape_cast %524 : vector<1x4x96xf32> to vector<4x96xf32>
    %526 = arith.index_cast %522 : i32 to index
    %c0_98 = arith.constant 0 : index
    %c0_99 = arith.constant 0 : index
    %527 = vector.load %arg1[%526, %c0_98, %c0_99] : memref<10x4x96xf32, #tpu.memory_space<vmem>>, vector<1x4x96xf32>
    %528 = vector.shape_cast %527 : vector<1x4x96xf32> to vector<4x96xf32>
    %529 = vector.broadcast %c5_i32 : i32 to vector<4x1xi32>
    %530 = arith.cmpi slt, %529, %0 : vector<4x1xi32>
    %531 = arith.extui %530 : vector<4x1xi1> to vector<4x1xi32>
    %532 = arith.sitofp %531 : vector<4x1xi32> to vector<4x1xf32>
    %533 = vector.broadcast %522 : i32 to vector<4x1xi32>
    %534 = arith.cmpi slt, %533, %0 : vector<4x1xi32>
    %535 = arith.extui %534 : vector<4x1xi1> to vector<4x1xi32>
    %536 = arith.sitofp %535 : vector<4x1xi32> to vector<4x1xf32>
    %537 = vector.extract_strided_slice %525 {offsets = [0, 0], sizes = [4, 48], strides = [1, 1]} : vector<4x96xf32> to vector<4x48xf32>
    %538 = vector.extract_strided_slice %521 {offsets = [0, 0], sizes = [4, 48], strides = [1, 1]} : vector<4x96xf32> to vector<4x48xf32>
    %539 = vector.extract_strided_slice %518 {offsets = [0, 0], sizes = [4, 16], strides = [1, 1]} : vector<4x32xf32> to vector<4x16xf32>
    %540 = vector.extract_strided_slice %537 {offsets = [0, 0], sizes = [4, 16], strides = [1, 1]} : vector<4x48xf32> to vector<4x16xf32>
    %541 = vector.extract_strided_slice %538 {offsets = [0, 0], sizes = [4, 16], strides = [1, 1]} : vector<4x48xf32> to vector<4x16xf32>
    %542 = arith.addf %540, %541 : vector<4x16xf32>
    %543 = arith.negf %542 : vector<4x16xf32>
    %544 = math.exp %543 : vector<4x16xf32>
    %cst_100 = arith.constant 1.000000e+00 : f32
    %545 = vector.broadcast %cst_100 : f32 to vector<4x16xf32>
    %546 = arith.addf %545, %544 : vector<4x16xf32>
    %547 = arith.divf %545, %546 : vector<4x16xf32>
    %548 = vector.extract_strided_slice %537 {offsets = [0, 16], sizes = [4, 16], strides = [1, 1]} : vector<4x48xf32> to vector<4x16xf32>
    %549 = vector.extract_strided_slice %538 {offsets = [0, 16], sizes = [4, 16], strides = [1, 1]} : vector<4x48xf32> to vector<4x16xf32>
    %550 = arith.addf %548, %549 : vector<4x16xf32>
    %551 = arith.negf %550 : vector<4x16xf32>
    %552 = math.exp %551 : vector<4x16xf32>
    %cst_101 = arith.constant 1.000000e+00 : f32
    %553 = vector.broadcast %cst_101 : f32 to vector<4x16xf32>
    %554 = arith.addf %553, %552 : vector<4x16xf32>
    %555 = arith.divf %553, %554 : vector<4x16xf32>
    %556 = vector.extract_strided_slice %537 {offsets = [0, 32], sizes = [4, 16], strides = [1, 1]} : vector<4x48xf32> to vector<4x16xf32>
    %557 = vector.extract_strided_slice %538 {offsets = [0, 32], sizes = [4, 16], strides = [1, 1]} : vector<4x48xf32> to vector<4x16xf32>
    %558 = arith.mulf %547, %557 : vector<4x16xf32>
    %559 = arith.addf %556, %558 : vector<4x16xf32>
    %560 = math.tanh %559 : vector<4x16xf32>
    %cst_102 = arith.constant 1.000000e+00 : f32
    %561 = vector.broadcast %cst_102 : f32 to vector<4x16xf32>
    %562 = arith.subf %561, %555 : vector<4x16xf32>
    %563 = arith.mulf %562, %560 : vector<4x16xf32>
    %564 = arith.mulf %555, %539 : vector<4x16xf32>
    %565 = arith.addf %563, %564 : vector<4x16xf32>
    %566 = vector.broadcast %532 : vector<4x1xf32> to vector<4x16xf32>
    %567 = arith.mulf %566, %565 : vector<4x16xf32>
    %cst_103 = arith.constant 1.000000e+00 : f32
    %568 = vector.broadcast %cst_103 : f32 to vector<4x1xf32>
    %569 = arith.subf %568, %532 : vector<4x1xf32>
    %570 = vector.broadcast %569 : vector<4x1xf32> to vector<4x16xf32>
    %571 = arith.mulf %570, %539 : vector<4x16xf32>
    %572 = arith.addf %567, %571 : vector<4x16xf32>
    %573 = vector.broadcast %532 : vector<4x1xf32> to vector<4x16xf32>
    %574 = arith.mulf %573, %565 : vector<4x16xf32>
    %575 = vector.extract_strided_slice %528 {offsets = [0, 48], sizes = [4, 48], strides = [1, 1]} : vector<4x96xf32> to vector<4x48xf32>
    %576 = vector.extract_strided_slice %521 {offsets = [0, 48], sizes = [4, 48], strides = [1, 1]} : vector<4x96xf32> to vector<4x48xf32>
    %577 = vector.extract_strided_slice %518 {offsets = [0, 16], sizes = [4, 16], strides = [1, 1]} : vector<4x32xf32> to vector<4x16xf32>
    %578 = vector.extract_strided_slice %575 {offsets = [0, 0], sizes = [4, 16], strides = [1, 1]} : vector<4x48xf32> to vector<4x16xf32>
    %579 = vector.extract_strided_slice %576 {offsets = [0, 0], sizes = [4, 16], strides = [1, 1]} : vector<4x48xf32> to vector<4x16xf32>
    %580 = arith.addf %578, %579 : vector<4x16xf32>
    %581 = arith.negf %580 : vector<4x16xf32>
    %582 = math.exp %581 : vector<4x16xf32>
    %cst_104 = arith.constant 1.000000e+00 : f32
    %583 = vector.broadcast %cst_104 : f32 to vector<4x16xf32>
    %584 = arith.addf %583, %582 : vector<4x16xf32>
    %585 = arith.divf %583, %584 : vector<4x16xf32>
    %586 = vector.extract_strided_slice %575 {offsets = [0, 16], sizes = [4, 16], strides = [1, 1]} : vector<4x48xf32> to vector<4x16xf32>
    %587 = vector.extract_strided_slice %576 {offsets = [0, 16], sizes = [4, 16], strides = [1, 1]} : vector<4x48xf32> to vector<4x16xf32>
    %588 = arith.addf %586, %587 : vector<4x16xf32>
    %589 = arith.negf %588 : vector<4x16xf32>
    %590 = math.exp %589 : vector<4x16xf32>
    %cst_105 = arith.constant 1.000000e+00 : f32
    %591 = vector.broadcast %cst_105 : f32 to vector<4x16xf32>
    %592 = arith.addf %591, %590 : vector<4x16xf32>
    %593 = arith.divf %591, %592 : vector<4x16xf32>
    %594 = vector.extract_strided_slice %575 {offsets = [0, 32], sizes = [4, 16], strides = [1, 1]} : vector<4x48xf32> to vector<4x16xf32>
    %595 = vector.extract_strided_slice %576 {offsets = [0, 32], sizes = [4, 16], strides = [1, 1]} : vector<4x48xf32> to vector<4x16xf32>
    %596 = arith.mulf %585, %595 : vector<4x16xf32>
    %597 = arith.addf %594, %596 : vector<4x16xf32>
    %598 = math.tanh %597 : vector<4x16xf32>
    %cst_106 = arith.constant 1.000000e+00 : f32
    %599 = vector.broadcast %cst_106 : f32 to vector<4x16xf32>
    %600 = arith.subf %599, %593 : vector<4x16xf32>
    %601 = arith.mulf %600, %598 : vector<4x16xf32>
    %602 = arith.mulf %593, %577 : vector<4x16xf32>
    %603 = arith.addf %601, %602 : vector<4x16xf32>
    %604 = vector.broadcast %536 : vector<4x1xf32> to vector<4x16xf32>
    %605 = arith.mulf %604, %603 : vector<4x16xf32>
    %cst_107 = arith.constant 1.000000e+00 : f32
    %606 = vector.broadcast %cst_107 : f32 to vector<4x1xf32>
    %607 = arith.subf %606, %536 : vector<4x1xf32>
    %608 = vector.broadcast %607 : vector<4x1xf32> to vector<4x16xf32>
    %609 = arith.mulf %608, %577 : vector<4x16xf32>
    %610 = arith.addf %605, %609 : vector<4x16xf32>
    %611 = vector.broadcast %536 : vector<4x1xf32> to vector<4x16xf32>
    %612 = arith.mulf %611, %603 : vector<4x16xf32>
    %613 = arith.index_cast %c5_i32 : i32 to index
    %c0_108 = arith.constant 0 : index
    %c0_109 = arith.constant 0 : index
    %614 = vector.load %arg4[%613, %c0_108, %c0_109] : memref<10x4x16xf32, #tpu.memory_space<vmem>>, vector<1x4x16xf32>
    %615 = vector.shape_cast %614 : vector<1x4x16xf32> to vector<4x16xf32>
    %616 = vector.shape_cast %574 : vector<4x16xf32> to vector<1x4x16xf32>
    tpu.vector_store %arg4[%613, %c0_108, %c0_109], %616 {strides = array<i32>} : memref<10x4x16xf32, #tpu.memory_space<vmem>>, vector<1x4x16xf32>,
    %617 = arith.index_cast %522 : i32 to index
    %c0_110 = arith.constant 0 : index
    %c0_111 = arith.constant 0 : index
    %618 = vector.load %arg5[%617, %c0_110, %c0_111] : memref<10x4x16xf32, #tpu.memory_space<vmem>>, vector<1x4x16xf32>
    %619 = vector.shape_cast %618 : vector<1x4x16xf32> to vector<4x16xf32>
    %620 = vector.shape_cast %612 : vector<4x16xf32> to vector<1x4x16xf32>
    tpu.vector_store %arg5[%617, %c0_110, %c0_111], %620 {strides = array<i32>} : memref<10x4x16xf32, #tpu.memory_space<vmem>>, vector<1x4x16xf32>,
    %621 = tpu.concatenate %572, %610 in 1 : vector<4x16xf32>, vector<4x16xf32> -> vector<4x32xf32>
    %c6_i32 = arith.constant 6 : i32
    %cst_112 = arith.constant dense<0.000000e+00> : vector<4x96xf32>
    %622 = tpu.matmul %621, %1, %cst_112 {dimension_numbers = #tpu.dot_dimension_numbers<[1], [0], [0], [1], [0, 0, 1, 1], [], []>} : vector<4x32xf32>, vector<32x96xf32>, vector<4x96xf32> -> vector<4x96xf32>
    %623 = vector.broadcast %2 : vector<1x96xf32> to vector<4x96xf32>
    %624 = arith.addf %622, %623 : vector<4x96xf32>
    %c9_i32_113 = arith.constant 9 : i32
    %625 = arith.subi %c9_i32_113, %c6_i32 : i32
    %626 = arith.index_cast %c6_i32 : i32 to index
    %c0_114 = arith.constant 0 : index
    %c0_115 = arith.constant 0 : index
    %627 = vector.load %arg1[%626, %c0_114, %c0_115] : memref<10x4x96xf32, #tpu.memory_space<vmem>>, vector<1x4x96xf32>
    %628 = vector.shape_cast %627 : vector<1x4x96xf32> to vector<4x96xf32>
    %629 = arith.index_cast %625 : i32 to index
    %c0_116 = arith.constant 0 : index
    %c0_117 = arith.constant 0 : index
    %630 = vector.load %arg1[%629, %c0_116, %c0_117] : memref<10x4x96xf32, #tpu.memory_space<vmem>>, vector<1x4x96xf32>
    %631 = vector.shape_cast %630 : vector<1x4x96xf32> to vector<4x96xf32>
    %632 = vector.broadcast %c6_i32 : i32 to vector<4x1xi32>
    %633 = arith.cmpi slt, %632, %0 : vector<4x1xi32>
    %634 = arith.extui %633 : vector<4x1xi1> to vector<4x1xi32>
    %635 = arith.sitofp %634 : vector<4x1xi32> to vector<4x1xf32>
    %636 = vector.broadcast %625 : i32 to vector<4x1xi32>
    %637 = arith.cmpi slt, %636, %0 : vector<4x1xi32>
    %638 = arith.extui %637 : vector<4x1xi1> to vector<4x1xi32>
    %639 = arith.sitofp %638 : vector<4x1xi32> to vector<4x1xf32>
    %640 = vector.extract_strided_slice %628 {offsets = [0, 0], sizes = [4, 48], strides = [1, 1]} : vector<4x96xf32> to vector<4x48xf32>
    %641 = vector.extract_strided_slice %624 {offsets = [0, 0], sizes = [4, 48], strides = [1, 1]} : vector<4x96xf32> to vector<4x48xf32>
    %642 = vector.extract_strided_slice %621 {offsets = [0, 0], sizes = [4, 16], strides = [1, 1]} : vector<4x32xf32> to vector<4x16xf32>
    %643 = vector.extract_strided_slice %640 {offsets = [0, 0], sizes = [4, 16], strides = [1, 1]} : vector<4x48xf32> to vector<4x16xf32>
    %644 = vector.extract_strided_slice %641 {offsets = [0, 0], sizes = [4, 16], strides = [1, 1]} : vector<4x48xf32> to vector<4x16xf32>
    %645 = arith.addf %643, %644 : vector<4x16xf32>
    %646 = arith.negf %645 : vector<4x16xf32>
    %647 = math.exp %646 : vector<4x16xf32>
    %cst_118 = arith.constant 1.000000e+00 : f32
    %648 = vector.broadcast %cst_118 : f32 to vector<4x16xf32>
    %649 = arith.addf %648, %647 : vector<4x16xf32>
    %650 = arith.divf %648, %649 : vector<4x16xf32>
    %651 = vector.extract_strided_slice %640 {offsets = [0, 16], sizes = [4, 16], strides = [1, 1]} : vector<4x48xf32> to vector<4x16xf32>
    %652 = vector.extract_strided_slice %641 {offsets = [0, 16], sizes = [4, 16], strides = [1, 1]} : vector<4x48xf32> to vector<4x16xf32>
    %653 = arith.addf %651, %652 : vector<4x16xf32>
    %654 = arith.negf %653 : vector<4x16xf32>
    %655 = math.exp %654 : vector<4x16xf32>
    %cst_119 = arith.constant 1.000000e+00 : f32
    %656 = vector.broadcast %cst_119 : f32 to vector<4x16xf32>
    %657 = arith.addf %656, %655 : vector<4x16xf32>
    %658 = arith.divf %656, %657 : vector<4x16xf32>
    %659 = vector.extract_strided_slice %640 {offsets = [0, 32], sizes = [4, 16], strides = [1, 1]} : vector<4x48xf32> to vector<4x16xf32>
    %660 = vector.extract_strided_slice %641 {offsets = [0, 32], sizes = [4, 16], strides = [1, 1]} : vector<4x48xf32> to vector<4x16xf32>
    %661 = arith.mulf %650, %660 : vector<4x16xf32>
    %662 = arith.addf %659, %661 : vector<4x16xf32>
    %663 = math.tanh %662 : vector<4x16xf32>
    %cst_120 = arith.constant 1.000000e+00 : f32
    %664 = vector.broadcast %cst_120 : f32 to vector<4x16xf32>
    %665 = arith.subf %664, %658 : vector<4x16xf32>
    %666 = arith.mulf %665, %663 : vector<4x16xf32>
    %667 = arith.mulf %658, %642 : vector<4x16xf32>
    %668 = arith.addf %666, %667 : vector<4x16xf32>
    %669 = vector.broadcast %635 : vector<4x1xf32> to vector<4x16xf32>
    %670 = arith.mulf %669, %668 : vector<4x16xf32>
    %cst_121 = arith.constant 1.000000e+00 : f32
    %671 = vector.broadcast %cst_121 : f32 to vector<4x1xf32>
    %672 = arith.subf %671, %635 : vector<4x1xf32>
    %673 = vector.broadcast %672 : vector<4x1xf32> to vector<4x16xf32>
    %674 = arith.mulf %673, %642 : vector<4x16xf32>
    %675 = arith.addf %670, %674 : vector<4x16xf32>
    %676 = vector.broadcast %635 : vector<4x1xf32> to vector<4x16xf32>
    %677 = arith.mulf %676, %668 : vector<4x16xf32>
    %678 = vector.extract_strided_slice %631 {offsets = [0, 48], sizes = [4, 48], strides = [1, 1]} : vector<4x96xf32> to vector<4x48xf32>
    %679 = vector.extract_strided_slice %624 {offsets = [0, 48], sizes = [4, 48], strides = [1, 1]} : vector<4x96xf32> to vector<4x48xf32>
    %680 = vector.extract_strided_slice %621 {offsets = [0, 16], sizes = [4, 16], strides = [1, 1]} : vector<4x32xf32> to vector<4x16xf32>
    %681 = vector.extract_strided_slice %678 {offsets = [0, 0], sizes = [4, 16], strides = [1, 1]} : vector<4x48xf32> to vector<4x16xf32>
    %682 = vector.extract_strided_slice %679 {offsets = [0, 0], sizes = [4, 16], strides = [1, 1]} : vector<4x48xf32> to vector<4x16xf32>
    %683 = arith.addf %681, %682 : vector<4x16xf32>
    %684 = arith.negf %683 : vector<4x16xf32>
    %685 = math.exp %684 : vector<4x16xf32>
    %cst_122 = arith.constant 1.000000e+00 : f32
    %686 = vector.broadcast %cst_122 : f32 to vector<4x16xf32>
    %687 = arith.addf %686, %685 : vector<4x16xf32>
    %688 = arith.divf %686, %687 : vector<4x16xf32>
    %689 = vector.extract_strided_slice %678 {offsets = [0, 16], sizes = [4, 16], strides = [1, 1]} : vector<4x48xf32> to vector<4x16xf32>
    %690 = vector.extract_strided_slice %679 {offsets = [0, 16], sizes = [4, 16], strides = [1, 1]} : vector<4x48xf32> to vector<4x16xf32>
    %691 = arith.addf %689, %690 : vector<4x16xf32>
    %692 = arith.negf %691 : vector<4x16xf32>
    %693 = math.exp %692 : vector<4x16xf32>
    %cst_123 = arith.constant 1.000000e+00 : f32
    %694 = vector.broadcast %cst_123 : f32 to vector<4x16xf32>
    %695 = arith.addf %694, %693 : vector<4x16xf32>
    %696 = arith.divf %694, %695 : vector<4x16xf32>
    %697 = vector.extract_strided_slice %678 {offsets = [0, 32], sizes = [4, 16], strides = [1, 1]} : vector<4x48xf32> to vector<4x16xf32>
    %698 = vector.extract_strided_slice %679 {offsets = [0, 32], sizes = [4, 16], strides = [1, 1]} : vector<4x48xf32> to vector<4x16xf32>
    %699 = arith.mulf %688, %698 : vector<4x16xf32>
    %700 = arith.addf %697, %699 : vector<4x16xf32>
    %701 = math.tanh %700 : vector<4x16xf32>
    %cst_124 = arith.constant 1.000000e+00 : f32
    %702 = vector.broadcast %cst_124 : f32 to vector<4x16xf32>
    %703 = arith.subf %702, %696 : vector<4x16xf32>
    %704 = arith.mulf %703, %701 : vector<4x16xf32>
    %705 = arith.mulf %696, %680 : vector<4x16xf32>
    %706 = arith.addf %704, %705 : vector<4x16xf32>
    %707 = vector.broadcast %639 : vector<4x1xf32> to vector<4x16xf32>
    %708 = arith.mulf %707, %706 : vector<4x16xf32>
    %cst_125 = arith.constant 1.000000e+00 : f32
    %709 = vector.broadcast %cst_125 : f32 to vector<4x1xf32>
    %710 = arith.subf %709, %639 : vector<4x1xf32>
    %711 = vector.broadcast %710 : vector<4x1xf32> to vector<4x16xf32>
    %712 = arith.mulf %711, %680 : vector<4x16xf32>
    %713 = arith.addf %708, %712 : vector<4x16xf32>
    %714 = vector.broadcast %639 : vector<4x1xf32> to vector<4x16xf32>
    %715 = arith.mulf %714, %706 : vector<4x16xf32>
    %716 = arith.index_cast %c6_i32 : i32 to index
    %c0_126 = arith.constant 0 : index
    %c0_127 = arith.constant 0 : index
    %717 = vector.load %arg4[%716, %c0_126, %c0_127] : memref<10x4x16xf32, #tpu.memory_space<vmem>>, vector<1x4x16xf32>
    %718 = vector.shape_cast %717 : vector<1x4x16xf32> to vector<4x16xf32>
    %719 = vector.shape_cast %677 : vector<4x16xf32> to vector<1x4x16xf32>
    tpu.vector_store %arg4[%716, %c0_126, %c0_127], %719 {strides = array<i32>} : memref<10x4x16xf32, #tpu.memory_space<vmem>>, vector<1x4x16xf32>,
    %720 = arith.index_cast %625 : i32 to index
    %c0_128 = arith.constant 0 : index
    %c0_129 = arith.constant 0 : index
    %721 = vector.load %arg5[%720, %c0_128, %c0_129] : memref<10x4x16xf32, #tpu.memory_space<vmem>>, vector<1x4x16xf32>
    %722 = vector.shape_cast %721 : vector<1x4x16xf32> to vector<4x16xf32>
    %723 = vector.shape_cast %715 : vector<4x16xf32> to vector<1x4x16xf32>
    tpu.vector_store %arg5[%720, %c0_128, %c0_129], %723 {strides = array<i32>} : memref<10x4x16xf32, #tpu.memory_space<vmem>>, vector<1x4x16xf32>,
    %724 = tpu.concatenate %675, %713 in 1 : vector<4x16xf32>, vector<4x16xf32> -> vector<4x32xf32>
    %c7_i32 = arith.constant 7 : i32
    %cst_130 = arith.constant dense<0.000000e+00> : vector<4x96xf32>
    %725 = tpu.matmul %724, %1, %cst_130 {dimension_numbers = #tpu.dot_dimension_numbers<[1], [0], [0], [1], [0, 0, 1, 1], [], []>} : vector<4x32xf32>, vector<32x96xf32>, vector<4x96xf32> -> vector<4x96xf32>
    %726 = vector.broadcast %2 : vector<1x96xf32> to vector<4x96xf32>
    %727 = arith.addf %725, %726 : vector<4x96xf32>
    %c9_i32_131 = arith.constant 9 : i32
    %728 = arith.subi %c9_i32_131, %c7_i32 : i32
    %729 = arith.index_cast %c7_i32 : i32 to index
    %c0_132 = arith.constant 0 : index
    %c0_133 = arith.constant 0 : index
    %730 = vector.load %arg1[%729, %c0_132, %c0_133] : memref<10x4x96xf32, #tpu.memory_space<vmem>>, vector<1x4x96xf32>
    %731 = vector.shape_cast %730 : vector<1x4x96xf32> to vector<4x96xf32>
    %732 = arith.index_cast %728 : i32 to index
    %c0_134 = arith.constant 0 : index
    %c0_135 = arith.constant 0 : index
    %733 = vector.load %arg1[%732, %c0_134, %c0_135] : memref<10x4x96xf32, #tpu.memory_space<vmem>>, vector<1x4x96xf32>
    %734 = vector.shape_cast %733 : vector<1x4x96xf32> to vector<4x96xf32>
    %735 = vector.broadcast %c7_i32 : i32 to vector<4x1xi32>
    %736 = arith.cmpi slt, %735, %0 : vector<4x1xi32>
    %737 = arith.extui %736 : vector<4x1xi1> to vector<4x1xi32>
    %738 = arith.sitofp %737 : vector<4x1xi32> to vector<4x1xf32>
    %739 = vector.broadcast %728 : i32 to vector<4x1xi32>
    %740 = arith.cmpi slt, %739, %0 : vector<4x1xi32>
    %741 = arith.extui %740 : vector<4x1xi1> to vector<4x1xi32>
    %742 = arith.sitofp %741 : vector<4x1xi32> to vector<4x1xf32>
    %743 = vector.extract_strided_slice %731 {offsets = [0, 0], sizes = [4, 48], strides = [1, 1]} : vector<4x96xf32> to vector<4x48xf32>
    %744 = vector.extract_strided_slice %727 {offsets = [0, 0], sizes = [4, 48], strides = [1, 1]} : vector<4x96xf32> to vector<4x48xf32>
    %745 = vector.extract_strided_slice %724 {offsets = [0, 0], sizes = [4, 16], strides = [1, 1]} : vector<4x32xf32> to vector<4x16xf32>
    %746 = vector.extract_strided_slice %743 {offsets = [0, 0], sizes = [4, 16], strides = [1, 1]} : vector<4x48xf32> to vector<4x16xf32>
    %747 = vector.extract_strided_slice %744 {offsets = [0, 0], sizes = [4, 16], strides = [1, 1]} : vector<4x48xf32> to vector<4x16xf32>
    %748 = arith.addf %746, %747 : vector<4x16xf32>
    %749 = arith.negf %748 : vector<4x16xf32>
    %750 = math.exp %749 : vector<4x16xf32>
    %cst_136 = arith.constant 1.000000e+00 : f32
    %751 = vector.broadcast %cst_136 : f32 to vector<4x16xf32>
    %752 = arith.addf %751, %750 : vector<4x16xf32>
    %753 = arith.divf %751, %752 : vector<4x16xf32>
    %754 = vector.extract_strided_slice %743 {offsets = [0, 16], sizes = [4, 16], strides = [1, 1]} : vector<4x48xf32> to vector<4x16xf32>
    %755 = vector.extract_strided_slice %744 {offsets = [0, 16], sizes = [4, 16], strides = [1, 1]} : vector<4x48xf32> to vector<4x16xf32>
    %756 = arith.addf %754, %755 : vector<4x16xf32>
    %757 = arith.negf %756 : vector<4x16xf32>
    %758 = math.exp %757 : vector<4x16xf32>
    %cst_137 = arith.constant 1.000000e+00 : f32
    %759 = vector.broadcast %cst_137 : f32 to vector<4x16xf32>
    %760 = arith.addf %759, %758 : vector<4x16xf32>
    %761 = arith.divf %759, %760 : vector<4x16xf32>
    %762 = vector.extract_strided_slice %743 {offsets = [0, 32], sizes = [4, 16], strides = [1, 1]} : vector<4x48xf32> to vector<4x16xf32>
    %763 = vector.extract_strided_slice %744 {offsets = [0, 32], sizes = [4, 16], strides = [1, 1]} : vector<4x48xf32> to vector<4x16xf32>
    %764 = arith.mulf %753, %763 : vector<4x16xf32>
    %765 = arith.addf %762, %764 : vector<4x16xf32>
    %766 = math.tanh %765 : vector<4x16xf32>
    %cst_138 = arith.constant 1.000000e+00 : f32
    %767 = vector.broadcast %cst_138 : f32 to vector<4x16xf32>
    %768 = arith.subf %767, %761 : vector<4x16xf32>
    %769 = arith.mulf %768, %766 : vector<4x16xf32>
    %770 = arith.mulf %761, %745 : vector<4x16xf32>
    %771 = arith.addf %769, %770 : vector<4x16xf32>
    %772 = vector.broadcast %738 : vector<4x1xf32> to vector<4x16xf32>
    %773 = arith.mulf %772, %771 : vector<4x16xf32>
    %cst_139 = arith.constant 1.000000e+00 : f32
    %774 = vector.broadcast %cst_139 : f32 to vector<4x1xf32>
    %775 = arith.subf %774, %738 : vector<4x1xf32>
    %776 = vector.broadcast %775 : vector<4x1xf32> to vector<4x16xf32>
    %777 = arith.mulf %776, %745 : vector<4x16xf32>
    %778 = arith.addf %773, %777 : vector<4x16xf32>
    %779 = vector.broadcast %738 : vector<4x1xf32> to vector<4x16xf32>
    %780 = arith.mulf %779, %771 : vector<4x16xf32>
    %781 = vector.extract_strided_slice %734 {offsets = [0, 48], sizes = [4, 48], strides = [1, 1]} : vector<4x96xf32> to vector<4x48xf32>
    %782 = vector.extract_strided_slice %727 {offsets = [0, 48], sizes = [4, 48], strides = [1, 1]} : vector<4x96xf32> to vector<4x48xf32>
    %783 = vector.extract_strided_slice %724 {offsets = [0, 16], sizes = [4, 16], strides = [1, 1]} : vector<4x32xf32> to vector<4x16xf32>
    %784 = vector.extract_strided_slice %781 {offsets = [0, 0], sizes = [4, 16], strides = [1, 1]} : vector<4x48xf32> to vector<4x16xf32>
    %785 = vector.extract_strided_slice %782 {offsets = [0, 0], sizes = [4, 16], strides = [1, 1]} : vector<4x48xf32> to vector<4x16xf32>
    %786 = arith.addf %784, %785 : vector<4x16xf32>
    %787 = arith.negf %786 : vector<4x16xf32>
    %788 = math.exp %787 : vector<4x16xf32>
    %cst_140 = arith.constant 1.000000e+00 : f32
    %789 = vector.broadcast %cst_140 : f32 to vector<4x16xf32>
    %790 = arith.addf %789, %788 : vector<4x16xf32>
    %791 = arith.divf %789, %790 : vector<4x16xf32>
    %792 = vector.extract_strided_slice %781 {offsets = [0, 16], sizes = [4, 16], strides = [1, 1]} : vector<4x48xf32> to vector<4x16xf32>
    %793 = vector.extract_strided_slice %782 {offsets = [0, 16], sizes = [4, 16], strides = [1, 1]} : vector<4x48xf32> to vector<4x16xf32>
    %794 = arith.addf %792, %793 : vector<4x16xf32>
    %795 = arith.negf %794 : vector<4x16xf32>
    %796 = math.exp %795 : vector<4x16xf32>
    %cst_141 = arith.constant 1.000000e+00 : f32
    %797 = vector.broadcast %cst_141 : f32 to vector<4x16xf32>
    %798 = arith.addf %797, %796 : vector<4x16xf32>
    %799 = arith.divf %797, %798 : vector<4x16xf32>
    %800 = vector.extract_strided_slice %781 {offsets = [0, 32], sizes = [4, 16], strides = [1, 1]} : vector<4x48xf32> to vector<4x16xf32>
    %801 = vector.extract_strided_slice %782 {offsets = [0, 32], sizes = [4, 16], strides = [1, 1]} : vector<4x48xf32> to vector<4x16xf32>
    %802 = arith.mulf %791, %801 : vector<4x16xf32>
    %803 = arith.addf %800, %802 : vector<4x16xf32>
    %804 = math.tanh %803 : vector<4x16xf32>
    %cst_142 = arith.constant 1.000000e+00 : f32
    %805 = vector.broadcast %cst_142 : f32 to vector<4x16xf32>
    %806 = arith.subf %805, %799 : vector<4x16xf32>
    %807 = arith.mulf %806, %804 : vector<4x16xf32>
    %808 = arith.mulf %799, %783 : vector<4x16xf32>
    %809 = arith.addf %807, %808 : vector<4x16xf32>
    %810 = vector.broadcast %742 : vector<4x1xf32> to vector<4x16xf32>
    %811 = arith.mulf %810, %809 : vector<4x16xf32>
    %cst_143 = arith.constant 1.000000e+00 : f32
    %812 = vector.broadcast %cst_143 : f32 to vector<4x1xf32>
    %813 = arith.subf %812, %742 : vector<4x1xf32>
    %814 = vector.broadcast %813 : vector<4x1xf32> to vector<4x16xf32>
    %815 = arith.mulf %814, %783 : vector<4x16xf32>
    %816 = arith.addf %811, %815 : vector<4x16xf32>
    %817 = vector.broadcast %742 : vector<4x1xf32> to vector<4x16xf32>
    %818 = arith.mulf %817, %809 : vector<4x16xf32>
    %819 = arith.index_cast %c7_i32 : i32 to index
    %c0_144 = arith.constant 0 : index
    %c0_145 = arith.constant 0 : index
    %820 = vector.load %arg4[%819, %c0_144, %c0_145] : memref<10x4x16xf32, #tpu.memory_space<vmem>>, vector<1x4x16xf32>
    %821 = vector.shape_cast %820 : vector<1x4x16xf32> to vector<4x16xf32>
    %822 = vector.shape_cast %780 : vector<4x16xf32> to vector<1x4x16xf32>
    tpu.vector_store %arg4[%819, %c0_144, %c0_145], %822 {strides = array<i32>} : memref<10x4x16xf32, #tpu.memory_space<vmem>>, vector<1x4x16xf32>,
    %823 = arith.index_cast %728 : i32 to index
    %c0_146 = arith.constant 0 : index
    %c0_147 = arith.constant 0 : index
    %824 = vector.load %arg5[%823, %c0_146, %c0_147] : memref<10x4x16xf32, #tpu.memory_space<vmem>>, vector<1x4x16xf32>
    %825 = vector.shape_cast %824 : vector<1x4x16xf32> to vector<4x16xf32>
    %826 = vector.shape_cast %818 : vector<4x16xf32> to vector<1x4x16xf32>
    tpu.vector_store %arg5[%823, %c0_146, %c0_147], %826 {strides = array<i32>} : memref<10x4x16xf32, #tpu.memory_space<vmem>>, vector<1x4x16xf32>,
    %827 = tpu.concatenate %778, %816 in 1 : vector<4x16xf32>, vector<4x16xf32> -> vector<4x32xf32>
    %c8_i32 = arith.constant 8 : i32
    %cst_148 = arith.constant dense<0.000000e+00> : vector<4x96xf32>
    %828 = tpu.matmul %827, %1, %cst_148 {dimension_numbers = #tpu.dot_dimension_numbers<[1], [0], [0], [1], [0, 0, 1, 1], [], []>} : vector<4x32xf32>, vector<32x96xf32>, vector<4x96xf32> -> vector<4x96xf32>
    %829 = vector.broadcast %2 : vector<1x96xf32> to vector<4x96xf32>
    %830 = arith.addf %828, %829 : vector<4x96xf32>
    %c9_i32_149 = arith.constant 9 : i32
    %831 = arith.subi %c9_i32_149, %c8_i32 : i32
    %832 = arith.index_cast %c8_i32 : i32 to index
    %c0_150 = arith.constant 0 : index
    %c0_151 = arith.constant 0 : index
    %833 = vector.load %arg1[%832, %c0_150, %c0_151] : memref<10x4x96xf32, #tpu.memory_space<vmem>>, vector<1x4x96xf32>
    %834 = vector.shape_cast %833 : vector<1x4x96xf32> to vector<4x96xf32>
    %835 = arith.index_cast %831 : i32 to index
    %c0_152 = arith.constant 0 : index
    %c0_153 = arith.constant 0 : index
    %836 = vector.load %arg1[%835, %c0_152, %c0_153] : memref<10x4x96xf32, #tpu.memory_space<vmem>>, vector<1x4x96xf32>
    %837 = vector.shape_cast %836 : vector<1x4x96xf32> to vector<4x96xf32>
    %838 = vector.broadcast %c8_i32 : i32 to vector<4x1xi32>
    %839 = arith.cmpi slt, %838, %0 : vector<4x1xi32>
    %840 = arith.extui %839 : vector<4x1xi1> to vector<4x1xi32>
    %841 = arith.sitofp %840 : vector<4x1xi32> to vector<4x1xf32>
    %842 = vector.broadcast %831 : i32 to vector<4x1xi32>
    %843 = arith.cmpi slt, %842, %0 : vector<4x1xi32>
    %844 = arith.extui %843 : vector<4x1xi1> to vector<4x1xi32>
    %845 = arith.sitofp %844 : vector<4x1xi32> to vector<4x1xf32>
    %846 = vector.extract_strided_slice %834 {offsets = [0, 0], sizes = [4, 48], strides = [1, 1]} : vector<4x96xf32> to vector<4x48xf32>
    %847 = vector.extract_strided_slice %830 {offsets = [0, 0], sizes = [4, 48], strides = [1, 1]} : vector<4x96xf32> to vector<4x48xf32>
    %848 = vector.extract_strided_slice %827 {offsets = [0, 0], sizes = [4, 16], strides = [1, 1]} : vector<4x32xf32> to vector<4x16xf32>
    %849 = vector.extract_strided_slice %846 {offsets = [0, 0], sizes = [4, 16], strides = [1, 1]} : vector<4x48xf32> to vector<4x16xf32>
    %850 = vector.extract_strided_slice %847 {offsets = [0, 0], sizes = [4, 16], strides = [1, 1]} : vector<4x48xf32> to vector<4x16xf32>
    %851 = arith.addf %849, %850 : vector<4x16xf32>
    %852 = arith.negf %851 : vector<4x16xf32>
    %853 = math.exp %852 : vector<4x16xf32>
    %cst_154 = arith.constant 1.000000e+00 : f32
    %854 = vector.broadcast %cst_154 : f32 to vector<4x16xf32>
    %855 = arith.addf %854, %853 : vector<4x16xf32>
    %856 = arith.divf %854, %855 : vector<4x16xf32>
    %857 = vector.extract_strided_slice %846 {offsets = [0, 16], sizes = [4, 16], strides = [1, 1]} : vector<4x48xf32> to vector<4x16xf32>
    %858 = vector.extract_strided_slice %847 {offsets = [0, 16], sizes = [4, 16], strides = [1, 1]} : vector<4x48xf32> to vector<4x16xf32>
    %859 = arith.addf %857, %858 : vector<4x16xf32>
    %860 = arith.negf %859 : vector<4x16xf32>
    %861 = math.exp %860 : vector<4x16xf32>
    %cst_155 = arith.constant 1.000000e+00 : f32
    %862 = vector.broadcast %cst_155 : f32 to vector<4x16xf32>
    %863 = arith.addf %862, %861 : vector<4x16xf32>
    %864 = arith.divf %862, %863 : vector<4x16xf32>
    %865 = vector.extract_strided_slice %846 {offsets = [0, 32], sizes = [4, 16], strides = [1, 1]} : vector<4x48xf32> to vector<4x16xf32>
    %866 = vector.extract_strided_slice %847 {offsets = [0, 32], sizes = [4, 16], strides = [1, 1]} : vector<4x48xf32> to vector<4x16xf32>
    %867 = arith.mulf %856, %866 : vector<4x16xf32>
    %868 = arith.addf %865, %867 : vector<4x16xf32>
    %869 = math.tanh %868 : vector<4x16xf32>
    %cst_156 = arith.constant 1.000000e+00 : f32
    %870 = vector.broadcast %cst_156 : f32 to vector<4x16xf32>
    %871 = arith.subf %870, %864 : vector<4x16xf32>
    %872 = arith.mulf %871, %869 : vector<4x16xf32>
    %873 = arith.mulf %864, %848 : vector<4x16xf32>
    %874 = arith.addf %872, %873 : vector<4x16xf32>
    %875 = vector.broadcast %841 : vector<4x1xf32> to vector<4x16xf32>
    %876 = arith.mulf %875, %874 : vector<4x16xf32>
    %cst_157 = arith.constant 1.000000e+00 : f32
    %877 = vector.broadcast %cst_157 : f32 to vector<4x1xf32>
    %878 = arith.subf %877, %841 : vector<4x1xf32>
    %879 = vector.broadcast %878 : vector<4x1xf32> to vector<4x16xf32>
    %880 = arith.mulf %879, %848 : vector<4x16xf32>
    %881 = arith.addf %876, %880 : vector<4x16xf32>
    %882 = vector.broadcast %841 : vector<4x1xf32> to vector<4x16xf32>
    %883 = arith.mulf %882, %874 : vector<4x16xf32>
    %884 = vector.extract_strided_slice %837 {offsets = [0, 48], sizes = [4, 48], strides = [1, 1]} : vector<4x96xf32> to vector<4x48xf32>
    %885 = vector.extract_strided_slice %830 {offsets = [0, 48], sizes = [4, 48], strides = [1, 1]} : vector<4x96xf32> to vector<4x48xf32>
    %886 = vector.extract_strided_slice %827 {offsets = [0, 16], sizes = [4, 16], strides = [1, 1]} : vector<4x32xf32> to vector<4x16xf32>
    %887 = vector.extract_strided_slice %884 {offsets = [0, 0], sizes = [4, 16], strides = [1, 1]} : vector<4x48xf32> to vector<4x16xf32>
    %888 = vector.extract_strided_slice %885 {offsets = [0, 0], sizes = [4, 16], strides = [1, 1]} : vector<4x48xf32> to vector<4x16xf32>
    %889 = arith.addf %887, %888 : vector<4x16xf32>
    %890 = arith.negf %889 : vector<4x16xf32>
    %891 = math.exp %890 : vector<4x16xf32>
    %cst_158 = arith.constant 1.000000e+00 : f32
    %892 = vector.broadcast %cst_158 : f32 to vector<4x16xf32>
    %893 = arith.addf %892, %891 : vector<4x16xf32>
    %894 = arith.divf %892, %893 : vector<4x16xf32>
    %895 = vector.extract_strided_slice %884 {offsets = [0, 16], sizes = [4, 16], strides = [1, 1]} : vector<4x48xf32> to vector<4x16xf32>
    %896 = vector.extract_strided_slice %885 {offsets = [0, 16], sizes = [4, 16], strides = [1, 1]} : vector<4x48xf32> to vector<4x16xf32>
    %897 = arith.addf %895, %896 : vector<4x16xf32>
    %898 = arith.negf %897 : vector<4x16xf32>
    %899 = math.exp %898 : vector<4x16xf32>
    %cst_159 = arith.constant 1.000000e+00 : f32
    %900 = vector.broadcast %cst_159 : f32 to vector<4x16xf32>
    %901 = arith.addf %900, %899 : vector<4x16xf32>
    %902 = arith.divf %900, %901 : vector<4x16xf32>
    %903 = vector.extract_strided_slice %884 {offsets = [0, 32], sizes = [4, 16], strides = [1, 1]} : vector<4x48xf32> to vector<4x16xf32>
    %904 = vector.extract_strided_slice %885 {offsets = [0, 32], sizes = [4, 16], strides = [1, 1]} : vector<4x48xf32> to vector<4x16xf32>
    %905 = arith.mulf %894, %904 : vector<4x16xf32>
    %906 = arith.addf %903, %905 : vector<4x16xf32>
    %907 = math.tanh %906 : vector<4x16xf32>
    %cst_160 = arith.constant 1.000000e+00 : f32
    %908 = vector.broadcast %cst_160 : f32 to vector<4x16xf32>
    %909 = arith.subf %908, %902 : vector<4x16xf32>
    %910 = arith.mulf %909, %907 : vector<4x16xf32>
    %911 = arith.mulf %902, %886 : vector<4x16xf32>
    %912 = arith.addf %910, %911 : vector<4x16xf32>
    %913 = vector.broadcast %845 : vector<4x1xf32> to vector<4x16xf32>
    %914 = arith.mulf %913, %912 : vector<4x16xf32>
    %cst_161 = arith.constant 1.000000e+00 : f32
    %915 = vector.broadcast %cst_161 : f32 to vector<4x1xf32>
    %916 = arith.subf %915, %845 : vector<4x1xf32>
    %917 = vector.broadcast %916 : vector<4x1xf32> to vector<4x16xf32>
    %918 = arith.mulf %917, %886 : vector<4x16xf32>
    %919 = arith.addf %914, %918 : vector<4x16xf32>
    %920 = vector.broadcast %845 : vector<4x1xf32> to vector<4x16xf32>
    %921 = arith.mulf %920, %912 : vector<4x16xf32>
    %922 = arith.index_cast %c8_i32 : i32 to index
    %c0_162 = arith.constant 0 : index
    %c0_163 = arith.constant 0 : index
    %923 = vector.load %arg4[%922, %c0_162, %c0_163] : memref<10x4x16xf32, #tpu.memory_space<vmem>>, vector<1x4x16xf32>
    %924 = vector.shape_cast %923 : vector<1x4x16xf32> to vector<4x16xf32>
    %925 = vector.shape_cast %883 : vector<4x16xf32> to vector<1x4x16xf32>
    tpu.vector_store %arg4[%922, %c0_162, %c0_163], %925 {strides = array<i32>} : memref<10x4x16xf32, #tpu.memory_space<vmem>>, vector<1x4x16xf32>,
    %926 = arith.index_cast %831 : i32 to index
    %c0_164 = arith.constant 0 : index
    %c0_165 = arith.constant 0 : index
    %927 = vector.load %arg5[%926, %c0_164, %c0_165] : memref<10x4x16xf32, #tpu.memory_space<vmem>>, vector<1x4x16xf32>
    %928 = vector.shape_cast %927 : vector<1x4x16xf32> to vector<4x16xf32>
    %929 = vector.shape_cast %921 : vector<4x16xf32> to vector<1x4x16xf32>
    tpu.vector_store %arg5[%926, %c0_164, %c0_165], %929 {strides = array<i32>} : memref<10x4x16xf32, #tpu.memory_space<vmem>>, vector<1x4x16xf32>,
    %930 = tpu.concatenate %881, %919 in 1 : vector<4x16xf32>, vector<4x16xf32> -> vector<4x32xf32>
    %c9_i32_166 = arith.constant 9 : i32
    %cst_167 = arith.constant dense<0.000000e+00> : vector<4x96xf32>
    %931 = tpu.matmul %930, %1, %cst_167 {dimension_numbers = #tpu.dot_dimension_numbers<[1], [0], [0], [1], [0, 0, 1, 1], [], []>} : vector<4x32xf32>, vector<32x96xf32>, vector<4x96xf32> -> vector<4x96xf32>
    %932 = vector.broadcast %2 : vector<1x96xf32> to vector<4x96xf32>
    %933 = arith.addf %931, %932 : vector<4x96xf32>
    %c9_i32_168 = arith.constant 9 : i32
    %934 = arith.subi %c9_i32_168, %c9_i32_166 : i32
    %935 = arith.index_cast %c9_i32_166 : i32 to index
    %c0_169 = arith.constant 0 : index
    %c0_170 = arith.constant 0 : index
    %936 = vector.load %arg1[%935, %c0_169, %c0_170] : memref<10x4x96xf32, #tpu.memory_space<vmem>>, vector<1x4x96xf32>
    %937 = vector.shape_cast %936 : vector<1x4x96xf32> to vector<4x96xf32>
    %938 = arith.index_cast %934 : i32 to index
    %c0_171 = arith.constant 0 : index
    %c0_172 = arith.constant 0 : index
    %939 = vector.load %arg1[%938, %c0_171, %c0_172] : memref<10x4x96xf32, #tpu.memory_space<vmem>>, vector<1x4x96xf32>
    %940 = vector.shape_cast %939 : vector<1x4x96xf32> to vector<4x96xf32>
    %941 = vector.broadcast %c9_i32_166 : i32 to vector<4x1xi32>
    %942 = arith.cmpi slt, %941, %0 : vector<4x1xi32>
    %943 = arith.extui %942 : vector<4x1xi1> to vector<4x1xi32>
    %944 = arith.sitofp %943 : vector<4x1xi32> to vector<4x1xf32>
    %945 = vector.broadcast %934 : i32 to vector<4x1xi32>
    %946 = arith.cmpi slt, %945, %0 : vector<4x1xi32>
    %947 = arith.extui %946 : vector<4x1xi1> to vector<4x1xi32>
    %948 = arith.sitofp %947 : vector<4x1xi32> to vector<4x1xf32>
    %949 = vector.extract_strided_slice %937 {offsets = [0, 0], sizes = [4, 48], strides = [1, 1]} : vector<4x96xf32> to vector<4x48xf32>
    %950 = vector.extract_strided_slice %933 {offsets = [0, 0], sizes = [4, 48], strides = [1, 1]} : vector<4x96xf32> to vector<4x48xf32>
    %951 = vector.extract_strided_slice %930 {offsets = [0, 0], sizes = [4, 16], strides = [1, 1]} : vector<4x32xf32> to vector<4x16xf32>
    %952 = vector.extract_strided_slice %949 {offsets = [0, 0], sizes = [4, 16], strides = [1, 1]} : vector<4x48xf32> to vector<4x16xf32>
    %953 = vector.extract_strided_slice %950 {offsets = [0, 0], sizes = [4, 16], strides = [1, 1]} : vector<4x48xf32> to vector<4x16xf32>
    %954 = arith.addf %952, %953 : vector<4x16xf32>
    %955 = arith.negf %954 : vector<4x16xf32>
    %956 = math.exp %955 : vector<4x16xf32>
    %cst_173 = arith.constant 1.000000e+00 : f32
    %957 = vector.broadcast %cst_173 : f32 to vector<4x16xf32>
    %958 = arith.addf %957, %956 : vector<4x16xf32>
    %959 = arith.divf %957, %958 : vector<4x16xf32>
    %960 = vector.extract_strided_slice %949 {offsets = [0, 16], sizes = [4, 16], strides = [1, 1]} : vector<4x48xf32> to vector<4x16xf32>
    %961 = vector.extract_strided_slice %950 {offsets = [0, 16], sizes = [4, 16], strides = [1, 1]} : vector<4x48xf32> to vector<4x16xf32>
    %962 = arith.addf %960, %961 : vector<4x16xf32>
    %963 = arith.negf %962 : vector<4x16xf32>
    %964 = math.exp %963 : vector<4x16xf32>
    %cst_174 = arith.constant 1.000000e+00 : f32
    %965 = vector.broadcast %cst_174 : f32 to vector<4x16xf32>
    %966 = arith.addf %965, %964 : vector<4x16xf32>
    %967 = arith.divf %965, %966 : vector<4x16xf32>
    %968 = vector.extract_strided_slice %949 {offsets = [0, 32], sizes = [4, 16], strides = [1, 1]} : vector<4x48xf32> to vector<4x16xf32>
    %969 = vector.extract_strided_slice %950 {offsets = [0, 32], sizes = [4, 16], strides = [1, 1]} : vector<4x48xf32> to vector<4x16xf32>
    %970 = arith.mulf %959, %969 : vector<4x16xf32>
    %971 = arith.addf %968, %970 : vector<4x16xf32>
    %972 = math.tanh %971 : vector<4x16xf32>
    %cst_175 = arith.constant 1.000000e+00 : f32
    %973 = vector.broadcast %cst_175 : f32 to vector<4x16xf32>
    %974 = arith.subf %973, %967 : vector<4x16xf32>
    %975 = arith.mulf %974, %972 : vector<4x16xf32>
    %976 = arith.mulf %967, %951 : vector<4x16xf32>
    %977 = arith.addf %975, %976 : vector<4x16xf32>
    %978 = vector.broadcast %944 : vector<4x1xf32> to vector<4x16xf32>
    %979 = arith.mulf %978, %977 : vector<4x16xf32>
    %cst_176 = arith.constant 1.000000e+00 : f32
    %980 = vector.broadcast %cst_176 : f32 to vector<4x1xf32>
    %981 = arith.subf %980, %944 : vector<4x1xf32>
    %982 = vector.broadcast %981 : vector<4x1xf32> to vector<4x16xf32>
    %983 = arith.mulf %982, %951 : vector<4x16xf32>
    %984 = arith.addf %979, %983 : vector<4x16xf32>
    %985 = vector.broadcast %944 : vector<4x1xf32> to vector<4x16xf32>
    %986 = arith.mulf %985, %977 : vector<4x16xf32>
    %987 = vector.extract_strided_slice %940 {offsets = [0, 48], sizes = [4, 48], strides = [1, 1]} : vector<4x96xf32> to vector<4x48xf32>
    %988 = vector.extract_strided_slice %933 {offsets = [0, 48], sizes = [4, 48], strides = [1, 1]} : vector<4x96xf32> to vector<4x48xf32>
    %989 = vector.extract_strided_slice %930 {offsets = [0, 16], sizes = [4, 16], strides = [1, 1]} : vector<4x32xf32> to vector<4x16xf32>
    %990 = vector.extract_strided_slice %987 {offsets = [0, 0], sizes = [4, 16], strides = [1, 1]} : vector<4x48xf32> to vector<4x16xf32>
    %991 = vector.extract_strided_slice %988 {offsets = [0, 0], sizes = [4, 16], strides = [1, 1]} : vector<4x48xf32> to vector<4x16xf32>
    %992 = arith.addf %990, %991 : vector<4x16xf32>
    %993 = arith.negf %992 : vector<4x16xf32>
    %994 = math.exp %993 : vector<4x16xf32>
    %cst_177 = arith.constant 1.000000e+00 : f32
    %995 = vector.broadcast %cst_177 : f32 to vector<4x16xf32>
    %996 = arith.addf %995, %994 : vector<4x16xf32>
    %997 = arith.divf %995, %996 : vector<4x16xf32>
    %998 = vector.extract_strided_slice %987 {offsets = [0, 16], sizes = [4, 16], strides = [1, 1]} : vector<4x48xf32> to vector<4x16xf32>
    %999 = vector.extract_strided_slice %988 {offsets = [0, 16], sizes = [4, 16], strides = [1, 1]} : vector<4x48xf32> to vector<4x16xf32>
    %1000 = arith.addf %998, %999 : vector<4x16xf32>
    %1001 = arith.negf %1000 : vector<4x16xf32>
    %1002 = math.exp %1001 : vector<4x16xf32>
    %cst_178 = arith.constant 1.000000e+00 : f32
    %1003 = vector.broadcast %cst_178 : f32 to vector<4x16xf32>
    %1004 = arith.addf %1003, %1002 : vector<4x16xf32>
    %1005 = arith.divf %1003, %1004 : vector<4x16xf32>
    %1006 = vector.extract_strided_slice %987 {offsets = [0, 32], sizes = [4, 16], strides = [1, 1]} : vector<4x48xf32> to vector<4x16xf32>
    %1007 = vector.extract_strided_slice %988 {offsets = [0, 32], sizes = [4, 16], strides = [1, 1]} : vector<4x48xf32> to vector<4x16xf32>
    %1008 = arith.mulf %997, %1007 : vector<4x16xf32>
    %1009 = arith.addf %1006, %1008 : vector<4x16xf32>
    %1010 = math.tanh %1009 : vector<4x16xf32>
    %cst_179 = arith.constant 1.000000e+00 : f32
    %1011 = vector.broadcast %cst_179 : f32 to vector<4x16xf32>
    %1012 = arith.subf %1011, %1005 : vector<4x16xf32>
    %1013 = arith.mulf %1012, %1010 : vector<4x16xf32>
    %1014 = arith.mulf %1005, %989 : vector<4x16xf32>
    %1015 = arith.addf %1013, %1014 : vector<4x16xf32>
    %1016 = vector.broadcast %948 : vector<4x1xf32> to vector<4x16xf32>
    %1017 = arith.mulf %1016, %1015 : vector<4x16xf32>
    %cst_180 = arith.constant 1.000000e+00 : f32
    %1018 = vector.broadcast %cst_180 : f32 to vector<4x1xf32>
    %1019 = arith.subf %1018, %948 : vector<4x1xf32>
    %1020 = vector.broadcast %1019 : vector<4x1xf32> to vector<4x16xf32>
    %1021 = arith.mulf %1020, %989 : vector<4x16xf32>
    %1022 = arith.addf %1017, %1021 : vector<4x16xf32>
    %1023 = vector.broadcast %948 : vector<4x1xf32> to vector<4x16xf32>
    %1024 = arith.mulf %1023, %1015 : vector<4x16xf32>
    %1025 = arith.index_cast %c9_i32_166 : i32 to index
    %c0_181 = arith.constant 0 : index
    %c0_182 = arith.constant 0 : index
    %1026 = vector.load %arg4[%1025, %c0_181, %c0_182] : memref<10x4x16xf32, #tpu.memory_space<vmem>>, vector<1x4x16xf32>
    %1027 = vector.shape_cast %1026 : vector<1x4x16xf32> to vector<4x16xf32>
    %1028 = vector.shape_cast %986 : vector<4x16xf32> to vector<1x4x16xf32>
    tpu.vector_store %arg4[%1025, %c0_181, %c0_182], %1028 {strides = array<i32>} : memref<10x4x16xf32, #tpu.memory_space<vmem>>, vector<1x4x16xf32>,
    %1029 = arith.index_cast %934 : i32 to index
    %c0_183 = arith.constant 0 : index
    %c0_184 = arith.constant 0 : index
    %1030 = vector.load %arg5[%1029, %c0_183, %c0_184] : memref<10x4x16xf32, #tpu.memory_space<vmem>>, vector<1x4x16xf32>
    %1031 = vector.shape_cast %1030 : vector<1x4x16xf32> to vector<4x16xf32>
    %1032 = vector.shape_cast %1024 : vector<4x16xf32> to vector<1x4x16xf32>
    tpu.vector_store %arg5[%1029, %c0_183, %c0_184], %1032 {strides = array<i32>} : memref<10x4x16xf32, #tpu.memory_space<vmem>>, vector<1x4x16xf32>,
    %1033 = tpu.concatenate %984, %1022 in 1 : vector<4x16xf32>, vector<4x16xf32> -> vector<4x32xf32>
    %c10_i32 = arith.constant 10 : i32
    %c0_185 = arith.constant 0 : index
    %c0_186 = arith.constant 0 : index
    %1034 = vector.load %arg6[%c0_185, %c0_186] : memref<4x32xf32, #tpu.memory_space<vmem>>, vector<4x32xf32>
    tpu.vector_store %arg6[%c0_185, %c0_186], %1033 {strides = array<i32>} : memref<4x32xf32, #tpu.memory_space<vmem>>, vector<4x32xf32>,
    return
  }
}

module attributes {stable_mosaic.version = 11 : i64} {
  func.func @_biatt_combine_kernel(%arg0: i32, %arg1: memref<4xi32, #tpu.memory_space<smem>>, %arg2: memref<1x10x32xf32, #tpu.memory_space<vmem>>, %arg3: memref<1x8x32xf32, #tpu.memory_space<vmem>>, %arg4: memref<32x32xf32, #tpu.memory_space<vmem>>, %arg5: memref<32x32xf32, #tpu.memory_space<vmem>>, %arg6: memref<1x32xf32, #tpu.memory_space<vmem>>, %arg7: memref<1x10x32xf32, #tpu.memory_space<vmem>>, %arg8: memref<1x8x32xf32, #tpu.memory_space<vmem>>) attributes {dimension_semantics = [#tpu.dimension_semantics<parallel>], iteration_bounds = array<i64: 2>, scalar_prefetch = 1 : i64, scratch_operands = 0 : i64, tpu.core_type = #tpu.core_type<tc>, window_params = [{transform_indices = @transform_0, window_bounds = array<i64: 1, 10, 32>}, {transform_indices = @transform_1, window_bounds = array<i64: 1, 8, 32>}, {pipeline_mode = #tpu.pipeline_mode<synchronous>, transform_indices = @transform_2, window_bounds = array<i64: 32, 32>}, {pipeline_mode = #tpu.pipeline_mode<synchronous>, transform_indices = @transform_3, window_bounds = array<i64: 32, 32>}, {pipeline_mode = #tpu.pipeline_mode<synchronous>, transform_indices = @transform_4, window_bounds = array<i64: 1, 32>}, {transform_indices = @transform_5, window_bounds = array<i64: 1, 10, 32>}, {transform_indices = @transform_6, window_bounds = array<i64: 1, 8, 32>}]} {
    %c0 = arith.constant 0 : index
    %c0_0 = arith.constant 0 : index
    %c0_1 = arith.constant 0 : index
    %0 = vector.load %arg2[%c0, %c0_0, %c0_1] : memref<1x10x32xf32, #tpu.memory_space<vmem>>, vector<1x10x32xf32>
    %1 = vector.shape_cast %0 : vector<1x10x32xf32> to vector<10x32xf32>
    %c0_2 = arith.constant 0 : index
    %c0_3 = arith.constant 0 : index
    %c0_4 = arith.constant 0 : index
    %2 = vector.load %arg3[%c0_2, %c0_3, %c0_4] : memref<1x8x32xf32, #tpu.memory_space<vmem>>, vector<1x8x32xf32>
    %3 = vector.shape_cast %2 : vector<1x8x32xf32> to vector<8x32xf32>
    %4 = arith.index_cast %arg0 : i32 to index
    %5 = memref.load %arg1[%4] : memref<4xi32, #tpu.memory_space<smem>>
    %c2_i32 = arith.constant 2 : i32
    %6 = arith.addi %arg0, %c2_i32 : i32
    %7 = arith.index_cast %6 : i32 to index
    %8 = memref.load %arg1[%7] : memref<4xi32, #tpu.memory_space<smem>>
    %cst = arith.constant dense<0.000000e+00> : vector<10x8xf32>
    %9 = tpu.matmul %1, %3, %cst {dimension_numbers = #tpu.dot_dimension_numbers<[1], [1], [0], [0], [0, 0, 1, 0], [], []>} : vector<10x32xf32>, vector<8x32xf32>, vector<10x8xf32> -> vector<10x8xf32>
    %10 = tpu.iota {dimensions = array<i32: 1>} : vector<10x8xi32>
    %11 = vector.broadcast %8 : i32 to vector<10x8xi32>
    %12 = arith.cmpi slt, %10, %11 : vector<10x8xi32>
    %cst_5 = arith.constant -1.000000e+30 : f32
    %13 = vector.broadcast %cst_5 : f32 to vector<10x8xf32>
    %14 = arith.select %12, %9, %13 : vector<10x8xi1>, vector<10x8xf32>
    %cst_6 = arith.constant dense<0xFF800000> : vector<10xf32>
    %15 = vector.multi_reduction <maximumf>, %14, %cst_6 [1] : vector<10x8xf32> to vector<10xf32>
    %cst_7 = arith.constant 0xFF800000 : f32
    %16 = vector.broadcast %cst_7 : f32 to vector<10xf32>
    %17 = arith.maximumf %16, %15 : vector<10xf32>
    %18 = vector.shape_cast %17 : vector<10xf32> to vector<10x1xf32>
    %19 = vector.broadcast %18 : vector<10x1xf32> to vector<10x8xf32>
    %20 = arith.subf %14, %19 : vector<10x8xf32>
    %21 = math.exp %20 : vector<10x8xf32>
    %cst_8 = arith.constant dense<0.000000e+00> : vector<10xf32>
    %22 = vector.multi_reduction <add>, %21, %cst_8 [1] : vector<10x8xf32> to vector<10xf32>
    %23 = vector.shape_cast %22 : vector<10xf32> to vector<10x1xf32>
    %24 = vector.broadcast %23 : vector<10x1xf32> to vector<10x8xf32>
    %25 = arith.divf %21, %24 : vector<10x8xf32>
    %cst_9 = arith.constant dense<0.000000e+00> : vector<10x32xf32>
    %26 = tpu.matmul %25, %3, %cst_9 {dimension_numbers = #tpu.dot_dimension_numbers<[1], [0], [0], [1], [0, 0, 1, 1], [], []>} : vector<10x8xf32>, vector<8x32xf32>, vector<10x32xf32> -> vector<10x32xf32>
    %cst_10 = arith.constant dense<0.000000e+00> : vector<8x10xf32>
    %27 = tpu.matmul %3, %1, %cst_10 {dimension_numbers = #tpu.dot_dimension_numbers<[1], [1], [0], [0], [0, 0, 1, 0], [], []>} : vector<8x32xf32>, vector<10x32xf32>, vector<8x10xf32> -> vector<8x10xf32>
    %28 = tpu.iota {dimensions = array<i32: 1>} : vector<8x10xi32>
    %29 = vector.broadcast %5 : i32 to vector<8x10xi32>
    %30 = arith.cmpi slt, %28, %29 : vector<8x10xi32>
    %cst_11 = arith.constant -1.000000e+30 : f32
    %31 = vector.broadcast %cst_11 : f32 to vector<8x10xf32>
    %32 = arith.select %30, %27, %31 : vector<8x10xi1>, vector<8x10xf32>
    %cst_12 = arith.constant dense<0xFF800000> : vector<8xf32>
    %33 = vector.multi_reduction <maximumf>, %32, %cst_12 [1] : vector<8x10xf32> to vector<8xf32>
    %cst_13 = arith.constant 0xFF800000 : f32
    %34 = vector.broadcast %cst_13 : f32 to vector<8xf32>
    %35 = arith.maximumf %34, %33 : vector<8xf32>
    %36 = vector.shape_cast %35 : vector<8xf32> to vector<8x1xf32>
    %37 = vector.broadcast %36 : vector<8x1xf32> to vector<8x10xf32>
    %38 = arith.subf %32, %37 : vector<8x10xf32>
    %39 = math.exp %38 : vector<8x10xf32>
    %cst_14 = arith.constant dense<0.000000e+00> : vector<8xf32>
    %40 = vector.multi_reduction <add>, %39, %cst_14 [1] : vector<8x10xf32> to vector<8xf32>
    %41 = vector.shape_cast %40 : vector<8xf32> to vector<8x1xf32>
    %42 = vector.broadcast %41 : vector<8x1xf32> to vector<8x10xf32>
    %43 = arith.divf %39, %42 : vector<8x10xf32>
    %cst_15 = arith.constant dense<0.000000e+00> : vector<8x32xf32>
    %44 = tpu.matmul %43, %1, %cst_15 {dimension_numbers = #tpu.dot_dimension_numbers<[1], [0], [0], [1], [0, 0, 1, 1], [], []>} : vector<8x10xf32>, vector<10x32xf32>, vector<8x32xf32> -> vector<8x32xf32>
    %c0_16 = arith.constant 0 : index
    %c0_17 = arith.constant 0 : index
    %45 = vector.load %arg4[%c0_16, %c0_17] : memref<32x32xf32, #tpu.memory_space<vmem>>, vector<32x32xf32>
    %c0_18 = arith.constant 0 : index
    %c0_19 = arith.constant 0 : index
    %46 = vector.load %arg5[%c0_18, %c0_19] : memref<32x32xf32, #tpu.memory_space<vmem>>, vector<32x32xf32>
    %c0_20 = arith.constant 0 : index
    %c0_21 = arith.constant 0 : index
    %47 = vector.load %arg6[%c0_20, %c0_21] : memref<1x32xf32, #tpu.memory_space<vmem>>, vector<1x32xf32>
    %cst_22 = arith.constant dense<0.000000e+00> : vector<10x32xf32>
    %48 = tpu.matmul %1, %45, %cst_22 {dimension_numbers = #tpu.dot_dimension_numbers<[1], [0], [0], [1], [0, 0, 1, 1], [], []>} : vector<10x32xf32>, vector<32x32xf32>, vector<10x32xf32> -> vector<10x32xf32>
    %cst_23 = arith.constant dense<0.000000e+00> : vector<10x32xf32>
    %49 = tpu.matmul %26, %46, %cst_23 {dimension_numbers = #tpu.dot_dimension_numbers<[1], [0], [0], [1], [0, 0, 1, 1], [], []>} : vector<10x32xf32>, vector<32x32xf32>, vector<10x32xf32> -> vector<10x32xf32>
    %50 = arith.addf %48, %49 : vector<10x32xf32>
    %51 = vector.broadcast %47 : vector<1x32xf32> to vector<10x32xf32>
    %52 = arith.addf %50, %51 : vector<10x32xf32>
    %c0_24 = arith.constant 0 : index
    %c0_25 = arith.constant 0 : index
    %c0_26 = arith.constant 0 : index
    %53 = vector.load %arg7[%c0_24, %c0_25, %c0_26] : memref<1x10x32xf32, #tpu.memory_space<vmem>>, vector<1x10x32xf32>
    %54 = vector.shape_cast %53 : vector<1x10x32xf32> to vector<10x32xf32>
    %55 = vector.shape_cast %52 : vector<10x32xf32> to vector<1x10x32xf32>
    tpu.vector_store %arg7[%c0_24, %c0_25, %c0_26], %55 {strides = array<i32>} : memref<1x10x32xf32, #tpu.memory_space<vmem>>, vector<1x10x32xf32>,
    %cst_27 = arith.constant dense<0.000000e+00> : vector<8x32xf32>
    %56 = tpu.matmul %3, %45, %cst_27 {dimension_numbers = #tpu.dot_dimension_numbers<[1], [0], [0], [1], [0, 0, 1, 1], [], []>} : vector<8x32xf32>, vector<32x32xf32>, vector<8x32xf32> -> vector<8x32xf32>
    %cst_28 = arith.constant dense<0.000000e+00> : vector<8x32xf32>
    %57 = tpu.matmul %44, %46, %cst_28 {dimension_numbers = #tpu.dot_dimension_numbers<[1], [0], [0], [1], [0, 0, 1, 1], [], []>} : vector<8x32xf32>, vector<32x32xf32>, vector<8x32xf32> -> vector<8x32xf32>
    %58 = arith.addf %56, %57 : vector<8x32xf32>
    %59 = vector.broadcast %47 : vector<1x32xf32> to vector<8x32xf32>
    %60 = arith.addf %58, %59 : vector<8x32xf32>
    %c0_29 = arith.constant 0 : index
    %c0_30 = arith.constant 0 : index
    %c0_31 = arith.constant 0 : index
    %61 = vector.load %arg8[%c0_29, %c0_30, %c0_31] : memref<1x8x32xf32, #tpu.memory_space<vmem>>, vector<1x8x32xf32>
    %62 = vector.shape_cast %61 : vector<1x8x32xf32> to vector<8x32xf32>
    %63 = vector.shape_cast %60 : vector<8x32xf32> to vector<1x8x32xf32>
    tpu.vector_store %arg8[%c0_29, %c0_30, %c0_31], %63 {strides = array<i32>} : memref<1x8x32xf32, #tpu.memory_space<vmem>>, vector<1x8x32xf32>,
    return
  }
  func.func @transform_0(%arg0: i32, %arg1: memref<4xi32, #tpu.memory_space<smem>>) -> (i32, i32, i32) {
    %c0_i32 = arith.constant 0 : i32
    %c0_i32_0 = arith.constant 0 : i32
    %c0_i32_1 = arith.constant 0 : i32
    return %arg0, %c0_i32, %c0_i32_0 : i32, i32, i32
  }
  func.func @transform_1(%arg0: i32, %arg1: memref<4xi32, #tpu.memory_space<smem>>) -> (i32, i32, i32) {
    %c0_i32 = arith.constant 0 : i32
    %c0_i32_0 = arith.constant 0 : i32
    %c0_i32_1 = arith.constant 0 : i32
    return %arg0, %c0_i32, %c0_i32_0 : i32, i32, i32
  }
  func.func @transform_2(%arg0: i32, %arg1: memref<4xi32, #tpu.memory_space<smem>>) -> (i32, i32) {
    %c0_i32 = arith.constant 0 : i32
    %c0_i32_0 = arith.constant 0 : i32
    %c0_i32_1 = arith.constant 0 : i32
    return %c0_i32, %c0_i32_0 : i32, i32
  }
  func.func @transform_3(%arg0: i32, %arg1: memref<4xi32, #tpu.memory_space<smem>>) -> (i32, i32) {
    %c0_i32 = arith.constant 0 : i32
    %c0_i32_0 = arith.constant 0 : i32
    %c0_i32_1 = arith.constant 0 : i32
    return %c0_i32, %c0_i32_0 : i32, i32
  }
  func.func @transform_4(%arg0: i32, %arg1: memref<4xi32, #tpu.memory_space<smem>>) -> (i32, i32) {
    %c0_i32 = arith.constant 0 : i32
    %c0_i32_0 = arith.constant 0 : i32
    %c0_i32_1 = arith.constant 0 : i32
    return %c0_i32, %c0_i32_0 : i32, i32
  }
  func.func @transform_5(%arg0: i32, %arg1: memref<4xi32, #tpu.memory_space<smem>>) -> (i32, i32, i32) {
    %c0_i32 = arith.constant 0 : i32
    %c0_i32_0 = arith.constant 0 : i32
    %c0_i32_1 = arith.constant 0 : i32
    return %arg0, %c0_i32, %c0_i32_0 : i32, i32, i32
  }
  func.func @transform_6(%arg0: i32, %arg1: memref<4xi32, #tpu.memory_space<smem>>) -> (i32, i32, i32) {
    %c0_i32 = arith.constant 0 : i32
    %c0_i32_0 = arith.constant 0 : i32
    %c0_i32_1 = arith.constant 0 : i32
    return %arg0, %c0_i32, %c0_i32_0 : i32, i32, i32
  }
}

</mosaic_0001>

<llo_original>
// kernel: biatt_encoder_forward.4
$region0: #{biatt_encoder_forward.4}
  #allocation0 [shape = 'u32[]', space=smem, size = 0x4, offset = 0x4, fixed_abs, tag = 'smem constant byte address 0x4 - core index']
  #allocation1 [shape = 'u32[144,128]{1,0:T(1,128)}', space=vmem, size = 0x12000, scoped, tag = 'internal scratch']
  %s0 = inlined_call_operand.vmem [shape: f32[40,32], index: 0, kind: input, shape index: {}]
  %s1 = inlined_call_operand.vmem [shape: f32[32,96], index: 1, kind: input, shape index: {}]
  %s2 = inlined_call_operand.vmem [shape: f32[1,96], index: 2, kind: input, shape index: {}]
  %s3 = inlined_call_operand.vmem [shape: f32[40,96], index: 3, kind: output, shape index: {}]
  %s4 = sld [smem:[#allocation0]]
  $region22: #{biatt_encoder_forward.4} parent=0
    _
  %s6 = ssub.s32 1, %s4
  %s7 = scalar_select 0, %s6, %s4
  // Predicated region
  $region2: #{biatt_encoder_forward.4} parent=0 // pred_check
    _
  $region3: #{biatt_encoder_forward.4} parent=0 // pred_check_branch
    %9 = sbr.rel (0) target = $region5
  $region4: #{biatt_encoder_forward.4} parent=0 // pred_region
    _
  $region5: #{biatt_encoder_forward.4} parent=0 // pred_fallthru
    _
  // Predicated region
  $region6: #{biatt_encoder_forward.4} parent=0 // pred_check
    _
  $region7: #{biatt_encoder_forward.4} parent=0 // pred_check_branch
    %11 = sbr.rel (0) target = $region9
  $region8: #{biatt_encoder_forward.4} parent=0 // pred_region
    _
  $region9: #{biatt_encoder_forward.4} parent=0 // pred_fallthru
    _
  // Predicated region
  $region10: #{biatt_encoder_forward.4} parent=0 // pred_check
    _
  $region11: #{biatt_encoder_forward.4} parent=0 // pred_check_branch
    %13 = sbr.rel (0) target = $region13
  $region12: #{biatt_encoder_forward.4} parent=0 // pred_region
    _
  $region13: #{biatt_encoder_forward.4} parent=0 // pred_fallthru
    _
  %v14 = vld [vmem:[%s0] sm:$0xff]
  %v15 = vld [vmem:[%s0 + $0x8] sm:$0xff]
  %v16 = vld [vmem:[%s0 + $0x10] sm:$0xff]
  %v17 = vld [vmem:[%s0 + $0x18] sm:$0xff]
  %v18 = vld [vmem:[%s0 + $0x20] sm:$0xff]
  %v19 = vld [vmem:[%s1] sm:$0xff]
  %v20 = vld [vmem:[%s1 + $0x8] sm:$0xff]
  %v21 = vld [vmem:[%s1 + $0x10] sm:$0xff]
  %v22 = vld [vmem:[%s1 + $0x18] sm:$0xff]
  %v23 = vld [vmem:[%s2] sm:$0x1]
  %v25 = vlaneseq
  %v26 = vshrl.u32 %v25, 7
  %v27 = vsub.s32 0, %v26
  %v28 = vrot.slane %v23, %v27
  %vm30 = vcmask 261120
  %v32 = vsel %vm30, %v14, 0
  %v35 = vsel %vm30, %v15, 0
  %v38 = vsel %vm30, %v16, 0
  %v41 = vsel %vm30, %v17, 0
  %v44 = vsel %vm30, %v18, 0
  %46 = vmatprep.subr.mxu0 0.0
  %47 = vmatpush1.msra.mxu0 %v19
  %48 = vmatprep.subr.mxu0 0.0
  %49 = vmatpush1.msra.mxu0 %v20
  %50 = vmatprep.subr.mxu0 0.0
  %51 = vmatpush1.msra.mxu0 %v21
  %52 = vmatprep.subr.mxu0 0.0
  %53 = vmatpush1.msra.mxu0 %v22
  %54 = vmatprep.subr.mxu0 0.0
  %55 = vmatpush1.msra.mxu0 0.0
  %56 = vmatprep.subr.mxu0 0.0
  %57 = vmatpush1.msra.mxu0 0.0
  %58 = vmatprep.subr.mxu0 0.0
  %59 = vmatpush1.msra.mxu0 0.0
  %60 = vmatprep.subr.mxu0 0.0
  %61 = vmatpush1.msra.mxu0 0.0
  %62 = vmatprep.subr.mxu0 0.0
  %63 = vmatpush1.msra.mxu0 0.0
  %64 = vmatprep.subr.mxu0 0.0
  %65 = vmatpush1.msra.mxu0 0.0
  %66 = vmatprep.subr.mxu0 0.0
  %67 = vmatpush1.msra.mxu0 0.0
  %68 = vmatprep.subr.mxu0 0.0
  %69 = vmatpush1.msra.mxu0 0.0
  %70 = vmatprep.subr.mxu0 0.0
  %71 = vmatpush1.msra.mxu0 0.0
  %72 = vmatprep.subr.mxu0 0.0
  %73 = vmatpush1.msra.mxu0 0.0
  %74 = vmatprep.subr.mxu0 0.0
  %75 = vmatpush1.msra.mxu0 0.0
  %76 = vmatprep.subr.mxu0 0.0
  %77 = vmatpush1.msra.mxu0 0.0
  %78 = vmatprep.subr.mxu0 0.0
  %79 = vmatpush1.msra.mxu0 0.0
  %80 = vmatprep.subr.mxu0 0.0
  %81 = vmatpush1.msra.mxu0 0.0
  %82 = vmatprep.subr.mxu0 0.0
  %83 = vmatpush1.msra.mxu0 0.0
  %84 = vmatprep.subr.mxu0 0.0
  %85 = vmatpush1.msra.mxu0 0.0
  %86 = vmatprep.subr.mxu0 0.0
  %87 = vmatpush1.msra.mxu0 0.0
  %88 = vmatprep.subr.mxu0 0.0
  %89 = vmatpush1.msra.mxu0 0.0
  %90 = vmatprep.subr.mxu0 0.0
  %91 = vmatpush1.msra.mxu0 0.0
  %92 = vmatprep.subr.mxu0 0.0
  %93 = vmatpush1.msra.mxu0 0.0
  %94 = vmatprep.subr.mxu0 0.0
  %95 = vmatpush1.msra.mxu0 0.0
  %96 = vmatprep.subr.mxu0 0.0
  %97 = vmatpush1.msra.mxu0 0.0
  %98 = vmatprep.subr.mxu0 0.0
  %99 = vmatpush1.msra.mxu0 0.0
  %100 = vmatprep.subr.mxu0 0.0
  %101 = vmatpush1.msra.mxu0 0.0
  %102 = vmatprep.subr.mxu0 0.0
  %103 = vmatpush1.msra.mxu0 0.0
  %104 = vmatprep.subr.mxu0 0.0
  %105 = vmatpush1.msra.mxu0 0.0
  %106 = vmatprep.subr.mxu0 0.0
  %107 = vmatpush1.msra.mxu0 0.0
  %108 = vmatprep.subr.mxu0 0.0
  %109 = vmatpush1.msra.mxu0 0.0
  %110 = vmatprep.mubr.f32.mxu0 0.0
  %111 = vmatmul.mubr.f32.gmra.mrb[0].mxu0 %v32
  %v112 = vpop.f32.mrb[0].mxu0
  %v113 = vadd.f32 %v28, %v112
  %v114 = vpop.f32.mrb[0].mxu0
  %115 = vmatprep.mubr.f32.mxu0 0.0
  %116 = vmatmul.mubr.f32.gmra.mrb[0].mxu0 %v35
  %v117 = vpop.f32.mrb[0].mxu0
  %v118 = vadd.f32 %v28, %v117
  %v119 = vpop.f32.mrb[0].mxu0
  %120 = vmatprep.mubr.f32.mxu0 0.0
  %121 = vmatmul.mubr.f32.gmra.mrb[0].mxu0 %v38
  %v122 = vpop.f32.mrb[0].mxu0
  %v123 = vadd.f32 %v28, %v122
  %v124 = vpop.f32.mrb[0].mxu0
  %125 = vmatprep.mubr.f32.mxu0 0.0
  %126 = vmatmul.mubr.f32.gmra.mrb[0].mxu0 %v41
  %v127 = vpop.f32.mrb[0].mxu0
  %v128 = vadd.f32 %v28, %v127
  %v129 = vpop.f32.mrb[0].mxu0
  %130 = vmatprep.mubr.f32.mxu0 0.0
  %131 = vmatmul.mubr.f32.gmra.mrb[0].mxu0 %v44
  %v132 = vpop.f32.mrb[0].mxu0
  %v133 = vadd.f32 %v28, %v132
  %v134 = vpop.f32.mrb[0].mxu0
  %135 = vdwg.mxu0
  %vm136 = vcmask 785408
  %137 = vst.msk [vmem:[%s3] sm:$0xff] %vm136, %v113
  %138 = vst.msk [vmem:[%s3 + $0x8] sm:$0xff] %vm136, %v118
  %139 = vst.msk [vmem:[%s3 + $0x10] sm:$0xff] %vm136, %v123
  %140 = vst.msk [vmem:[%s3 + $0x18] sm:$0xff] %vm136, %v128
  %141 = vst.msk [vmem:[%s3 + $0x20] sm:$0xff] %vm136, %v133
  // Predicated region
  $region14: #{biatt_encoder_forward.4} parent=0 // pred_check
    _
  $region15: #{biatt_encoder_forward.4} parent=0 // pred_check_branch
    %143 = sbr.rel (0) target = $region17
  $region16: #{biatt_encoder_forward.4} parent=0 // pred_region
    _
  $region17: #{biatt_encoder_forward.4} parent=0 // pred_fallthru
    _
  // Predicated region
  $region18: #{biatt_encoder_forward.4} parent=0 // pred_check
    _
  $region19: #{biatt_encoder_forward.4} parent=0 // pred_check_branch
    %145 = sbr.rel (0) target = $region21
  $region20: #{biatt_encoder_forward.4} parent=0 // pred_region
    _
  $region21: #{biatt_encoder_forward.4} parent=0 // pred_fallthru
    _

// kernel: biatt_encoder_forward.7
$region0: #{biatt_encoder_forward.7}
  #allocation0 [shape = 'u32[]', space=smem, size = 0x4, offset = 0x4, fixed_abs, tag = 'smem constant byte address 0x4 - core index']
  #allocation1 [shape = 'u32[144,128]{1,0:T(1,128)}', space=vmem, size = 0x12000, scoped, tag = 'internal scratch']
  %s0 = inlined_call_operand.vmem [shape: f32[4,32], index: 0, kind: input, shape index: {}]
  %s1 = inlined_call_operand.vmem [shape: f32[32,16], index: 1, kind: input, shape index: {}]
  %s2 = inlined_call_operand.vmem [shape: f32[1,16], index: 2, kind: input, shape index: {}]
  %s3 = inlined_call_operand.hbm [shape: f32[4,16], index: 3, kind: output, shape index: {}]
  %s4 = sld [smem:[#allocation0]]
  $region22: #{biatt_encoder_forward.7} parent=0
    _
  %s6 = ssub.s32 1, %s4
  %s7 = scalar_select 0, %s6, %s4
  $region1: #{biatt_encoder_forward.7} parent=0
    #allocation2 [shape = 'u8[2048]{0}', space=vmem, size = 0x800, scoped, tag = 'output window, operand 0, single buffered']
    #allocation3 [shape = 's32[1]{0}', space=sflag, size = 0x4, scoped, tag = 'scoped memory for biatt_encoder_forward.7']
    %8 = vsyncpa [#allocation3], 0
    // Predicated region
    $region2: #{biatt_encoder_forward.7} parent=1 // pred_check
      _
    $region3: #{biatt_encoder_forward.7} parent=1 // pred_check_branch
      %10 = sbr.rel (0) target = $region5
    $region4: #{biatt_encoder_forward.7} parent=1 // pred_region
      _
    $region5: #{biatt_encoder_forward.7} parent=1 // pred_fallthru
      _
    // Predicated region
    $region6: #{biatt_encoder_forward.7} parent=1 // pred_check
      _
    $region7: #{biatt_encoder_forward.7} parent=1 // pred_check_branch
      %12 = sbr.rel (0) target = $region9
    $region8: #{biatt_encoder_forward.7} parent=1 // pred_region
      _
    $region9: #{biatt_encoder_forward.7} parent=1 // pred_fallthru
      _
    // Predicated region
    $region10: #{biatt_encoder_forward.7} parent=1 // pred_check
      _
    $region11: #{biatt_encoder_forward.7} parent=1 // pred_check_branch
      %14 = sbr.rel (0) target = $region13
    $region12: #{biatt_encoder_forward.7} parent=1 // pred_region
      _
    $region13: #{biatt_encoder_forward.7} parent=1 // pred_fallthru
      _
    %v15 = vld [vmem:[%s0] sm:$0xf]
    %v16 = vld [vmem:[%s1] sm:$0xff]
    %v17 = vld [vmem:[%s1 + $0x8] sm:$0xff]
    %v18 = vld [vmem:[%s1 + $0x10] sm:$0xff]
    %v19 = vld [vmem:[%s1 + $0x18] sm:$0xff]
    %v20 = vld [vmem:[%s2] sm:$0x1]
    %v22 = vlaneseq
    %v23 = vshrl.u32 %v22, 7
    %v24 = vsub.s32 0, %v23
    %v25 = vrot.slane %v20, %v24
    %vm27 = vcmask 261120
    %v29 = vsel %vm27, %v15, 0
    %31 = vmatprep.subr.mxu0 0.0
    %32 = vmatpush1.msra.mxu0 %v16
    %33 = vmatprep.subr.mxu0 0.0
    %34 = vmatpush1.msra.mxu0 %v17
    %35 = vmatprep.subr.mxu0 0.0
    %36 = vmatpush1.msra.mxu0 %v18
    %37 = vmatprep.subr.mxu0 0.0
    %38 = vmatpush1.msra.mxu0 %v19
    %39 = vmatprep.subr.mxu0 0.0
    %40 = vmatpush1.msra.mxu0 0.0
    %41 = vmatprep.subr.mxu0 0.0
    %42 = vmatpush1.msra.mxu0 0.0
    %43 = vmatprep.subr.mxu0 0.0
    %44 = vmatpush1.msra.mxu0 0.0
    %45 = vmatprep.subr.mxu0 0.0
    %46 = vmatpush1.msra.mxu0 0.0
    %47 = vmatprep.subr.mxu0 0.0
    %48 = vmatpush1.msra.mxu0 0.0
    %49 = vmatprep.subr.mxu0 0.0
    %50 = vmatpush1.msra.mxu0 0.0
    %51 = vmatprep.subr.mxu0 0.0
    %52 = vmatpush1.msra.mxu0 0.0
    %53 = vmatprep.subr.mxu0 0.0
    %54 = vmatpush1.msra.mxu0 0.0
    %55 = vmatprep.subr.mxu0 0.0
    %56 = vmatpush1.msra.mxu0 0.0
    %57 = vmatprep.subr.mxu0 0.0
    %58 = vmatpush1.msra.mxu0 0.0
    %59 = vmatprep.subr.mxu0 0.0
    %60 = vmatpush1.msra.mxu0 0.0
    %61 = vmatprep.subr.mxu0 0.0
    %62 = vmatpush1.msra.mxu0 0.0
    %63 = vmatprep.subr.mxu0 0.0
    %64 = vmatpush1.msra.mxu0 0.0
    %65 = vmatprep.subr.mxu0 0.0
    %66 = vmatpush1.msra.mxu0 0.0
    %67 = vmatprep.subr.mxu0 0.0
    %68 = vmatpush1.msra.mxu0 0.0
    %69 = vmatprep.subr.mxu0 0.0
    %70 = vmatpush1.msra.mxu0 0.0
    %71 = vmatprep.subr.mxu0 0.0
    %72 = vmatpush1.msra.mxu0 0.0
    %73 = vmatprep.subr.mxu0 0.0
    %74 = vmatpush1.msra.mxu0 0.0
    %75 = vmatprep.subr.mxu0 0.0
    %76 = vmatpush1.msra.mxu0 0.0
    %77 = vmatprep.subr.mxu0 0.0
    %78 = vmatpush1.msra.mxu0 0.0
    %79 = vmatprep.subr.mxu0 0.0
    %80 = vmatpush1.msra.mxu0 0.0
    %81 = vmatprep.subr.mxu0 0.0
    %82 = vmatpush1.msra.mxu0 0.0
    %83 = vmatprep.subr.mxu0 0.0
    %84 = vmatpush1.msra.mxu0 0.0
    %85 = vmatprep.subr.mxu0 0.0
    %86 = vmatpush1.msra.mxu0 0.0
    %87 = vmatprep.subr.mxu0 0.0
    %88 = vmatpush1.msra.mxu0 0.0
    %89 = vmatprep.subr.mxu0 0.0
    %90 = vmatpush1.msra.mxu0 0.0
    %91 = vmatprep.subr.mxu0 0.0
    %92 = vmatpush1.msra.mxu0 0.0
    %93 = vmatprep.subr.mxu0 0.0
    %94 = vmatpush1.msra.mxu0 0.0
    %95 = vmatprep.mubr.f32.mxu0 0.0
    %96 = vmatmul.mubr.f32.gmra.mrb[0].mxu0 %v29
    %v97 = vpop.f32.mrb[0].mxu0
    %v98 = vadd.f32 %v25, %v97
    %v99 = vpop.f32.mrb[0].mxu0
    %100 = vdwg.mxu0
    %vm101 = vcmask 125952
    %102 = vst.msk [vmem:[#allocation2] sm:$0xf] %vm101, %v98
    // Predicated region
    $region14: #{biatt_encoder_forward.7} parent=1 // pred_check
      _
    $region15: #{biatt_encoder_forward.7} parent=1 // pred_check_branch
      %104 = sbr.rel (0) target = $region17
    $region16: #{biatt_encoder_forward.7} parent=1 // pred_region
      %s106 = ssub.s32 64, 64
      %107 = vsyncadd [#allocation3], %s106
      %s109 = sshll.u32 [#allocation2], 4
      %s110 = int_to_ptr.vmem [resolvable:$true] %s109
      %112 = dma.vmem_to_hbm [thread:$0]  %s110, 64, %s3, [#allocation3]
    $region17: #{biatt_encoder_forward.7} parent=1 // pred_fallthru
      _
    // Predicated region
    $region18: #{biatt_encoder_forward.7} parent=1 // pred_check
      _
    $region19: #{biatt_encoder_forward.7} parent=1 // pred_check_branch
      %114 = sbr.rel (0) target = $region21
    $region20: #{biatt_encoder_forward.7} parent=1 // pred_region
      %115 = dma.done [#allocation3], 64
    $region21: #{biatt_encoder_forward.7} parent=1 // pred_fallthru
      _
    %116 = vsyncpa [#allocation3], 1

// kernel: biatt_encoder_forward.6
$region0: #{biatt_encoder_forward.6}
  #allocation0 [shape = 'u32[]', space=smem, size = 0x4, offset = 0x4, fixed_abs, tag = 'smem constant byte address 0x4 - core index']
  #allocation1 [shape = 'u32[144,128]{1,0:T(1,128)}', space=vmem, size = 0x12000, scoped, tag = 'internal scratch']
  #allocation2 [shape = 's32[1]{0}', space=sflag, size = 0x4, scoped, tag = 'scoped memory for biatt_encoder_forward.6']
  #allocation3 [shape = 'u8[512]{0}', space=smem, size = 0x200, scoped, tag = 'prefetched SMEM operand 0']
  %s0 = inlined_call_operand.vmem [shape: s32[4], index: 0, kind: input, shape index: {}]
  %s1 = inlined_call_operand.vmem [shape: f32[2,10,32], index: 1, kind: input, shape index: {}]
  %s2 = inlined_call_operand.vmem [shape: f32[2,8,32], index: 2, kind: input, shape index: {}]
  %s3 = inlined_call_operand.vmem [shape: f32[32,32], index: 3, kind: input, shape index: {}]
  %s4 = inlined_call_operand.vmem [shape: f32[32,32], index: 4, kind: input, shape index: {}]
  %s5 = inlined_call_operand.vmem [shape: f32[1,32], index: 5, kind: input, shape index: {}]
  %s6 = inlined_call_operand.vmem [shape: f32[2,10,32], index: 6, kind: output, shape index: {0}]
  %s7 = inlined_call_operand.vmem [shape: f32[2,8,32], index: 7, kind: output, shape index: {1}]
  %8 = xla_tuple %s6, %s7
  %s9 = sld [smem:[#allocation0]]
  $region61: #{biatt_encoder_forward.6} parent=0
    _
  %s11 = ssub.s32 1, %s9
  %s12 = scalar_select 0, %s11, %s9
  %s13 = sshll.u32 %s0, 4
  %s14 = int_to_ptr.vmem [resolvable:$true] %s13
  %16 = dma.vmem_to_smem %s14, 16, [#allocation3], [#allocation2]
  %17 = dma.done [#allocation2], 16
  %18 = sfence
  loop: start=0, step=1, limit=4
  $region2: #{biatt_encoder_forward.6} parent=0 // loop_pre_header
    _
  $region3: #{biatt_encoder_forward.6} parent=0 // loop_header
    %s20 = sphi 0, %s24
    %p21 = scmp.ge.s32.totalorder %s20, 4
    %s30 = sphi 0, %s32
    %s33 = sphi 0, %s30
    %s34 = sphi 0, %s33
    %s50 = sphi 0, %s34
    %s56 = sphi 0, %s58
    %s59 = sphi 0, %s56
    %s60 = sphi 0, %s59
    %s76 = sphi 0, %s60
    %s80 = sphi 0, %s80
    %s82 = sphi 0, %s80
    %s83 = sphi 0, %s82
    %s97 = sphi 0, %s83
    %s101 = sphi 0, %s101
    %s103 = sphi 0, %s101
    %s104 = sphi 0, %s103
    %s118 = sphi 0, %s104
    %s122 = sphi 0, %s122
    %s124 = sphi 0, %s122
    %s125 = sphi 0, %s124
    %s139 = sphi 0, %s125
    %s145 = sphi 0, %s147
    %s148 = sphi 0, %s145
    %s149 = sphi 0, %s148
    %s165 = sphi 0, %s149
    %s171 = sphi 0, %s173
    %s174 = sphi 0, %s171
    %s175 = sphi 0, %s174
    %s191 = sphi 0, %s175
  $region4: #{biatt_encoder_forward.6} parent=0 // loop_header_branch
    %23 = sbr.rel (%p21) target = $region8
  $region5: #{biatt_encoder_forward.6} parent=0 // loop_body
    %s25 = ssub.s32 %s20, 1
    %s26 = ssub.s32 %s20, 2
    %s27 = sadd.s32 %s20, 1
    %s28 = ssub.s32 %s20, %s27
    %p29 = scmp.eq.s32.totalorder %s28, 0
    %s31 = sadd.s32 %s30, 1
    %s32 = scalar_select %p29, %s30, %s31
    %p35 = pneg %p29
    %p36 = scmp.eq.s32.totalorder %s20, 1
    %p37 = por %p35, %p36
    %p38 = scmp.ne.s32.totalorder %s30, %s33
    %p39 = scmp.eq.s32.totalorder %s20, 0
    %p40 = por %p38, %p39
    %p41 = scmp.ne.s32.totalorder %s30, %s33
    %p42 = scmp.eq.s32.totalorder %s25, 1
    %p43 = por %p41, %p42
    %p44 = scmp.ne.s32.totalorder %s33, %s34
    %p45 = scmp.eq.s32.totalorder %s25, 0
    %p46 = por %p44, %p45
    %p47 = scmp.ne.s32.totalorder %s33, %s34
    %p48 = scmp.eq.s32.totalorder %s26, 1
    %p49 = por %p47, %p48
    %p51 = scmp.ne.s32.totalorder %s34, %s50
    %p52 = scmp.eq.s32.totalorder %s26, 0
    %p53 = por %p51, %p52
    %s54 = ssub.s32 %s20, %s27
    %p55 = scmp.eq.s32.totalorder %s54, 0
    %s57 = sadd.s32 %s56, 1
    %s58 = scalar_select %p55, %s56, %s57
    %p61 = pneg %p55
    %p62 = scmp.eq.s32.totalorder %s20, 1
    %p63 = por %p61, %p62
    %p64 = scmp.ne.s32.totalorder %s56, %s59
    %p65 = scmp.eq.s32.totalorder %s20, 0
    %p66 = por %p64, %p65
    %p67 = scmp.ne.s32.totalorder %s56, %s59
    %p68 = scmp.eq.s32.totalorder %s25, 1
    %p69 = por %p67, %p68
    %p70 = scmp.ne.s32.totalorder %s59, %s60
    %p71 = scmp.eq.s32.totalorder %s25, 0
    %p72 = por %p70, %p71
    %p73 = scmp.ne.s32.totalorder %s59, %s60
    %p74 = scmp.eq.s32.totalorder %s26, 1
    %p75 = por %p73, %p74
    %p77 = scmp.ne.s32.totalorder %s60, %s76
    %p78 = scmp.eq.s32.totalorder %s26, 0
    %p79 = por %p77, %p78
    %s81 = sadd.s32 %s80, 1
    %p84 = scmp.eq.s32.totalorder %s20, 1
    %p85 = scmp.ne.s32.totalorder %s80, %s82
    %p86 = scmp.eq.s32.totalorder %s20, 0
    %p87 = por %p85, %p86
    %p88 = scmp.ne.s32.totalorder %s80, %s82
    %p89 = scmp.eq.s32.totalorder %s25, 1
    %p90 = por %p88, %p89
    %p91 = scmp.ne.s32.totalorder %s82, %s83
    %p92 = scmp.eq.s32.totalorder %s25, 0
    %p93 = por %p91, %p92
    %p94 = scmp.ne.s32.totalorder %s82, %s83
    %p95 = scmp.eq.s32.totalorder %s26, 1
    %p96 = por %p94, %p95
    %p98 = scmp.ne.s32.totalorder %s83, %s97
    %p99 = scmp.eq.s32.totalorder %s26, 0
    %p100 = por %p98, %p99
    %s102 = sadd.s32 %s101, 1
    %p105 = scmp.eq.s32.totalorder %s20, 1
    %p106 = scmp.ne.s32.totalorder %s101, %s103
    %p107 = scmp.eq.s32.totalorder %s20, 0
    %p108 = por %p106, %p107
    %p109 = scmp.ne.s32.totalorder %s101, %s103
    %p110 = scmp.eq.s32.totalorder %s25, 1
    %p111 = por %p109, %p110
    %p112 = scmp.ne.s32.totalorder %s103, %s104
    %p113 = scmp.eq.s32.totalorder %s25, 0
    %p114 = por %p112, %p113
    %p115 = scmp.ne.s32.totalorder %s103, %s104
    %p116 = scmp.eq.s32.totalorder %s26, 1
    %p117 = por %p115, %p116
    %p119 = scmp.ne.s32.totalorder %s104, %s118
    %p120 = scmp.eq.s32.totalorder %s26, 0
    %p121 = por %p119, %p120
    %s123 = sadd.s32 %s122, 1
    %p126 = scmp.eq.s32.totalorder %s20, 1
    %p127 = scmp.ne.s32.totalorder %s122, %s124
    %p128 = scmp.eq.s32.totalorder %s20, 0
    %p129 = por %p127, %p128
    %p130 = scmp.ne.s32.totalorder %s122, %s124
    %p131 = scmp.eq.s32.totalorder %s25, 1
    %p132 = por %p130, %p131
    %p133 = scmp.ne.s32.totalorder %s124, %s125
    %p134 = scmp.eq.s32.totalorder %s25, 0
    %p135 = por %p133, %p134
    %p136 = scmp.ne.s32.totalorder %s124, %s125
    %p137 = scmp.eq.s32.totalorder %s26, 1
    %p138 = por %p136, %p137
    %p140 = scmp.ne.s32.totalorder %s125, %s139
    %p141 = scmp.eq.s32.totalorder %s26, 0
    %p142 = por %p140, %p141
    %s143 = ssub.s32 %s20, %s27
    %p144 = scmp.eq.s32.totalorder %s143, 0
    %s146 = sadd.s32 %s145, 1
    %s147 = scalar_select %p144, %s145, %s146
    %p150 = pneg %p144
    %p151 = scmp.eq.s32.totalorder %s20, 1
    %p152 = por %p150, %p151
    %p153 = scmp.ne.s32.totalorder %s145, %s148
    %p154 = scmp.eq.s32.totalorder %s20, 0
    %p155 = por %p153, %p154
    %p156 = scmp.ne.s32.totalorder %s145, %s148
    %p157 = scmp.eq.s32.totalorder %s25, 1
    %p158 = por %p156, %p157
    %p159 = scmp.ne.s32.totalorder %s148, %s149
    %p160 = scmp.eq.s32.totalorder %s25, 0
    %p161 = por %p159, %p160
    %p162 = scmp.ne.s32.totalorder %s148, %s149
    %p163 = scmp.eq.s32.totalorder %s26, 1
    %p164 = por %p162, %p163
    %p166 = scmp.ne.s32.totalorder %s149, %s165
    %p167 = scmp.eq.s32.totalorder %s26, 0
    %p168 = por %p166, %p167
    %s169 = ssub.s32 %s20, %s27
    %p170 = scmp.eq.s32.totalorder %s169, 0
    %s172 = sadd.s32 %s171, 1
    %s173 = scalar_select %p170, %s171, %s172
    %p176 = pneg %p170
    %p177 = scmp.eq.s32.totalorder %s20, 1
    %p178 = por %p176, %p177
    %p179 = scmp.ne.s32.totalorder %s171, %s174
    %p180 = scmp.eq.s32.totalorder %s20, 0
    %p181 = por %p179, %p180
    %p182 = scmp.ne.s32.totalorder %s171, %s174
    %p183 = scmp.eq.s32.totalorder %s25, 1
    %p184 = por %p182, %p183
    %p185 = scmp.ne.s32.totalorder %s174, %s175
    %p186 = scmp.eq.s32.totalorder %s25, 0
    %p187 = por %p185, %p186
    %p188 = scmp.ne.s32.totalorder %s174, %s175
    %p189 = scmp.eq.s32.totalorder %s26, 1
    %p190 = por %p188, %p189
    %p192 = scmp.ne.s32.totalorder %s175, %s191
    %p193 = scmp.eq.s32.totalorder %s26, 0
    %p194 = por %p192, %p193
    %p195 = scmp.le.s32.totalorder 1, %s20
    %p196 = scmp.lt.s32.totalorder %s20, 3
    %p197 = pnand %p195, %p196
    %p198 = pneg %p197
    // Predicated region
    $region9: #{biatt_encoder_forward.6} parent=5 // pred_check
      _
    $region10: #{biatt_encoder_forward.6} parent=5 // pred_check_branch
      %200 = sbr.rel (%p197) target = $region12
    $region11: #{biatt_encoder_forward.6} parent=5 // pred_region
      %s201 = ssub.s32 %s20, 1
      // Predicated region
      $region13: #{biatt_encoder_forward.6} parent=11 // pred_check
        %p202 = pneg %p93
      $region14: #{biatt_encoder_forward.6} parent=11 // pred_check_branch
        %204 = sbr.rel (%p202) target = $region16
      $region15: #{biatt_encoder_forward.6} parent=11 // pred_region
        _
      $region16: #{biatt_encoder_forward.6} parent=11 // pred_fallthru
        _
      // Predicated region
      $region17: #{biatt_encoder_forward.6} parent=11 // pred_check
        %p205 = pneg %p114
      $region18: #{biatt_encoder_forward.6} parent=11 // pred_check_branch
        %207 = sbr.rel (%p205) target = $region20
      $region19: #{biatt_encoder_forward.6} parent=11 // pred_region
        _
      $region20: #{biatt_encoder_forward.6} parent=11 // pred_fallthru
        _
      // Predicated region
      $region21: #{biatt_encoder_forward.6} parent=11 // pred_check
        %p208 = pneg %p135
      $region22: #{biatt_encoder_forward.6} parent=11 // pred_check_branch
        %210 = sbr.rel (%p208) target = $region24
      $region23: #{biatt_encoder_forward.6} parent=11 // pred_region
        _
      $region24: #{biatt_encoder_forward.6} parent=11 // pred_fallthru
        _
    $region12: #{biatt_encoder_forward.6} parent=5 // pred_fallthru
      _
    %p211 = scmp.lt.s32.totalorder %s20, 2
    // Predicated region
    $region25: #{biatt_encoder_forward.6} parent=5 // pred_check
      %p212 = pneg %p211
    $region26: #{biatt_encoder_forward.6} parent=5 // pred_check_branch
      %214 = sbr.rel (%p212) target = $region28
    $region27: #{biatt_encoder_forward.6} parent=5 // pred_region
      // Predicated region
      $region29: #{biatt_encoder_forward.6} parent=27 // pred_check
        %p215 = pneg %p40
      $region30: #{biatt_encoder_forward.6} parent=27 // pred_check_branch
        %217 = sbr.rel (%p215) target = $region32
      $region31: #{biatt_encoder_forward.6} parent=27 // pred_region
        %p218 = scmp.lt.s32.totalorder %s20, 1
        %s219 = scalar_select %p218, %s20, 1
        %s220 = smul.addr %s219, 2
        %s221 = smul.addr %s220, 8
        %s222 = scalar_lea.vmem %s1, %s221
      $region32: #{biatt_encoder_forward.6} parent=27 // pred_fallthru
        _
      // Predicated region
      $region33: #{biatt_encoder_forward.6} parent=27 // pred_check
        %p223 = pneg %p66
      $region34: #{biatt_encoder_forward.6} parent=27 // pred_check_branch
        %225 = sbr.rel (%p223) target = $region36
      $region35: #{biatt_encoder_forward.6} parent=27 // pred_region
        %p226 = scmp.lt.s32.totalorder %s20, 1
        %s227 = scalar_select %p226, %s20, 1
        %s228 = smul.addr %s227, 8
        %s229 = scalar_lea.vmem %s2, %s228
      $region36: #{biatt_encoder_forward.6} parent=27 // pred_fallthru
        _
    $region28: #{biatt_encoder_forward.6} parent=5 // pred_fallthru
      _
    %p230 = scmp.le.s32.totalorder 1, %s20
    %p231 = scmp.lt.s32.totalorder %s20, 3
    %p232 = pnand %p230, %p231
    %p233 = pneg %p232
    // Predicated region
    $region37: #{biatt_encoder_forward.6} parent=5 // pred_check
      _
    $region38: #{biatt_encoder_forward.6} parent=5 // pred_check_branch
      %235 = sbr.rel (%p232) target = $region40
    $region39: #{biatt_encoder_forward.6} parent=5 // pred_region
      %s236 = ssub.s32 %s20, 1
      %p237 = scmp.lt.s32.totalorder %s25, 1
      %s238 = scalar_select %p237, %s25, 1
      %s239 = smul.addr %s238, 2
      %s240 = smul.addr %s239, 8
      %s241 = scalar_lea.vmem %s1, %s240
      %p242 = pneg %p46
      %p243 = pneg %p43
      %p244 = scmp.lt.s32.totalorder %s25, 1
      %s245 = scalar_select %p244, %s25, 1
      %s246 = smul.addr %s245, 8
      %s247 = scalar_lea.vmem %s2, %s246
      %p248 = pneg %p72
      %p249 = pneg %p69
      %p250 = pneg %p93
      %p251 = pneg %p90
      %p252 = pneg %p114
      %p253 = pneg %p111
      %p254 = pneg %p135
      %p255 = pneg %p132
      %p256 = pneg %p161
      %p257 = pneg %p158
      %p258 = scmp.lt.s32.totalorder %s25, 1
      %s259 = scalar_select %p258, %s25, 1
      %s260 = smul.addr %s259, 2
      %s261 = smul.addr %s260, 8
      %s262 = scalar_lea.vmem %s6, %s261
      %p263 = pneg %p187
      %p264 = pneg %p184
      %p265 = scmp.lt.s32.totalorder %s25, 1
      %s266 = scalar_select %p265, %s25, 1
      %s267 = smul.addr %s266, 8
      %s268 = scalar_lea.vmem %s7, %s267
      %p269 = scmp.lt.s32.totalorder %s25, 1
      %s270 = scalar_select %p269, %s25, 1
      %s271 = smul.addr %s270, 2
      %s272 = smul.addr %s271, 8
      %s273 = scalar_lea.vmem %s1, %s272
      %p274 = scmp.lt.s32.totalorder %s25, 1
      %s275 = scalar_select %p274, %s25, 1
      %s276 = smul.addr %s275, 8
      %s277 = scalar_lea.vmem %s2, %s276
      %p278 = scmp.lt.s32.totalorder %s25, 1
      %s279 = scalar_select %p278, %s25, 1
      %s280 = smul.addr %s279, 2
      %s281 = smul.addr %s280, 8
      %s282 = scalar_lea.vmem %s6, %s281
      %p283 = scmp.lt.s32.totalorder %s25, 1
      %s284 = scalar_select %p283, %s25, 1
      %s285 = smul.addr %s284, 8
      %s286 = scalar_lea.vmem %s7, %s285
      %v287 = vld [vmem:[%s273] sm:$0xff]
      %v288 = vld [vmem:[%s273 + $0x8] sm:$0x3]
      %v289 = vld [vmem:[%s277] sm:$0xff]
      %s290 = sld [smem:[#allocation3 + %s25]]
      %s291 = sadd.s32 %s25, 2
      %s292 = sld [smem:[#allocation3 + %s291]]
      %vm293 = vcmask 261120
      %v295 = vsel %vm293, %v287, 0
      %v298 = vsel %vm293, %v288, 0
      %v301 = vsel %vm293, %v289, 0
      %303 = vmatprep.subr.mxu0 0.0
      %304 = vmatpush1.xpose.msra.mxu0 %v301
      %305 = vmatprep.subr.mxu0 0.0
      %306 = vmatpush1.xpose.msra.mxu0 0.0
      %307 = vmatprep.subr.mxu0 0.0
      %308 = vmatpush1.xpose.msra.mxu0 0.0
      %309 = vmatprep.subr.mxu0 0.0
      %310 = vmatpush1.xpose.msra.mxu0 0.0
      %311 = vmatprep.subr.mxu0 0.0
      %312 = vmatpush1.xpose.msra.mxu0 0.0
      %313 = vmatprep.subr.mxu0 0.0
      %314 = vmatpush1.xpose.msra.mxu0 0.0
      %315 = vmatprep.subr.mxu0 0.0
      %316 = vmatpush1.xpose.msra.mxu0 0.0
      %317 = vmatprep.subr.mxu0 0.0
      %318 = vmatpush1.xpose.msra.mxu0 0.0
      %319 = vmatprep.subr.mxu0 0.0
      %320 = vmatpush1.xpose.msra.mxu0 0.0
      %321 = vmatprep.subr.mxu0 0.0
      %322 = vmatpush1.xpose.msra.mxu0 0.0
      %323 = vmatprep.subr.mxu0 0.0
      %324 = vmatpush1.xpose.msra.mxu0 0.0
      %325 = vmatprep.subr.mxu0 0.0
      %326 = vmatpush1.xpose.msra.mxu0 0.0
      %327 = vmatprep.subr.mxu0 0.0
      %328 = vmatpush1.xpose.msra.mxu0 0.0
      %329 = vmatprep.subr.mxu0 0.0
      %330 = vmatpush1.xpose.msra.mxu0 0.0
      %331 = vmatprep.subr.mxu0 0.0
      %332 = vmatpush1.xpose.msra.mxu0 0.0
      %333 = vmatprep.subr.mxu0 0.0
      %334 = vmatpush1.xpose.msra.mxu0 0.0
      %335 = vmatprep.subr.mxu0 0.0
      %336 = vmatpush1.xpose.msra.mxu0 0.0
      %337 = vmatprep.subr.mxu0 0.0
      %338 = vmatpush1.xpose.msra.mxu0 0.0
      %339 = vmatprep.subr.mxu0 0.0
      %340 = vmatpush1.xpose.msra.mxu0 0.0
      %341 = vmatprep.subr.mxu0 0.0
      %342 = vmatpush1.xpose.msra.mxu0 0.0
      %343 = vmatprep.subr.mxu0 0.0
      %344 = vmatpush1.xpose.msra.mxu0 0.0
      %345 = vmatprep.subr.mxu0 0.0
      %346 = vmatpush1.xpose.msra.mxu0 0.0
      %347 = vmatprep.subr.mxu0 0.0
      %348 = vmatpush1.xpose.msra.mxu0 0.0
      %349 = vmatprep.subr.mxu0 0.0
      %350 = vmatpush1.xpose.msra.mxu0 0.0
      %351 = vmatprep.subr.mxu0 0.0
      %352 = vmatpush1.xpose.msra.mxu0 0.0
      %353 = vmatprep.subr.mxu0 0.0
      %354 = vmatpush1.xpose.msra.mxu0 0.0
      %355 = vmatprep.subr.mxu0 0.0
      %356 = vmatpush1.xpose.msra.mxu0 0.0
      %357 = vmatprep.subr.mxu0 0.0
      %358 = vmatpush1.xpose.msra.mxu0 0.0
      %359 = vmatprep.subr.mxu0 0.0
      %360 = vmatpush1.xpose.msra.mxu0 0.0
      %361 = vmatprep.subr.mxu0 0.0
      %362 = vmatpush1.xpose.msra.mxu0 0.0
      %363 = vmatprep.subr.mxu0 0.0
      %364 = vmatpush1.xpose.msra.mxu0 0.0
      %365 = vmatprep.subr.mxu0 0.0
      %366 = vmatpush1.xpose.msra.mxu0 0.0
      %367 = vmatprep.mubr.f32.mxu0 0.0
      %368 = vmatmul.mubr.f32.gmra.mrb[0].mxu0 %v295
      %v369 = vpop.f32.mrb[0].mxu0
      %v370 = vadd.f32 0.0, %v369
      %v371 = vpop.f32.mrb[0].mxu0
      %372 = vmatprep.mubr.f32.mxu0 0.0
      %373 = vmatmul.mubr.f32.gmra.mrb[0].mxu0 %v298
      %v374 = vpop.f32.mrb[0].mxu0
      %v375 = vadd.f32 0.0, %v374
      %v376 = vpop.f32.mrb[0].mxu0
      %377 = vdwg.mxu0
      %v378 = vlaneseq
      %v379 = vand.u32 %v378, 127
      %v380 = vstv %s292
      %vm381 = vcmp.lt.s32.totalorder %v379, %v380
      %v382 = vsel %vm381, %v370, -1e+30
      %v383 = vsel %vm381, %v375, -1e+30
      %vm384 = vcmask 64512
      %v385 = vsel %vm384, %v382, -inf
      %386 = vmax.xlane.f32.xlu0 %v385
      %v387 = vpop.xlane.xlu0 %386
      %vm388 = vcmask 58368
      %v389 = vsel %vm388, %v383, -inf
      %390 = vmax.xlane.f32.xlu0 %v389
      %v391 = vpop.xlane.xlu0 %390
      %v392 = vsub.f32 %v382, %v387
      %v393 = vsub.f32 %v383, %v391
      %v394 = vmul.f32 %v392, 1.442695
      %v395 = vpow.pop %v394
      %v396 = vmul.f32 %v393, 1.442695
      %v397 = vpow.pop %v396
      %v398 = vsel %vm384, %v395, 0.0
      %399 = vadd.xlane.f32.xlu0 %v398
      %v400 = vpop.xlane.xlu0 %399
      %v401 = vsel %vm388, %v397, 0.0
      %402 = vadd.xlane.f32.xlu0 %v401
      %v403 = vpop.xlane.xlu0 %402
      %v404 = vrcp.pop %v400
      %v405 = vmul.f32 %v395, %v404
      %v406 = vrcp.pop %v403
      %v407 = vmul.f32 %v397, %v406
      %v409 = vsel %vm384, %v405, 0
      %v412 = vsel %vm384, %v407, 0
      %414 = vmatprep.subr.mxu0 0.0
      %415 = vmatpush1.msra.mxu0 %v289
      %416 = vmatprep.subr.mxu0 0.0
      %417 = vmatpush1.msra.mxu0 0.0
      %418 = vmatprep.subr.mxu0 0.0
      %419 = vmatpush1.msra.mxu0 0.0
      %420 = vmatprep.subr.mxu0 0.0
      %421 = vmatpush1.msra.mxu0 0.0
      %422 = vmatprep.subr.mxu0 0.0
      %423 = vmatpush1.msra.mxu0 0.0
      %424 = vmatprep.subr.mxu0 0.0
      %425 = vmatpush1.msra.mxu0 0.0
      %426 = vmatprep.subr.mxu0 0.0
      %427 = vmatpush1.msra.mxu0 0.0
      %428 = vmatprep.subr.mxu0 0.0
      %429 = vmatpush1.msra.mxu0 0.0
      %430 = vmatprep.subr.mxu0 0.0
      %431 = vmatpush1.msra.mxu0 0.0
      %432 = vmatprep.subr.mxu0 0.0
      %433 = vmatpush1.msra.mxu0 0.0
      %434 = vmatprep.subr.mxu0 0.0
      %435 = vmatpush1.msra.mxu0 0.0
      %436 = vmatprep.subr.mxu0 0.0
      %437 = vmatpush1.msra.mxu0 0.0
      %438 = vmatprep.subr.mxu0 0.0
      %439 = vmatpush1.msra.mxu0 0.0
      %440 = vmatprep.subr.mxu0 0.0
      %441 = vmatpush1.msra.mxu0 0.0
      %442 = vmatprep.subr.mxu0 0.0
      %443 = vmatpush1.msra.mxu0 0.0
      %444 = vmatprep.subr.mxu0 0.0
      %445 = vmatpush1.msra.mxu0 0.0
      %446 = vmatprep.subr.mxu0 0.0
      %447 = vmatpush1.msra.mxu0 0.0
      %448 = vmatprep.subr.mxu0 0.0
      %449 = vmatpush1.msra.mxu0 0.0
      %450 = vmatprep.subr.mxu0 0.0
      %451 = vmatpush1.msra.mxu0 0.0
      %452 = vmatprep.subr.mxu0 0.0
      %453 = vmatpush1.msra.mxu0 0.0
      %454 = vmatprep.subr.mxu0 0.0
      %455 = vmatpush1.msra.mxu0 0.0
      %456 = vmatprep.subr.mxu0 0.0
      %457 = vmatpush1.msra.mxu0 0.0
      %458 = vmatprep.subr.mxu0 0.0
      %459 = vmatpush1.msra.mxu0 0.0
      %460 = vmatprep.subr.mxu0 0.0
      %461 = vmatpush1.msra.mxu0 0.0
      %462 = vmatprep.subr.mxu0 0.0
      %463 = vmatpush1.msra.mxu0 0.0
      %464 = vmatprep.subr.mxu0 0.0
      %465 = vmatpush1.msra.mxu0 0.0
      %466 = vmatprep.subr.mxu0 0.0
      %467 = vmatpush1.msra.mxu0 0.0
      %468 = vmatprep.subr.mxu0 0.0
      %469 = vmatpush1.msra.mxu0 0.0
      %470 = vmatprep.subr.mxu0 0.0
      %471 = vmatpush1.msra.mxu0 0.0
      %472 = vmatprep.subr.mxu0 0.0
      %473 = vmatpush1.msra.mxu0 0.0
      %474 = vmatprep.subr.mxu0 0.0
      %475 = vmatpush1.msra.mxu0 0.0
      %476 = vmatprep.subr.mxu0 0.0
      %477 = vmatpush1.msra.mxu0 0.0
      %478 = vmatprep.mubr.f32.mxu0 0.0
      %479 = vmatmul.mubr.f32.gmra.mrb[0].mxu0 %v409
      %v480 = vpop.f32.mrb[0].mxu0
      %v481 = vadd.f32 0.0, %v480
      %v482 = vpop.f32.mrb[0].mxu0
      %483 = vmatprep.mubr.f32.mxu0 0.0
      %484 = vmatmul.mubr.f32.gmra.mrb[0].mxu0 %v412
      %v485 = vpop.f32.mrb[0].mxu0
      %v486 = vadd.f32 0.0, %v485
      %v487 = vpop.f32.mrb[0].mxu0
      %488 = vdwg.mxu0
      %489 = vmatprep.subr.mxu0 0.0
      %490 = vmatpush1.xpose.msra.mxu0 %v295
      %491 = vmatprep.subr.mxu0 0.0
      %492 = vmatpush1.xpose.msra.mxu0 %v298
      %493 = vmatprep.subr.mxu0 0.0
      %494 = vmatpush1.xpose.msra.mxu0 0.0
      %495 = vmatprep.subr.mxu0 0.0
      %496 = vmatpush1.xpose.msra.mxu0 0.0
      %497 = vmatprep.subr.mxu0 0.0
      %498 = vmatpush1.xpose.msra.mxu0 0.0
      %499 = vmatprep.subr.mxu0 0.0
      %500 = vmatpush1.xpose.msra.mxu0 0.0
      %501 = vmatprep.subr.mxu0 0.0
      %502 = vmatpush1.xpose.msra.mxu0 0.0
      %503 = vmatprep.subr.mxu0 0.0
      %504 = vmatpush1.xpose.msra.mxu0 0.0
      %505 = vmatprep.subr.mxu0 0.0
      %506 = vmatpush1.xpose.msra.mxu0 0.0
      %507 = vmatprep.subr.mxu0 0.0
      %508 = vmatpush1.xpose.msra.mxu0 0.0
      %509 = vmatprep.subr.mxu0 0.0
      %510 = vmatpush1.xpose.msra.mxu0 0.0
      %511 = vmatprep.subr.mxu0 0.0
      %512 = vmatpush1.xpose.msra.mxu0 0.0
      %513 = vmatprep.subr.mxu0 0.0
      %514 = vmatpush1.xpose.msra.mxu0 0.0
      %515 = vmatprep.subr.mxu0 0.0
      %516 = vmatpush1.xpose.msra.mxu0 0.0
      %517 = vmatprep.subr.mxu0 0.0
      %518 = vmatpush1.xpose.msra.mxu0 0.0
      %519 = vmatprep.subr.mxu0 0.0
      %520 = vmatpush1.xpose.msra.mxu0 0.0
      %521 = vmatprep.subr.mxu0 0.0
      %522 = vmatpush1.xpose.msra.mxu0 0.0
      %523 = vmatprep.subr.mxu0 0.0
      %524 = vmatpush1.xpose.msra.mxu0 0.0
      %525 = vmatprep.subr.mxu0 0.0
      %526 = vmatpush1.xpose.msra.mxu0 0.0
      %527 = vmatprep.subr.mxu0 0.0
      %528 = vmatpush1.xpose.msra.mxu0 0.0
      %529 = vmatprep.subr.mxu0 0.0
      %530 = vmatpush1.xpose.msra.mxu0 0.0
      %531 = vmatprep.subr.mxu0 0.0
      %532 = vmatpush1.xpose.msra.mxu0 0.0
      %533 = vmatprep.subr.mxu0 0.0
      %534 = vmatpush1.xpose.msra.mxu0 0.0
      %535 = vmatprep.subr.mxu0 0.0
      %536 = vmatpush1.xpose.msra.mxu0 0.0
      %537 = vmatprep.subr.mxu0 0.0
      %538 = vmatpush1.xpose.msra.mxu0 0.0
      %539 = vmatprep.subr.mxu0 0.0
      %540 = vmatpush1.xpose.msra.mxu0 0.0
      %541 = vmatprep.subr.mxu0 0.0
      %542 = vmatpush1.xpose.msra.mxu0 0.0
      %543 = vmatprep.subr.mxu0 0.0
      %544 = vmatpush1.xpose.msra.mxu0 0.0
      %545 = vmatprep.subr.mxu0 0.0
      %546 = vmatpush1.xpose.msra.mxu0 0.0
      %547 = vmatprep.subr.mxu0 0.0
      %548 = vmatpush1.xpose.msra.mxu0 0.0
      %549 = vmatprep.subr.mxu0 0.0
      %550 = vmatpush1.xpose.msra.mxu0 0.0
      %551 = vmatprep.subr.mxu0 0.0
      %552 = vmatpush1.xpose.msra.mxu0 0.0
      %553 = vmatprep.mubr.f32.mxu0 0.0
      %554 = vmatmul.mubr.f32.gmra.mrb[0].mxu0 %v301
      %v555 = vpop.f32.mrb[0].mxu0
      %v556 = vadd.f32 0.0, %v555
      %v557 = vpop.f32.mrb[0].mxu0
      %558 = vdwg.mxu0
      %v559 = vstv %s290
      %vm560 = vcmp.lt.s32.totalorder %v379, %v559
      %v561 = vsel %vm560, %v556, -1e+30
      %vm562 = vcmask 80896
      %v563 = vsel %vm562, %v561, -inf
      %564 = vmax.xlane.f32.xlu0 %v563
      %v565 = vpop.xlane.xlu0 %564
      %v566 = vsub.f32 %v561, %v565
      %v567 = vmul.f32 %v566, 1.442695
      %v568 = vpow.pop %v567
      %v569 = vsel %vm562, %v568, 0.0
      %570 = vadd.xlane.f32.xlu0 %v569
      %v571 = vpop.xlane.xlu0 %570
      %v572 = vrcp.pop %v571
      %v573 = vmul.f32 %v568, %v572
      %v575 = vsel %vm562, %v573, 0
      %vm577 = vcmask 1041408
      %v578 = vsel %vm577, %v288, 0
      %580 = vmatprep.subr.mxu0 0.0
      %581 = vmatpush1.msra.mxu0 %v287
      %582 = vmatprep.subr.mxu0 0.0
      %583 = vmatpush1.msra.mxu0 %v578
      %584 = vmatprep.subr.mxu0 0.0
      %585 = vmatpush1.msra.mxu0 0.0
      %586 = vmatprep.subr.mxu0 0.0
      %587 = vmatpush1.msra.mxu0 0.0
      %588 = vmatprep.subr.mxu0 0.0
      %589 = vmatpush1.msra.mxu0 0.0
      %590 = vmatprep.subr.mxu0 0.0
      %591 = vmatpush1.msra.mxu0 0.0
      %592 = vmatprep.subr.mxu0 0.0
      %593 = vmatpush1.msra.mxu0 0.0
      %594 = vmatprep.subr.mxu0 0.0
      %595 = vmatpush1.msra.mxu0 0.0
      %596 = vmatprep.subr.mxu0 0.0
      %597 = vmatpush1.msra.mxu0 0.0
      %598 = vmatprep.subr.mxu0 0.0
      %599 = vmatpush1.msra.mxu0 0.0
      %600 = vmatprep.subr.mxu0 0.0
      %601 = vmatpush1.msra.mxu0 0.0
      %602 = vmatprep.subr.mxu0 0.0
      %603 = vmatpush1.msra.mxu0 0.0
      %604 = vmatprep.subr.mxu0 0.0
      %605 = vmatpush1.msra.mxu0 0.0
      %606 = vmatprep.subr.mxu0 0.0
      %607 = vmatpush1.msra.mxu0 0.0
      %608 = vmatprep.subr.mxu0 0.0
      %609 = vmatpush1.msra.mxu0 0.0
      %610 = vmatprep.subr.mxu0 0.0
      %611 = vmatpush1.msra.mxu0 0.0
      %612 = vmatprep.subr.mxu0 0.0
      %613 = vmatpush1.msra.mxu0 0.0
      %614 = vmatprep.subr.mxu0 0.0
      %615 = vmatpush1.msra.mxu0 0.0
      %616 = vmatprep.subr.mxu0 0.0
      %617 = vmatpush1.msra.mxu0 0.0
      %618 = vmatprep.subr.mxu0 0.0
      %619 = vmatpush1.msra.mxu0 0.0
      %620 = vmatprep.subr.mxu0 0.0
      %621 = vmatpush1.msra.mxu0 0.0
      %622 = vmatprep.subr.mxu0 0.0
      %623 = vmatpush1.msra.mxu0 0.0
      %624 = vmatprep.subr.mxu0 0.0
      %625 = vmatpush1.msra.mxu0 0.0
      %626 = vmatprep.subr.mxu0 0.0
      %627 = vmatpush1.msra.mxu0 0.0
      %628 = vmatprep.subr.mxu0 0.0
      %629 = vmatpush1.msra.mxu0 0.0
      %630 = vmatprep.subr.mxu0 0.0
      %631 = vmatpush1.msra.mxu0 0.0
      %632 = vmatprep.subr.mxu0 0.0
      %633 = vmatpush1.msra.mxu0 0.0
      %634 = vmatprep.subr.mxu0 0.0
      %635 = vmatpush1.msra.mxu0 0.0
      %636 = vmatprep.subr.mxu0 0.0
      %637 = vmatpush1.msra.mxu0 0.0
      %638 = vmatprep.subr.mxu0 0.0
      %639 = vmatpush1.msra.mxu0 0.0
      %640 = vmatprep.subr.mxu0 0.0
      %641 = vmatpush1.msra.mxu0 0.0
      %642 = vmatprep.subr.mxu0 0.0
      %643 = vmatpush1.msra.mxu0 0.0
      %644 = vmatprep.mubr.f32.mxu0 0.0
      %645 = vmatmul.mubr.f32.gmra.mrb[0].mxu0 %v575
      %v646 = vpop.f32.mrb[0].mxu0
      %v647 = vadd.f32 0.0, %v646
      %v648 = vpop.f32.mrb[0].mxu0
      %649 = vdwg.mxu0
      %v650 = vld [vmem:[%s3] sm:$0xff]
      %v651 = vld [vmem:[%s3 + $0x8] sm:$0xff]
      %v652 = vld [vmem:[%s3 + $0x10] sm:$0xff]
      %v653 = vld [vmem:[%s3 + $0x18] sm:$0xff]
      %v654 = vld [vmem:[%s4] sm:$0xff]
      %v655 = vld [vmem:[%s4 + $0x8] sm:$0xff]
      %v656 = vld [vmem:[%s4 + $0x10] sm:$0xff]
      %v657 = vld [vmem:[%s4 + $0x18] sm:$0xff]
      %v658 = vld [vmem:[%s5] sm:$0x1]
      %v660 = vsel %vm293, %v481, 0
      %v663 = vsel %vm293, %v486, 0
      %665 = vmatprep.subr.mxu0 0.0
      %666 = vmatpush1.msra.mxu0 %v654
      %667 = vmatprep.subr.mxu0 0.0
      %668 = vmatpush1.msra.mxu0 %v655
      %669 = vmatprep.subr.mxu0 0.0
      %670 = vmatpush1.msra.mxu0 %v656
      %671 = vmatprep.subr.mxu0 0.0
      %672 = vmatpush1.msra.mxu0 %v657
      %673 = vmatprep.subr.mxu0 0.0
      %674 = vmatpush1.msra.mxu0 0.0
      %675 = vmatprep.subr.mxu0 0.0
      %676 = vmatpush1.msra.mxu0 0.0
      %677 = vmatprep.subr.mxu0 0.0
      %678 = vmatpush1.msra.mxu0 0.0
      %679 = vmatprep.subr.mxu0 0.0
      %680 = vmatpush1.msra.mxu0 0.0
      %681 = vmatprep.subr.mxu0 0.0
      %682 = vmatpush1.msra.mxu0 0.0
      %683 = vmatprep.subr.mxu0 0.0
      %684 = vmatpush1.msra.mxu0 0.0
      %685 = vmatprep.subr.mxu0 0.0
      %686 = vmatpush1.msra.mxu0 0.0
      %687 = vmatprep.subr.mxu0 0.0
      %688 = vmatpush1.msra.mxu0 0.0
      %689 = vmatprep.subr.mxu0 0.0
      %690 = vmatpush1.msra.mxu0 0.0
      %691 = vmatprep.subr.mxu0 0.0
      %692 = vmatpush1.msra.mxu0 0.0
      %693 = vmatprep.subr.mxu0 0.0
      %694 = vmatpush1.msra.mxu0 0.0
      %695 = vmatprep.subr.mxu0 0.0
      %696 = vmatpush1.msra.mxu0 0.0
      %697 = vmatprep.subr.mxu0 0.0
      %698 = vmatpush1.msra.mxu0 0.0
      %699 = vmatprep.subr.mxu0 0.0
      %700 = vmatpush1.msra.mxu0 0.0
      %701 = vmatprep.subr.mxu0 0.0
      %702 = vmatpush1.msra.mxu0 0.0
      %703 = vmatprep.subr.mxu0 0.0
      %704 = vmatpush1.msra.mxu0 0.0
      %705 = vmatprep.subr.mxu0 0.0
      %706 = vmatpush1.msra.mxu0 0.0
      %707 = vmatprep.subr.mxu0 0.0
      %708 = vmatpush1.msra.mxu0 0.0
      %709 = vmatprep.subr.mxu0 0.0
      %710 = vmatpush1.msra.mxu0 0.0
      %711 = vmatprep.subr.mxu0 0.0
      %712 = vmatpush1.msra.mxu0 0.0
      %713 = vmatprep.subr.mxu0 0.0
      %714 = vmatpush1.msra.mxu0 0.0
      %715 = vmatprep.subr.mxu0 0.0
      %716 = vmatpush1.msra.mxu0 0.0
      %717 = vmatprep.subr.mxu0 0.0
      %718 = vmatpush1.msra.mxu0 0.0
      %719 = vmatprep.subr.mxu0 0.0
      %720 = vmatpush1.msra.mxu0 0.0
      %721 = vmatprep.subr.mxu0 0.0
      %722 = vmatpush1.msra.mxu0 0.0
      %723 = vmatprep.subr.mxu0 0.0
      %724 = vmatpush1.msra.mxu0 0.0
      %725 = vmatprep.subr.mxu0 0.0
      %726 = vmatpush1.msra.mxu0 0.0
      %727 = vmatprep.subr.mxu0 0.0
      %728 = vmatpush1.msra.mxu0 0.0
      %729 = vmatprep.mubr.f32.mxu0 0.0
      %730 = vmatmul.mubr.f32.gmra.mrb[0].mxu0 %v660
      %v731 = vpop.f32.mrb[0].mxu0
      %v732 = vadd.f32 0.0, %v731
      %v733 = vpop.f32.mrb[0].mxu0
      %734 = vmatprep.mubr.f32.mxu0 0.0
      %735 = vmatmul.mubr.f32.gmra.mrb[0].mxu0 %v663
      %v736 = vpop.f32.mrb[0].mxu0
      %v737 = vadd.f32 0.0, %v736
      %v738 = vpop.f32.mrb[0].mxu0
      %739 = vdwg.mxu0
      %740 = vmatprep.subr.mxu0 0.0
      %741 = vmatpush1.msra.mxu0 %v650
      %742 = vmatprep.subr.mxu0 0.0
      %743 = vmatpush1.msra.mxu0 %v651
      %744 = vmatprep.subr.mxu0 0.0
      %745 = vmatpush1.msra.mxu0 %v652
      %746 = vmatprep.subr.mxu0 0.0
      %747 = vmatpush1.msra.mxu0 %v653
      %748 = vmatprep.subr.mxu0 0.0
      %749 = vmatpush1.msra.mxu0 0.0
      %750 = vmatprep.subr.mxu0 0.0
      %751 = vmatpush1.msra.mxu0 0.0
      %752 = vmatprep.subr.mxu0 0.0
      %753 = vmatpush1.msra.mxu0 0.0
      %754 = vmatprep.subr.mxu0 0.0
      %755 = vmatpush1.msra.mxu0 0.0
      %756 = vmatprep.subr.mxu0 0.0
      %757 = vmatpush1.msra.mxu0 0.0
      %758 = vmatprep.subr.mxu0 0.0
      %759 = vmatpush1.msra.mxu0 0.0
      %760 = vmatprep.subr.mxu0 0.0
      %761 = vmatpush1.msra.mxu0 0.0
      %762 = vmatprep.subr.mxu0 0.0
      %763 = vmatpush1.msra.mxu0 0.0
      %764 = vmatprep.subr.mxu0 0.0
      %765 = vmatpush1.msra.mxu0 0.0
      %766 = vmatprep.subr.mxu0 0.0
      %767 = vmatpush1.msra.mxu0 0.0
      %768 = vmatprep.subr.mxu0 0.0
      %769 = vmatpush1.msra.mxu0 0.0
      %770 = vmatprep.subr.mxu0 0.0
      %771 = vmatpush1.msra.mxu0 0.0
      %772 = vmatprep.subr.mxu0 0.0
      %773 = vmatpush1.msra.mxu0 0.0
      %774 = vmatprep.subr.mxu0 0.0
      %775 = vmatpush1.msra.mxu0 0.0
      %776 = vmatprep.subr.mxu0 0.0
      %777 = vmatpush1.msra.mxu0 0.0
      %778 = vmatprep.subr.mxu0 0.0
      %779 = vmatpush1.msra.mxu0 0.0
      %780 = vmatprep.subr.mxu0 0.0
      %781 = vmatpush1.msra.mxu0 0.0
      %782 = vmatprep.subr.mxu0 0.0
      %783 = vmatpush1.msra.mxu0 0.0
      %784 = vmatprep.subr.mxu0 0.0
      %785 = vmatpush1.msra.mxu0 0.0
      %786 = vmatprep.subr.mxu0 0.0
      %787 = vmatpush1.msra.mxu0 0.0
      %788 = vmatprep.subr.mxu0 0.0
      %789 = vmatpush1.msra.mxu0 0.0
      %790 = vmatprep.subr.mxu0 0.0
      %791 = vmatpush1.msra.mxu0 0.0
      %792 = vmatprep.subr.mxu0 0.0
      %793 = vmatpush1.msra.mxu0 0.0
      %794 = vmatprep.subr.mxu0 0.0
      %795 = vmatpush1.msra.mxu0 0.0
      %796 = vmatprep.subr.mxu0 0.0
      %797 = vmatpush1.msra.mxu0 0.0
      %798 = vmatprep.subr.mxu0 0.0
      %799 = vmatpush1.msra.mxu0 0.0
      %800 = vmatprep.subr.mxu0 0.0
      %801 = vmatpush1.msra.mxu0 0.0
      %802 = vmatprep.subr.mxu0 0.0
      %803 = vmatpush1.msra.mxu0 0.0
      %804 = vmatprep.mubr.f32.mxu0 0.0
      %805 = vmatmul.mubr.f32.gmra.mrb[0].mxu0 %v295
      %v806 = vpop.f32.mrb[0].mxu0
      %v807 = vadd.f32 %v732, %v806
      %v808 = vpop.f32.mrb[0].mxu0
      %809 = vmatprep.mubr.f32.mxu0 0.0
      %810 = vmatmul.mubr.f32.gmra.mrb[0].mxu0 %v298
      %v811 = vpop.f32.mrb[0].mxu0
      %v812 = vadd.f32 %v737, %v811
      %v813 = vpop.f32.mrb[0].mxu0
      %814 = vdwg.mxu0
      %v816 = vlaneseq
      %v817 = vshrl.u32 %v816, 7
      %v818 = vsub.s32 0, %v817
      %v819 = vrot.slane %v658, %v818
      %v821 = vadd.f32 %v807, %v819
      %v822 = vadd.f32 %v812, %v819
      %823 = vst.msk [vmem:[%s282] sm:$0xff] %vm293, %v821
      %vm824 = vcmask 254976
      %825 = vst.msk [vmem:[%s282 + $0x8] sm:$0x3] %vm824, %v822
      %v827 = vsel %vm293, %v647, 0
      %829 = vmatprep.subr.mxu0 0.0
      %830 = vmatpush1.msra.mxu0 %v654
      %831 = vmatprep.subr.mxu0 0.0
      %832 = vmatpush1.msra.mxu0 %v655
      %833 = vmatprep.subr.mxu0 0.0
      %834 = vmatpush1.msra.mxu0 %v656
      %835 = vmatprep.subr.mxu0 0.0
      %836 = vmatpush1.msra.mxu0 %v657
      %837 = vmatprep.subr.mxu0 0.0
      %838 = vmatpush1.msra.mxu0 0.0
      %839 = vmatprep.subr.mxu0 0.0
      %840 = vmatpush1.msra.mxu0 0.0
      %841 = vmatprep.subr.mxu0 0.0
      %842 = vmatpush1.msra.mxu0 0.0
      %843 = vmatprep.subr.mxu0 0.0
      %844 = vmatpush1.msra.mxu0 0.0
      %845 = vmatprep.subr.mxu0 0.0
      %846 = vmatpush1.msra.mxu0 0.0
      %847 = vmatprep.subr.mxu0 0.0
      %848 = vmatpush1.msra.mxu0 0.0
      %849 = vmatprep.subr.mxu0 0.0
      %850 = vmatpush1.msra.mxu0 0.0
      %851 = vmatprep.subr.mxu0 0.0
      %852 = vmatpush1.msra.mxu0 0.0
      %853 = vmatprep.subr.mxu0 0.0
      %854 = vmatpush1.msra.mxu0 0.0
      %855 = vmatprep.subr.mxu0 0.0
      %856 = vmatpush1.msra.mxu0 0.0
      %857 = vmatprep.subr.mxu0 0.0
      %858 = vmatpush1.msra.mxu0 0.0
      %859 = vmatprep.subr.mxu0 0.0
      %860 = vmatpush1.msra.mxu0 0.0
      %861 = vmatprep.subr.mxu0 0.0
      %862 = vmatpush1.msra.mxu0 0.0
      %863 = vmatprep.subr.mxu0 0.0
      %864 = vmatpush1.msra.mxu0 0.0
      %865 = vmatprep.subr.mxu0 0.0
      %866 = vmatpush1.msra.mxu0 0.0
      %867 = vmatprep.subr.mxu0 0.0
      %868 = vmatpush1.msra.mxu0 0.0
      %869 = vmatprep.subr.mxu0 0.0
      %870 = vmatpush1.msra.mxu0 0.0
      %871 = vmatprep.subr.mxu0 0.0
      %872 = vmatpush1.msra.mxu0 0.0
      %873 = vmatprep.subr.mxu0 0.0
      %874 = vmatpush1.msra.mxu0 0.0
      %875 = vmatprep.subr.mxu0 0.0
      %876 = vmatpush1.msra.mxu0 0.0
      %877 = vmatprep.subr.mxu0 0.0
      %878 = vmatpush1.msra.mxu0 0.0
      %879 = vmatprep.subr.mxu0 0.0
      %880 = vmatpush1.msra.mxu0 0.0
      %881 = vmatprep.subr.mxu0 0.0
      %882 = vmatpush1.msra.mxu0 0.0
      %883 = vmatprep.subr.mxu0 0.0
      %884 = vmatpush1.msra.mxu0 0.0
      %885 = vmatprep.subr.mxu0 0.0
      %886 = vmatpush1.msra.mxu0 0.0
      %887 = vmatprep.subr.mxu0 0.0
      %888 = vmatpush1.msra.mxu0 0.0
      %889 = vmatprep.subr.mxu0 0.0
      %890 = vmatpush1.msra.mxu0 0.0
      %891 = vmatprep.subr.mxu0 0.0
      %892 = vmatpush1.msra.mxu0 0.0
      %893 = vmatprep.mubr.f32.mxu0 0.0
      %894 = vmatmul.mubr.f32.gmra.mrb[0].mxu0 %v827
      %v895 = vpop.f32.mrb[0].mxu0
      %v896 = vadd.f32 0.0, %v895
      %v897 = vpop.f32.mrb[0].mxu0
      %898 = vdwg.mxu0
      %899 = vmatprep.subr.mxu0 0.0
      %900 = vmatpush1.msra.mxu0 %v650
      %901 = vmatprep.subr.mxu0 0.0
      %902 = vmatpush1.msra.mxu0 %v651
      %903 = vmatprep.subr.mxu0 0.0
      %904 = vmatpush1.msra.mxu0 %v652
      %905 = vmatprep.subr.mxu0 0.0
      %906 = vmatpush1.msra.mxu0 %v653
      %907 = vmatprep.subr.mxu0 0.0
      %908 = vmatpush1.msra.mxu0 0.0
      %909 = vmatprep.subr.mxu0 0.0
      %910 = vmatpush1.msra.mxu0 0.0
      %911 = vmatprep.subr.mxu0 0.0
      %912 = vmatpush1.msra.mxu0 0.0
      %913 = vmatprep.subr.mxu0 0.0
      %914 = vmatpush1.msra.mxu0 0.0
      %915 = vmatprep.subr.mxu0 0.0
      %916 = vmatpush1.msra.mxu0 0.0
      %917 = vmatprep.subr.mxu0 0.0
      %918 = vmatpush1.msra.mxu0 0.0
      %919 = vmatprep.subr.mxu0 0.0
      %920 = vmatpush1.msra.mxu0 0.0
      %921 = vmatprep.subr.mxu0 0.0
      %922 = vmatpush1.msra.mxu0 0.0
      %923 = vmatprep.subr.mxu0 0.0
      %924 = vmatpush1.msra.mxu0 0.0
      %925 = vmatprep.subr.mxu0 0.0
      %926 = vmatpush1.msra.mxu0 0.0
      %927 = vmatprep.subr.mxu0 0.0
      %928 = vmatpush1.msra.mxu0 0.0
      %929 = vmatprep.subr.mxu0 0.0
      %930 = vmatpush1.msra.mxu0 0.0
      %931 = vmatprep.subr.mxu0 0.0
      %932 = vmatpush1.msra.mxu0 0.0
      %933 = vmatprep.subr.mxu0 0.0
      %934 = vmatpush1.msra.mxu0 0.0
      %935 = vmatprep.subr.mxu0 0.0
      %936 = vmatpush1.msra.mxu0 0.0
      %937 = vmatprep.subr.mxu0 0.0
      %938 = vmatpush1.msra.mxu0 0.0
      %939 = vmatprep.subr.mxu0 0.0
      %940 = vmatpush1.msra.mxu0 0.0
      %941 = vmatprep.subr.mxu0 0.0
      %942 = vmatpush1.msra.mxu0 0.0
      %943 = vmatprep.subr.mxu0 0.0
      %944 = vmatpush1.msra.mxu0 0.0
      %945 = vmatprep.subr.mxu0 0.0
      %946 = vmatpush1.msra.mxu0 0.0
      %947 = vmatprep.subr.mxu0 0.0
      %948 = vmatpush1.msra.mxu0 0.0
      %949 = vmatprep.subr.mxu0 0.0
      %950 = vmatpush1.msra.mxu0 0.0
      %951 = vmatprep.subr.mxu0 0.0
      %952 = vmatpush1.msra.mxu0 0.0
      %953 = vmatprep.subr.mxu0 0.0
      %954 = vmatpush1.msra.mxu0 0.0
      %955 = vmatprep.subr.mxu0 0.0
      %956 = vmatpush1.msra.mxu0 0.0
      %957 = vmatprep.subr.mxu0 0.0
      %958 = vmatpush1.msra.mxu0 0.0
      %959 = vmatprep.subr.mxu0 0.0
      %960 = vmatpush1.msra.mxu0 0.0
      %961 = vmatprep.subr.mxu0 0.0
      %962 = vmatpush1.msra.mxu0 0.0
      %963 = vmatprep.mubr.f32.mxu0 0.0
      %964 = vmatmul.mubr.f32.gmra.mrb[0].mxu0 %v301
      %v965 = vpop.f32.mrb[0].mxu0
      %v966 = vadd.f32 %v896, %v965
      %v967 = vpop.f32.mrb[0].mxu0
      %968 = vdwg.mxu0
      %v969 = vadd.f32 %v966, %v819
      %970 = vst.msk [vmem:[%s286] sm:$0xff] %vm293, %v969
      %p971 = scmp.lt.s32.totalorder %s25, 1
      %s972 = scalar_select %p971, %s25, 1
      %s973 = smul.addr %s972, 2
      %s974 = smul.addr %s973, 8
      %s975 = scalar_lea.vmem %s6, %s974
      %p976 = scmp.lt.s32.totalorder %s25, 1
      %s977 = scalar_select %p976, %s25, 1
      %s978 = smul.addr %s977, 8
      %s979 = scalar_lea.vmem %s7, %s978
      // Predicated region
      $region41: #{biatt_encoder_forward.6} parent=39 // pred_check
        %p980 = pneg %p158
      $region42: #{biatt_encoder_forward.6} parent=39 // pred_check_branch
        %982 = sbr.rel (%p980) target = $region44
      $region43: #{biatt_encoder_forward.6} parent=39 // pred_region
        _
      $region44: #{biatt_encoder_forward.6} parent=39 // pred_fallthru
        _
      // Predicated region
      $region45: #{biatt_encoder_forward.6} parent=39 // pred_check
        %p983 = pneg %p184
      $region46: #{biatt_encoder_forward.6} parent=39 // pred_check_branch
        %985 = sbr.rel (%p983) target = $region48
      $region47: #{biatt_encoder_forward.6} parent=39 // pred_region
        _
      $region48: #{biatt_encoder_forward.6} parent=39 // pred_fallthru
        _
    $region40: #{biatt_encoder_forward.6} parent=5 // pred_fallthru
      _
    %p986 = scmp.le.s32.totalorder 2, %s20
    // Predicated region
    $region49: #{biatt_encoder_forward.6} parent=5 // pred_check
      %p987 = pneg %p986
    $region50: #{biatt_encoder_forward.6} parent=5 // pred_check_branch
      %989 = sbr.rel (%p987) target = $region52
    $region51: #{biatt_encoder_forward.6} parent=5 // pred_region
      %s990 = ssub.s32 %s20, 2
      // Predicated region
      $region53: #{biatt_encoder_forward.6} parent=51 // pred_check
        %p991 = pneg %p164
      $region54: #{biatt_encoder_forward.6} parent=51 // pred_check_branch
        %993 = sbr.rel (%p991) target = $region56
      $region55: #{biatt_encoder_forward.6} parent=51 // pred_region
        %p994 = scmp.lt.s32.totalorder %s26, 1
        %s995 = scalar_select %p994, %s26, 1
        %s996 = smul.addr %s995, 2
        %s997 = smul.addr %s996, 8
        %s998 = scalar_lea.vmem %s6, %s997
      $region56: #{biatt_encoder_forward.6} parent=51 // pred_fallthru
        _
      // Predicated region
      $region57: #{biatt_encoder_forward.6} parent=51 // pred_check
        %p999 = pneg %p190
      $region58: #{biatt_encoder_forward.6} parent=51 // pred_check_branch
        %1001 = sbr.rel (%p999) target = $region60
      $region59: #{biatt_encoder_forward.6} parent=51 // pred_region
        %p1002 = scmp.lt.s32.totalorder %s26, 1
        %s1003 = scalar_select %p1002, %s26, 1
        %s1004 = smul.addr %s1003, 8
        %s1005 = scalar_lea.vmem %s7, %s1004
      $region60: #{biatt_encoder_forward.6} parent=51 // pred_fallthru
        _
    $region52: #{biatt_encoder_forward.6} parent=5 // pred_fallthru
      _
  $region6: #{biatt_encoder_forward.6} parent=0 // loop_footer
    %s24 = sadd.s32 1, %s20
  $region7: #{biatt_encoder_forward.6} parent=0 // loop_footer_branch
    %19 = sbr.rel target = $region3
  $region8: #{biatt_encoder_forward.6} parent=0 // loop_exit
    _

// kernel: biatt_encoder_forward.5
$region0: #{biatt_encoder_forward.5}
  #allocation0 [shape = 'u32[]', space=smem, size = 0x4, offset = 0x4, fixed_abs, tag = 'smem constant byte address 0x4 - core index']
  #allocation1 [shape = 'u32[144,128]{1,0:T(1,128)}', space=vmem, size = 0x12000, scoped, tag = 'internal scratch']
  %s0 = inlined_call_operand.vmem [shape: s32[4,1], index: 0, kind: input, shape index: {}]
  %s1 = inlined_call_operand.vmem [shape: f32[10,4,96], index: 1, kind: input, shape index: {}]
  %s2 = inlined_call_operand.vmem [shape: f32[32,96], index: 2, kind: input, shape index: {}]
  %s3 = inlined_call_operand.vmem [shape: f32[1,96], index: 3, kind: input, shape index: {}]
  %s4 = inlined_call_operand.vmem [shape: f32[10,4,16], index: 4, kind: output, shape index: {0}]
  %s5 = inlined_call_operand.vmem [shape: f32[10,4,16], index: 5, kind: output, shape index: {1}]
  %s6 = inlined_call_operand.vmem [shape: f32[4,32], index: 6, kind: output, shape index: {2}]
  %7 = xla_tuple %s4, %s5, %s6
  %s8 = sld [smem:[#allocation0]]
  $region42: #{biatt_encoder_forward.5} parent=0
    _
  %s10 = ssub.s32 1, %s8
  %s11 = scalar_select 0, %s10, %s8
  // Predicated region
  $region2: #{biatt_encoder_forward.5} parent=0 // pred_check
    _
  $region3: #{biatt_encoder_forward.5} parent=0 // pred_check_branch
    %13 = sbr.rel (0) target = $region5
  $region4: #{biatt_encoder_forward.5} parent=0 // pred_region
    _
  $region5: #{biatt_encoder_forward.5} parent=0 // pred_fallthru
    _
  // Predicated region
  $region6: #{biatt_encoder_forward.5} parent=0 // pred_check
    _
  $region7: #{biatt_encoder_forward.5} parent=0 // pred_check_branch
    %15 = sbr.rel (0) target = $region9
  $region8: #{biatt_encoder_forward.5} parent=0 // pred_region
    _
  $region9: #{biatt_encoder_forward.5} parent=0 // pred_fallthru
    _
  // Predicated region
  $region10: #{biatt_encoder_forward.5} parent=0 // pred_check
    _
  $region11: #{biatt_encoder_forward.5} parent=0 // pred_check_branch
    %17 = sbr.rel (0) target = $region13
  $region12: #{biatt_encoder_forward.5} parent=0 // pred_region
    _
  $region13: #{biatt_encoder_forward.5} parent=0 // pred_fallthru
    _
  // Predicated region
  $region14: #{biatt_encoder_forward.5} parent=0 // pred_check
    _
  $region15: #{biatt_encoder_forward.5} parent=0 // pred_check_branch
    %19 = sbr.rel (0) target = $region17
  $region16: #{biatt_encoder_forward.5} parent=0 // pred_region
    _
  $region17: #{biatt_encoder_forward.5} parent=0 // pred_fallthru
    _
  %v20 = vld [vmem:[%s0] sm:$0xf]
  %v21 = vld [vmem:[%s2] sm:$0xff]
  %v22 = vld [vmem:[%s2 + $0x8] sm:$0xff]
  %v23 = vld [vmem:[%s2 + $0x10] sm:$0xff]
  %v24 = vld [vmem:[%s2 + $0x18] sm:$0xff]
  %v25 = vld [vmem:[%s3] sm:$0x1]
  %v27 = vlaneseq
  %v28 = vshrl.u32 %v27, 7
  %v29 = vsub.s32 0, %v28
  %v30 = vrot.slane %v25, %v29
  %vm32 = vcmask 261120
  %v34 = vsel %vm32, 0.0, 0
  %36 = vmatprep.subr.mxu0 0.0
  %37 = vmatpush1.msra.mxu0 %v21
  %38 = vmatprep.subr.mxu0 0.0
  %39 = vmatpush1.msra.mxu0 %v22
  %40 = vmatprep.subr.mxu0 0.0
  %41 = vmatpush1.msra.mxu0 %v23
  %42 = vmatprep.subr.mxu0 0.0
  %43 = vmatpush1.msra.mxu0 %v24
  %44 = vmatprep.subr.mxu0 0.0
  %45 = vmatpush1.msra.mxu0 0.0
  %46 = vmatprep.subr.mxu0 0.0
  %47 = vmatpush1.msra.mxu0 0.0
  %48 = vmatprep.subr.mxu0 0.0
  %49 = vmatpush1.msra.mxu0 0.0
  %50 = vmatprep.subr.mxu0 0.0
  %51 = vmatpush1.msra.mxu0 0.0
  %52 = vmatprep.subr.mxu0 0.0
  %53 = vmatpush1.msra.mxu0 0.0
  %54 = vmatprep.subr.mxu0 0.0
  %55 = vmatpush1.msra.mxu0 0.0
  %56 = vmatprep.subr.mxu0 0.0
  %57 = vmatpush1.msra.mxu0 0.0
  %58 = vmatprep.subr.mxu0 0.0
  %59 = vmatpush1.msra.mxu0 0.0
  %60 = vmatprep.subr.mxu0 0.0
  %61 = vmatpush1.msra.mxu0 0.0
  %62 = vmatprep.subr.mxu0 0.0
  %63 = vmatpush1.msra.mxu0 0.0
  %64 = vmatprep.subr.mxu0 0.0
  %65 = vmatpush1.msra.mxu0 0.0
  %66 = vmatprep.subr.mxu0 0.0
  %67 = vmatpush1.msra.mxu0 0.0
  %68 = vmatprep.subr.mxu0 0.0
  %69 = vmatpush1.msra.mxu0 0.0
  %70 = vmatprep.subr.mxu0 0.0
  %71 = vmatpush1.msra.mxu0 0.0
  %72 = vmatprep.subr.mxu0 0.0
  %73 = vmatpush1.msra.mxu0 0.0
  %74 = vmatprep.subr.mxu0 0.0
  %75 = vmatpush1.msra.mxu0 0.0
  %76 = vmatprep.subr.mxu0 0.0
  %77 = vmatpush1.msra.mxu0 0.0
  %78 = vmatprep.subr.mxu0 0.0
  %79 = vmatpush1.msra.mxu0 0.0
  %80 = vmatprep.subr.mxu0 0.0
  %81 = vmatpush1.msra.mxu0 0.0
  %82 = vmatprep.subr.mxu0 0.0
  %83 = vmatpush1.msra.mxu0 0.0
  %84 = vmatprep.subr.mxu0 0.0
  %85 = vmatpush1.msra.mxu0 0.0
  %86 = vmatprep.subr.mxu0 0.0
  %87 = vmatpush1.msra.mxu0 0.0
  %88 = vmatprep.subr.mxu0 0.0
  %89 = vmatpush1.msra.mxu0 0.0
  %90 = vmatprep.subr.mxu0 0.0
  %91 = vmatpush1.msra.mxu0 0.0
  %92 = vmatprep.subr.mxu0 0.0
  %93 = vmatpush1.msra.mxu0 0.0
  %94 = vmatprep.subr.mxu0 0.0
  %95 = vmatpush1.msra.mxu0 0.0
  %96 = vmatprep.subr.mxu0 0.0
  %97 = vmatpush1.msra.mxu0 0.0
  %98 = vmatprep.subr.mxu0 0.0
  %99 = vmatpush1.msra.mxu0 0.0
  %100 = vmatprep.mubr.f32.mxu0 0.0
  %101 = vmatmul.mubr.f32.gmra.mrb[0].mxu0 %v34
  %v102 = vpop.f32.mrb[0].mxu0
  %v103 = vadd.f32 %v30, %v102
  %v104 = vpop.f32.mrb[0].mxu0
  %105 = vdwg.mxu0
  %v106 = vld [vmem:[%s1] sm:$0xf]
  %s107 = scalar_lea.vmem %s1, 36
  %v108 = vld [vmem:[%s107] sm:$0xf]
  %vm109 = vcmp.gt.s32.totalorder %v20, 0
  %v110 = vsel %vm109, 1, 0
  %v111 = vcvt.s32.f32 %v110
  %vm112 = vcmp.gt.s32.totalorder %v20, 9
  %v113 = vsel %vm112, 1, 0
  %v114 = vcvt.s32.f32 %v113
  %v115 = vadd.f32 %v106, %v103
  %v116 = vxor.u32 %v115, 2147483648
  %v117 = vmul.f32 %v116, 1.442695
  %v118 = vpow.pop %v117
  %v119 = vadd.f32 %v118, 1.0
  %v120 = vrcp.pop %v119
  %v121 = vmul.f32 1.0, %v120
  %123 = vrot.lane.b32.xlu0 %v103, 96
  %v124 = vpop.permute.xlu0 %123
  %v126 = vmul.f32 %v121, %v124
  %128 = vrot.lane.b32.xlu0 %v126, 32
  %v129 = vpop.permute.xlu0 %128
  %v131 = vadd.f32 %v106, %v129
  %v132 = vtanh.pop %v131
  %v133 = vsub.f32 1.0, %v121
  %135 = vrot.lane.b32.xlu0 %v132, 112
  %v136 = vpop.permute.xlu0 %135
  %v138 = vmul.f32 %v133, %v136
  %v139 = vmul.f32 %v121, 0.0
  %v140 = vadd.f32 %v138, %v139
  %142 = vset.pattern.permute.xlu0 0
  %143 = vperm.xlu0 %142, %v111
  %v144 = vpop.permute.xlu0 %143
  %v146 = vmul.f32 %v144, %v140
  %v147 = vsub.f32 1.0, %v111
  %149 = vset.pattern.permute.xlu0 0
  %150 = vperm.xlu0 %149, %v147
  %v151 = vpop.permute.xlu0 %150
  %v153 = vmul.f32 %v151, 0.0
  %v154 = vadd.f32 %v146, %v153
  %v155 = vadd.f32 %v108, %v103
  %v156 = vxor.u32 %v155, 2147483648
  %v157 = vmul.f32 %v156, 1.442695
  %v158 = vpow.pop %v157
  %v159 = vadd.f32 %v158, 1.0
  %v160 = vrcp.pop %v159
  %v161 = vmul.f32 1.0, %v160
  %v162 = vmul.f32 %v161, %v124
  %164 = vrot.lane.b32.xlu0 %v162, 32
  %v165 = vpop.permute.xlu0 %164
  %v167 = vadd.f32 %v108, %v165
  %v168 = vtanh.pop %v167
  %v169 = vsub.f32 1.0, %v161
  %171 = vrot.lane.b32.xlu0 %v168, 112
  %v172 = vpop.permute.xlu0 %171
  %v174 = vmul.f32 %v169, %v172
  %v175 = vmul.f32 %v161, 0.0
  %v176 = vadd.f32 %v174, %v175
  %178 = vset.pattern.permute.xlu0 0
  %179 = vperm.xlu0 %178, %v114
  %v180 = vpop.permute.xlu0 %179
  %v182 = vmul.f32 %v180, %v176
  %v183 = vsub.f32 1.0, %v114
  %185 = vset.pattern.permute.xlu0 0
  %186 = vperm.xlu0 %185, %v183
  %v187 = vpop.permute.xlu0 %186
  %v189 = vmul.f32 %v187, 0.0
  %v190 = vadd.f32 %v182, %v189
  %192 = vrot.lane.b32.xlu0 %v146, 112
  %v193 = vpop.permute.xlu0 %192
  %vm195 = vcmask 125952
  %196 = vst.msk [vmem:[%s4] sm:$0xf] %vm195, %v193
  %198 = vrot.lane.b32.xlu0 %v182, 64
  %v199 = vpop.permute.xlu0 %198
  %s201 = scalar_lea.vmem %s5, 36
  %202 = vst.msk [vmem:[%s201] sm:$0xf] %vm195, %v199
  %204 = vrot.lane.b32.xlu0 %v154, 112
  %v205 = vpop.permute.xlu0 %204
  %208 = vrot.lane.b32.xlu0 %v190, 80
  %v209 = vpop.permute.xlu0 %208
  %vm211 = vcmask 130048
  %v212 = vsel %vm211, %v205, %v209
  %v214 = vsel %vm32, %v212, 0
  %216 = vmatprep.subr.mxu0 0.0
  %217 = vmatpush1.msra.mxu0 %v21
  %218 = vmatprep.subr.mxu0 0.0
  %219 = vmatpush1.msra.mxu0 %v22
  %220 = vmatprep.subr.mxu0 0.0
  %221 = vmatpush1.msra.mxu0 %v23
  %222 = vmatprep.subr.mxu0 0.0
  %223 = vmatpush1.msra.mxu0 %v24
  %224 = vmatprep.subr.mxu0 0.0
  %225 = vmatpush1.msra.mxu0 0.0
  %226 = vmatprep.subr.mxu0 0.0
  %227 = vmatpush1.msra.mxu0 0.0
  %228 = vmatprep.subr.mxu0 0.0
  %229 = vmatpush1.msra.mxu0 0.0
  %230 = vmatprep.subr.mxu0 0.0
  %231 = vmatpush1.msra.mxu0 0.0
  %232 = vmatprep.subr.mxu0 0.0
  %233 = vmatpush1.msra.mxu0 0.0
  %234 = vmatprep.subr.mxu0 0.0
  %235 = vmatpush1.msra.mxu0 0.0
  %236 = vmatprep.subr.mxu0 0.0
  %237 = vmatpush1.msra.mxu0 0.0
  %238 = vmatprep.subr.mxu0 0.0
  %239 = vmatpush1.msra.mxu0 0.0
  %240 = vmatprep.subr.mxu0 0.0
  %241 = vmatpush1.msra.mxu0 0.0
  %242 = vmatprep.subr.mxu0 0.0
  %243 = vmatpush1.msra.mxu0 0.0
  %244 = vmatprep.subr.mxu0 0.0
  %245 = vmatpush1.msra.mxu0 0.0
  %246 = vmatprep.subr.mxu0 0.0
  %247 = vmatpush1.msra.mxu0 0.0
  %248 = vmatprep.subr.mxu0 0.0
  %249 = vmatpush1.msra.mxu0 0.0
  %250 = vmatprep.subr.mxu0 0.0
  %251 = vmatpush1.msra.mxu0 0.0
  %252 = vmatprep.subr.mxu0 0.0
  %253 = vmatpush1.msra.mxu0 0.0
  %254 = vmatprep.subr.mxu0 0.0
  %255 = vmatpush1.msra.mxu0 0.0
  %256 = vmatprep.subr.mxu0 0.0
  %257 = vmatpush1.msra.mxu0 0.0
  %258 = vmatprep.subr.mxu0 0.0
  %259 = vmatpush1.msra.mxu0 0.0
  %260 = vmatprep.subr.mxu0 0.0
  %261 = vmatpush1.msra.mxu0 0.0
  %262 = vmatprep.subr.mxu0 0.0
  %263 = vmatpush1.msra.mxu0 0.0
  %264 = vmatprep.subr.mxu0 0.0
  %265 = vmatpush1.msra.mxu0 0.0
  %266 = vmatprep.subr.mxu0 0.0
  %267 = vmatpush1.msra.mxu0 0.0
  %268 = vmatprep.subr.mxu0 0.0
  %269 = vmatpush1.msra.mxu0 0.0
  %270 = vmatprep.subr.mxu0 0.0
  %271 = vmatpush1.msra.mxu0 0.0
  %272 = vmatprep.subr.mxu0 0.0
  %273 = vmatpush1.msra.mxu0 0.0
  %274 = vmatprep.subr.mxu0 0.0
  %275 = vmatpush1.msra.mxu0 0.0
  %276 = vmatprep.subr.mxu0 0.0
  %277 = vmatpush1.msra.mxu0 0.0
  %278 = vmatprep.subr.mxu0 0.0
  %279 = vmatpush1.msra.mxu0 0.0
  %280 = vmatprep.mubr.f32.mxu0 0.0
  %281 = vmatmul.mubr.f32.gmra.mrb[0].mxu0 %v214
  %v282 = vpop.f32.mrb[0].mxu0
  %v283 = vadd.f32 %v30, %v282
  %v284 = vpop.f32.mrb[0].mxu0
  %285 = vdwg.mxu0
  %s286 = scalar_lea.vmem %s1, 4
  %v287 = vld [vmem:[%s286] sm:$0xf]
  %s288 = scalar_lea.vmem %s1, 32
  %v289 = vld [vmem:[%s288] sm:$0xf]
  %vm290 = vcmp.gt.s32.totalorder %v20, 1
  %v291 = vsel %vm290, 1, 0
  %v292 = vcvt.s32.f32 %v291
  %vm293 = vcmp.gt.s32.totalorder %v20, 8
  %v294 = vsel %vm293, 1, 0
  %v295 = vcvt.s32.f32 %v294
  %v296 = vadd.f32 %v287, %v283
  %v297 = vxor.u32 %v296, 2147483648
  %v298 = vmul.f32 %v297, 1.442695
  %v299 = vpow.pop %v298
  %v300 = vadd.f32 %v299, 1.0
  %v301 = vrcp.pop %v300
  %v302 = vmul.f32 1.0, %v301
  %304 = vrot.lane.b32.xlu0 %v283, 96
  %v305 = vpop.permute.xlu0 %304
  %v307 = vmul.f32 %v302, %v305
  %309 = vrot.lane.b32.xlu0 %v307, 32
  %v310 = vpop.permute.xlu0 %309
  %v312 = vadd.f32 %v287, %v310
  %v313 = vtanh.pop %v312
  %v314 = vsub.f32 1.0, %v302
  %316 = vrot.lane.b32.xlu0 %v313, 112
  %v317 = vpop.permute.xlu0 %316
  %v319 = vmul.f32 %v314, %v317
  %320 = vrot.lane.b32.xlu0 %v212, 16
  %v321 = vpop.permute.xlu0 %320
  %v323 = vmul.f32 %v302, %v321
  %v324 = vadd.f32 %v319, %v323
  %326 = vset.pattern.permute.xlu0 0
  %327 = vperm.xlu0 %326, %v292
  %v328 = vpop.permute.xlu0 %327
  %v330 = vmul.f32 %v328, %v324
  %v331 = vsub.f32 1.0, %v292
  %333 = vset.pattern.permute.xlu0 0
  %334 = vperm.xlu0 %333, %v331
  %v335 = vpop.permute.xlu0 %334
  %v337 = vmul.f32 %v335, %v212
  %339 = vrot.lane.b32.xlu0 %v337, 16
  %v340 = vpop.permute.xlu0 %339
  %v342 = vadd.f32 %v330, %v340
  %v343 = vadd.f32 %v289, %v283
  %v344 = vxor.u32 %v343, 2147483648
  %v345 = vmul.f32 %v344, 1.442695
  %v346 = vpow.pop %v345
  %v347 = vadd.f32 %v346, 1.0
  %v348 = vrcp.pop %v347
  %v349 = vmul.f32 1.0, %v348
  %v350 = vmul.f32 %v349, %v305
  %352 = vrot.lane.b32.xlu0 %v350, 32
  %v353 = vpop.permute.xlu0 %352
  %v355 = vadd.f32 %v289, %v353
  %v356 = vtanh.pop %v355
  %v357 = vsub.f32 1.0, %v349
  %359 = vrot.lane.b32.xlu0 %v356, 112
  %v360 = vpop.permute.xlu0 %359
  %v362 = vmul.f32 %v357, %v360
  %363 = vrot.lane.b32.xlu0 %v212, 48
  %v364 = vpop.permute.xlu0 %363
  %v366 = vmul.f32 %v349, %v364
  %v367 = vadd.f32 %v362, %v366
  %369 = vset.pattern.permute.xlu0 0
  %370 = vperm.xlu0 %369, %v295
  %v371 = vpop.permute.xlu0 %370
  %v373 = vmul.f32 %v371, %v367
  %v374 = vsub.f32 1.0, %v295
  %376 = vset.pattern.permute.xlu0 0
  %377 = vperm.xlu0 %376, %v374
  %v378 = vpop.permute.xlu0 %377
  %v380 = vmul.f32 %v378, %v212
  %382 = vrot.lane.b32.xlu0 %v380, 48
  %v383 = vpop.permute.xlu0 %382
  %v385 = vadd.f32 %v373, %v383
  %387 = vrot.lane.b32.xlu0 %v330, 112
  %v388 = vpop.permute.xlu0 %387
  %s390 = scalar_lea.vmem %s4, 4
  %391 = vst.msk [vmem:[%s390] sm:$0xf] %vm195, %v388
  %393 = vrot.lane.b32.xlu0 %v373, 64
  %v394 = vpop.permute.xlu0 %393
  %s396 = scalar_lea.vmem %s5, 32
  %397 = vst.msk [vmem:[%s396] sm:$0xf] %vm195, %v394
  %399 = vrot.lane.b32.xlu0 %v342, 112
  %v400 = vpop.permute.xlu0 %399
  %403 = vrot.lane.b32.xlu0 %v385, 80
  %v404 = vpop.permute.xlu0 %403
  %v406 = vsel %vm211, %v400, %v404
  %v408 = vsel %vm32, %v406, 0
  %410 = vmatprep.subr.mxu0 0.0
  %411 = vmatpush1.msra.mxu0 %v21
  %412 = vmatprep.subr.mxu0 0.0
  %413 = vmatpush1.msra.mxu0 %v22
  %414 = vmatprep.subr.mxu0 0.0
  %415 = vmatpush1.msra.mxu0 %v23
  %416 = vmatprep.subr.mxu0 0.0
  %417 = vmatpush1.msra.mxu0 %v24
  %418 = vmatprep.subr.mxu0 0.0
  %419 = vmatpush1.msra.mxu0 0.0
  %420 = vmatprep.subr.mxu0 0.0
  %421 = vmatpush1.msra.mxu0 0.0
  %422 = vmatprep.subr.mxu0 0.0
  %423 = vmatpush1.msra.mxu0 0.0
  %424 = vmatprep.subr.mxu0 0.0
  %425 = vmatpush1.msra.mxu0 0.0
  %426 = vmatprep.subr.mxu0 0.0
  %427 = vmatpush1.msra.mxu0 0.0
  %428 = vmatprep.subr.mxu0 0.0
  %429 = vmatpush1.msra.mxu0 0.0
  %430 = vmatprep.subr.mxu0 0.0
  %431 = vmatpush1.msra.mxu0 0.0
  %432 = vmatprep.subr.mxu0 0.0
  %433 = vmatpush1.msra.mxu0 0.0
  %434 = vmatprep.subr.mxu0 0.0
  %435 = vmatpush1.msra.mxu0 0.0
  %436 = vmatprep.subr.mxu0 0.0
  %437 = vmatpush1.msra.mxu0 0.0
  %438 = vmatprep.subr.mxu0 0.0
  %439 = vmatpush1.msra.mxu0 0.0
  %440 = vmatprep.subr.mxu0 0.0
  %441 = vmatpush1.msra.mxu0 0.0
  %442 = vmatprep.subr.mxu0 0.0
  %443 = vmatpush1.msra.mxu0 0.0
  %444 = vmatprep.subr.mxu0 0.0
  %445 = vmatpush1.msra.mxu0 0.0
  %446 = vmatprep.subr.mxu0 0.0
  %447 = vmatpush1.msra.mxu0 0.0
  %448 = vmatprep.subr.mxu0 0.0
  %449 = vmatpush1.msra.mxu0 0.0
  %450 = vmatprep.subr.mxu0 0.0
  %451 = vmatpush1.msra.mxu0 0.0
  %452 = vmatprep.subr.mxu0 0.0
  %453 = vmatpush1.msra.mxu0 0.0
  %454 = vmatprep.subr.mxu0 0.0
  %455 = vmatpush1.msra.mxu0 0.0
  %456 = vmatprep.subr.mxu0 0.0
  %457 = vmatpush1.msra.mxu0 0.0
  %458 = vmatprep.subr.mxu0 0.0
  %459 = vmatpush1.msra.mxu0 0.0
  %460 = vmatprep.subr.mxu0 0.0
  %461 = vmatpush1.msra.mxu0 0.0
  %462 = vmatprep.subr.mxu0 0.0
  %463 = vmatpush1.msra.mxu0 0.0
  %464 = vmatprep.subr.mxu0 0.0
  %465 = vmatpush1.msra.mxu0 0.0
  %466 = vmatprep.subr.mxu0 0.0
  %467 = vmatpush1.msra.mxu0 0.0
  %468 = vmatprep.subr.mxu0 0.0
  %469 = vmatpush1.msra.mxu0 0.0
  %470 = vmatprep.subr.mxu0 0.0
  %471 = vmatpush1.msra.mxu0 0.0
  %472 = vmatprep.subr.mxu0 0.0
  %473 = vmatpush1.msra.mxu0 0.0
  %474 = vmatprep.mubr.f32.mxu0 0.0
  %475 = vmatmul.mubr.f32.gmra.mrb[0].mxu0 %v408
  %v476 = vpop.f32.mrb[0].mxu0
  %v477 = vadd.f32 %v30, %v476
  %v478 = vpop.f32.mrb[0].mxu0
  %479 = vdwg.mxu0
  %s480 = scalar_lea.vmem %s1, 8
  %v481 = vld [vmem:[%s480] sm:$0xf]
  %s482 = scalar_lea.vmem %s1, 28
  %v483 = vld [vmem:[%s482] sm:$0xf]
  %vm484 = vcmp.gt.s32.totalorder %v20, 2
  %v485 = vsel %vm484, 1, 0
  %v486 = vcvt.s32.f32 %v485
  %vm487 = vcmp.gt.s32.totalorder %v20, 7
  %v488 = vsel %vm487, 1, 0
  %v489 = vcvt.s32.f32 %v488
  %v490 = vadd.f32 %v481, %v477
  %v491 = vxor.u32 %v490, 2147483648
  %v492 = vmul.f32 %v491, 1.442695
  %v493 = vpow.pop %v492
  %v494 = vadd.f32 %v493, 1.0
  %v495 = vrcp.pop %v494
  %v496 = vmul.f32 1.0, %v495
  %498 = vrot.lane.b32.xlu0 %v477, 96
  %v499 = vpop.permute.xlu0 %498
  %v501 = vmul.f32 %v496, %v499
  %503 = vrot.lane.b32.xlu0 %v501, 32
  %v504 = vpop.permute.xlu0 %503
  %v506 = vadd.f32 %v481, %v504
  %v507 = vtanh.pop %v506
  %v508 = vsub.f32 1.0, %v496
  %510 = vrot.lane.b32.xlu0 %v507, 112
  %v511 = vpop.permute.xlu0 %510
  %v513 = vmul.f32 %v508, %v511
  %514 = vrot.lane.b32.xlu0 %v406, 16
  %v515 = vpop.permute.xlu0 %514
  %v517 = vmul.f32 %v496, %v515
  %v518 = vadd.f32 %v513, %v517
  %520 = vset.pattern.permute.xlu0 0
  %521 = vperm.xlu0 %520, %v486
  %v522 = vpop.permute.xlu0 %521
  %v524 = vmul.f32 %v522, %v518
  %v525 = vsub.f32 1.0, %v486
  %527 = vset.pattern.permute.xlu0 0
  %528 = vperm.xlu0 %527, %v525
  %v529 = vpop.permute.xlu0 %528
  %v531 = vmul.f32 %v529, %v406
  %533 = vrot.lane.b32.xlu0 %v531, 16
  %v534 = vpop.permute.xlu0 %533
  %v536 = vadd.f32 %v524, %v534
  %v537 = vadd.f32 %v483, %v477
  %v538 = vxor.u32 %v537, 2147483648
  %v539 = vmul.f32 %v538, 1.442695
  %v540 = vpow.pop %v539
  %v541 = vadd.f32 %v540, 1.0
  %v542 = vrcp.pop %v541
  %v543 = vmul.f32 1.0, %v542
  %v544 = vmul.f32 %v543, %v499
  %546 = vrot.lane.b32.xlu0 %v544, 32
  %v547 = vpop.permute.xlu0 %546
  %v549 = vadd.f32 %v483, %v547
  %v550 = vtanh.pop %v549
  %v551 = vsub.f32 1.0, %v543
  %553 = vrot.lane.b32.xlu0 %v550, 112
  %v554 = vpop.permute.xlu0 %553
  %v556 = vmul.f32 %v551, %v554
  %557 = vrot.lane.b32.xlu0 %v406, 48
  %v558 = vpop.permute.xlu0 %557
  %v560 = vmul.f32 %v543, %v558
  %v561 = vadd.f32 %v556, %v560
  %563 = vset.pattern.permute.xlu0 0
  %564 = vperm.xlu0 %563, %v489
  %v565 = vpop.permute.xlu0 %564
  %v567 = vmul.f32 %v565, %v561
  %v568 = vsub.f32 1.0, %v489
  %570 = vset.pattern.permute.xlu0 0
  %571 = vperm.xlu0 %570, %v568
  %v572 = vpop.permute.xlu0 %571
  %v574 = vmul.f32 %v572, %v406
  %576 = vrot.lane.b32.xlu0 %v574, 48
  %v577 = vpop.permute.xlu0 %576
  %v579 = vadd.f32 %v567, %v577
  %581 = vrot.lane.b32.xlu0 %v524, 112
  %v582 = vpop.permute.xlu0 %581
  %s584 = scalar_lea.vmem %s4, 8
  %585 = vst.msk [vmem:[%s584] sm:$0xf] %vm195, %v582
  %587 = vrot.lane.b32.xlu0 %v567, 64
  %v588 = vpop.permute.xlu0 %587
  %s590 = scalar_lea.vmem %s5, 28
  %591 = vst.msk [vmem:[%s590] sm:$0xf] %vm195, %v588
  %593 = vrot.lane.b32.xlu0 %v536, 112
  %v594 = vpop.permute.xlu0 %593
  %597 = vrot.lane.b32.xlu0 %v579, 80
  %v598 = vpop.permute.xlu0 %597
  %v600 = vsel %vm211, %v594, %v598
  %v602 = vsel %vm32, %v600, 0
  %604 = vmatprep.subr.mxu0 0.0
  %605 = vmatpush1.msra.mxu0 %v21
  %606 = vmatprep.subr.mxu0 0.0
  %607 = vmatpush1.msra.mxu0 %v22
  %608 = vmatprep.subr.mxu0 0.0
  %609 = vmatpush1.msra.mxu0 %v23
  %610 = vmatprep.subr.mxu0 0.0
  %611 = vmatpush1.msra.mxu0 %v24
  %612 = vmatprep.subr.mxu0 0.0
  %613 = vmatpush1.msra.mxu0 0.0
  %614 = vmatprep.subr.mxu0 0.0
  %615 = vmatpush1.msra.mxu0 0.0
  %616 = vmatprep.subr.mxu0 0.0
  %617 = vmatpush1.msra.mxu0 0.0
  %618 = vmatprep.subr.mxu0 0.0
  %619 = vmatpush1.msra.mxu0 0.0
  %620 = vmatprep.subr.mxu0 0.0
  %621 = vmatpush1.msra.mxu0 0.0
  %622 = vmatprep.subr.mxu0 0.0
  %623 = vmatpush1.msra.mxu0 0.0
  %624 = vmatprep.subr.mxu0 0.0
  %625 = vmatpush1.msra.mxu0 0.0
  %626 = vmatprep.subr.mxu0 0.0
  %627 = vmatpush1.msra.mxu0 0.0
  %628 = vmatprep.subr.mxu0 0.0
  %629 = vmatpush1.msra.mxu0 0.0
  %630 = vmatprep.subr.mxu0 0.0
  %631 = vmatpush1.msra.mxu0 0.0
  %632 = vmatprep.subr.mxu0 0.0
  %633 = vmatpush1.msra.mxu0 0.0
  %634 = vmatprep.subr.mxu0 0.0
  %635 = vmatpush1.msra.mxu0 0.0
  %636 = vmatprep.subr.mxu0 0.0
  %637 = vmatpush1.msra.mxu0 0.0
  %638 = vmatprep.subr.mxu0 0.0
  %639 = vmatpush1.msra.mxu0 0.0
  %640 = vmatprep.subr.mxu0 0.0
  %641 = vmatpush1.msra.mxu0 0.0
  %642 = vmatprep.subr.mxu0 0.0
  %643 = vmatpush1.msra.mxu0 0.0
  %644 = vmatprep.subr.mxu0 0.0
  %645 = vmatpush1.msra.mxu0 0.0
  %646 = vmatprep.subr.mxu0 0.0
  %647 = vmatpush1.msra.mxu0 0.0
  %648 = vmatprep.subr.mxu0 0.0
  %649 = vmatpush1.msra.mxu0 0.0
  %650 = vmatprep.subr.mxu0 0.0
  %651 = vmatpush1.msra.mxu0 0.0
  %652 = vmatprep.subr.mxu0 0.0
  %653 = vmatpush1.msra.mxu0 0.0
  %654 = vmatprep.subr.mxu0 0.0
  %655 = vmatpush1.msra.mxu0 0.0
  %656 = vmatprep.subr.mxu0 0.0
  %657 = vmatpush1.msra.mxu0 0.0
  %658 = vmatprep.subr.mxu0 0.0
  %659 = vmatpush1.msra.mxu0 0.0
  %660 = vmatprep.subr.mxu0 0.0
  %661 = vmatpush1.msra.mxu0 0.0
  %662 = vmatprep.subr.mxu0 0.0
  %663 = vmatpush1.msra.mxu0 0.0
  %664 = vmatprep.subr.mxu0 0.0
  %665 = vmatpush1.msra.mxu0 0.0
  %666 = vmatprep.subr.mxu0 0.0
  %667 = vmatpush1.msra.mxu0 0.0
  %668 = vmatprep.mubr.f32.mxu0 0.0
  %669 = vmatmul.mubr.f32.gmra.mrb[0].mxu0 %v602
  %v670 = vpop.f32.mrb[0].mxu0
  %v671 = vadd.f32 %v30, %v670
  %v672 = vpop.f32.mrb[0].mxu0
  %673 = vdwg.mxu0
  %s674 = scalar_lea.vmem %s1, 12
  %v675 = vld [vmem:[%s674] sm:$0xf]
  %s676 = scalar_lea.vmem %s1, 24
  %v677 = vld [vmem:[%s676] sm:$0xf]
  %vm678 = vcmp.gt.s32.totalorder %v20, 3
  %v679 = vsel %vm678, 1, 0
  %v680 = vcvt.s32.f32 %v679
  %vm681 = vcmp.gt.s32.totalorder %v20, 6
  %v682 = vsel %vm681, 1, 0
  %v683 = vcvt.s32.f32 %v682
  %v684 = vadd.f32 %v675, %v671
  %v685 = vxor.u32 %v684, 2147483648
  %v686 = vmul.f32 %v685, 1.442695
  %v687 = vpow.pop %v686
  %v688 = vadd.f32 %v687, 1.0
  %v689 = vrcp.pop %v688
  %v690 = vmul.f32 1.0, %v689
  %692 = vrot.lane.b32.xlu0 %v671, 96
  %v693 = vpop.permute.xlu0 %692
  %v695 = vmul.f32 %v690, %v693
  %697 = vrot.lane.b32.xlu0 %v695, 32
  %v698 = vpop.permute.xlu0 %697
  %v700 = vadd.f32 %v675, %v698
  %v701 = vtanh.pop %v700
  %v702 = vsub.f32 1.0, %v690
  %704 = vrot.lane.b32.xlu0 %v701, 112
  %v705 = vpop.permute.xlu0 %704
  %v707 = vmul.f32 %v702, %v705
  %708 = vrot.lane.b32.xlu0 %v600, 16
  %v709 = vpop.permute.xlu0 %708
  %v711 = vmul.f32 %v690, %v709
  %v712 = vadd.f32 %v707, %v711
  %714 = vset.pattern.permute.xlu0 0
  %715 = vperm.xlu0 %714, %v680
  %v716 = vpop.permute.xlu0 %715
  %v718 = vmul.f32 %v716, %v712
  %v719 = vsub.f32 1.0, %v680
  %721 = vset.pattern.permute.xlu0 0
  %722 = vperm.xlu0 %721, %v719
  %v723 = vpop.permute.xlu0 %722
  %v725 = vmul.f32 %v723, %v600
  %727 = vrot.lane.b32.xlu0 %v725, 16
  %v728 = vpop.permute.xlu0 %727
  %v730 = vadd.f32 %v718, %v728
  %v731 = vadd.f32 %v677, %v671
  %v732 = vxor.u32 %v731, 2147483648
  %v733 = vmul.f32 %v732, 1.442695
  %v734 = vpow.pop %v733
  %v735 = vadd.f32 %v734, 1.0
  %v736 = vrcp.pop %v735
  %v737 = vmul.f32 1.0, %v736
  %v738 = vmul.f32 %v737, %v693
  %740 = vrot.lane.b32.xlu0 %v738, 32
  %v741 = vpop.permute.xlu0 %740
  %v743 = vadd.f32 %v677, %v741
  %v744 = vtanh.pop %v743
  %v745 = vsub.f32 1.0, %v737
  %747 = vrot.lane.b32.xlu0 %v744, 112
  %v748 = vpop.permute.xlu0 %747
  %v750 = vmul.f32 %v745, %v748
  %751 = vrot.lane.b32.xlu0 %v600, 48
  %v752 = vpop.permute.xlu0 %751
  %v754 = vmul.f32 %v737, %v752
  %v755 = vadd.f32 %v750, %v754
  %757 = vset.pattern.permute.xlu0 0
  %758 = vperm.xlu0 %757, %v683
  %v759 = vpop.permute.xlu0 %758
  %v761 = vmul.f32 %v759, %v755
  %v762 = vsub.f32 1.0, %v683
  %764 = vset.pattern.permute.xlu0 0
  %765 = vperm.xlu0 %764, %v762
  %v766 = vpop.permute.xlu0 %765
  %v768 = vmul.f32 %v766, %v600
  %770 = vrot.lane.b32.xlu0 %v768, 48
  %v771 = vpop.permute.xlu0 %770
  %v773 = vadd.f32 %v761, %v771
  %775 = vrot.lane.b32.xlu0 %v718, 112
  %v776 = vpop.permute.xlu0 %775
  %s778 = scalar_lea.vmem %s4, 12
  %779 = vst.msk [vmem:[%s778] sm:$0xf] %vm195, %v776
  %781 = vrot.lane.b32.xlu0 %v761, 64
  %v782 = vpop.permute.xlu0 %781
  %s784 = scalar_lea.vmem %s5, 24
  %785 = vst.msk [vmem:[%s784] sm:$0xf] %vm195, %v782
  %787 = vrot.lane.b32.xlu0 %v730, 112
  %v788 = vpop.permute.xlu0 %787
  %791 = vrot.lane.b32.xlu0 %v773, 80
  %v792 = vpop.permute.xlu0 %791
  %v794 = vsel %vm211, %v788, %v792
  %v796 = vsel %vm32, %v794, 0
  %798 = vmatprep.subr.mxu0 0.0
  %799 = vmatpush1.msra.mxu0 %v21
  %800 = vmatprep.subr.mxu0 0.0
  %801 = vmatpush1.msra.mxu0 %v22
  %802 = vmatprep.subr.mxu0 0.0
  %803 = vmatpush1.msra.mxu0 %v23
  %804 = vmatprep.subr.mxu0 0.0
  %805 = vmatpush1.msra.mxu0 %v24
  %806 = vmatprep.subr.mxu0 0.0
  %807 = vmatpush1.msra.mxu0 0.0
  %808 = vmatprep.subr.mxu0 0.0
  %809 = vmatpush1.msra.mxu0 0.0
  %810 = vmatprep.subr.mxu0 0.0
  %811 = vmatpush1.msra.mxu0 0.0
  %812 = vmatprep.subr.mxu0 0.0
  %813 = vmatpush1.msra.mxu0 0.0
  %814 = vmatprep.subr.mxu0 0.0
  %815 = vmatpush1.msra.mxu0 0.0
  %816 = vmatprep.subr.mxu0 0.0
  %817 = vmatpush1.msra.mxu0 0.0
  %818 = vmatprep.subr.mxu0 0.0
  %819 = vmatpush1.msra.mxu0 0.0
  %820 = vmatprep.subr.mxu0 0.0
  %821 = vmatpush1.msra.mxu0 0.0
  %822 = vmatprep.subr.mxu0 0.0
  %823 = vmatpush1.msra.mxu0 0.0
  %824 = vmatprep.subr.mxu0 0.0
  %825 = vmatpush1.msra.mxu0 0.0
  %826 = vmatprep.subr.mxu0 0.0
  %827 = vmatpush1.msra.mxu0 0.0
  %828 = vmatprep.subr.mxu0 0.0
  %829 = vmatpush1.msra.mxu0 0.0
  %830 = vmatprep.subr.mxu0 0.0
  %831 = vmatpush1.msra.mxu0 0.0
  %832 = vmatprep.subr.mxu0 0.0
  %833 = vmatpush1.msra.mxu0 0.0
  %834 = vmatprep.subr.mxu0 0.0
  %835 = vmatpush1.msra.mxu0 0.0
  %836 = vmatprep.subr.mxu0 0.0
  %837 = vmatpush1.msra.mxu0 0.0
  %838 = vmatprep.subr.mxu0 0.0
  %839 = vmatpush1.msra.mxu0 0.0
  %840 = vmatprep.subr.mxu0 0.0
  %841 = vmatpush1.msra.mxu0 0.0
  %842 = vmatprep.subr.mxu0 0.0
  %843 = vmatpush1.msra.mxu0 0.0
  %844 = vmatprep.subr.mxu0 0.0
  %845 = vmatpush1.msra.mxu0 0.0
  %846 = vmatprep.subr.mxu0 0.0
  %847 = vmatpush1.msra.mxu0 0.0
  %848 = vmatprep.subr.mxu0 0.0
  %849 = vmatpush1.msra.mxu0 0.0
  %850 = vmatprep.subr.mxu0 0.0
  %851 = vmatpush1.msra.mxu0 0.0
  %852 = vmatprep.subr.mxu0 0.0
  %853 = vmatpush1.msra.mxu0 0.0
  %854 = vmatprep.subr.mxu0 0.0
  %855 = vmatpush1.msra.mxu0 0.0
  %856 = vmatprep.subr.mxu0 0.0
  %857 = vmatpush1.msra.mxu0 0.0
  %858 = vmatprep.subr.mxu0 0.0
  %859 = vmatpush1.msra.mxu0 0.0
  %860 = vmatprep.subr.mxu0 0.0
  %861 = vmatpush1.msra.mxu0 0.0
  %862 = vmatprep.mubr.f32.mxu0 0.0
  %863 = vmatmul.mubr.f32.gmra.mrb[0].mxu0 %v796
  %v864 = vpop.f32.mrb[0].mxu0
  %v865 = vadd.f32 %v30, %v864
  %v866 = vpop.f32.mrb[0].mxu0
  %867 = vdwg.mxu0
  %s868 = scalar_lea.vmem %s1, 16
  %v869 = vld [vmem:[%s868] sm:$0xf]
  %s870 = scalar_lea.vmem %s1, 20
  %v871 = vld [vmem:[%s870] sm:$0xf]
  %vm872 = vcmp.gt.s32.totalorder %v20, 4
  %v873 = vsel %vm872, 1, 0
  %v874 = vcvt.s32.f32 %v873
  %vm875 = vcmp.gt.s32.totalorder %v20, 5
  %v876 = vsel %vm875, 1, 0
  %v877 = vcvt.s32.f32 %v876
  %v878 = vadd.f32 %v869, %v865
  %v879 = vxor.u32 %v878, 2147483648
  %v880 = vmul.f32 %v879, 1.442695
  %v881 = vpow.pop %v880
  %v882 = vadd.f32 %v881, 1.0
  %v883 = vrcp.pop %v882
  %v884 = vmul.f32 1.0, %v883
  %886 = vrot.lane.b32.xlu0 %v865, 96
  %v887 = vpop.permute.xlu0 %886
  %v889 = vmul.f32 %v884, %v887
  %891 = vrot.lane.b32.xlu0 %v889, 32
  %v892 = vpop.permute.xlu0 %891
  %v894 = vadd.f32 %v869, %v892
  %v895 = vtanh.pop %v894
  %v896 = vsub.f32 1.0, %v884
  %898 = vrot.lane.b32.xlu0 %v895, 112
  %v899 = vpop.permute.xlu0 %898
  %v901 = vmul.f32 %v896, %v899
  %902 = vrot.lane.b32.xlu0 %v794, 16
  %v903 = vpop.permute.xlu0 %902
  %v905 = vmul.f32 %v884, %v903
  %v906 = vadd.f32 %v901, %v905
  %908 = vset.pattern.permute.xlu0 0
  %909 = vperm.xlu0 %908, %v874
  %v910 = vpop.permute.xlu0 %909
  %v912 = vmul.f32 %v910, %v906
  %v913 = vsub.f32 1.0, %v874
  %915 = vset.pattern.permute.xlu0 0
  %916 = vperm.xlu0 %915, %v913
  %v917 = vpop.permute.xlu0 %916
  %v919 = vmul.f32 %v917, %v794
  %921 = vrot.lane.b32.xlu0 %v919, 16
  %v922 = vpop.permute.xlu0 %921
  %v924 = vadd.f32 %v912, %v922
  %v925 = vadd.f32 %v871, %v865
  %v926 = vxor.u32 %v925, 2147483648
  %v927 = vmul.f32 %v926, 1.442695
  %v928 = vpow.pop %v927
  %v929 = vadd.f32 %v928, 1.0
  %v930 = vrcp.pop %v929
  %v931 = vmul.f32 1.0, %v930
  %v932 = vmul.f32 %v931, %v887
  %934 = vrot.lane.b32.xlu0 %v932, 32
  %v935 = vpop.permute.xlu0 %934
  %v937 = vadd.f32 %v871, %v935
  %v938 = vtanh.pop %v937
  %v939 = vsub.f32 1.0, %v931
  %941 = vrot.lane.b32.xlu0 %v938, 112
  %v942 = vpop.permute.xlu0 %941
  %v944 = vmul.f32 %v939, %v942
  %945 = vrot.lane.b32.xlu0 %v794, 48
  %v946 = vpop.permute.xlu0 %945
  %v948 = vmul.f32 %v931, %v946
  %v949 = vadd.f32 %v944, %v948
  %951 = vset.pattern.permute.xlu0 0
  %952 = vperm.xlu0 %951, %v877
  %v953 = vpop.permute.xlu0 %952
  %v955 = vmul.f32 %v953, %v949
  %v956 = vsub.f32 1.0, %v877
  %958 = vset.pattern.permute.xlu0 0
  %959 = vperm.xlu0 %958, %v956
  %v960 = vpop.permute.xlu0 %959
  %v962 = vmul.f32 %v960, %v794
  %964 = vrot.lane.b32.xlu0 %v962, 48
  %v965 = vpop.permute.xlu0 %964
  %v967 = vadd.f32 %v955, %v965
  %969 = vrot.lane.b32.xlu0 %v912, 112
  %v970 = vpop.permute.xlu0 %969
  %s972 = scalar_lea.vmem %s4, 16
  %973 = vst.msk [vmem:[%s972] sm:$0xf] %vm195, %v970
  %975 = vrot.lane.b32.xlu0 %v955, 64
  %v976 = vpop.permute.xlu0 %975
  %s978 = scalar_lea.vmem %s5, 20
  %979 = vst.msk [vmem:[%s978] sm:$0xf] %vm195, %v976
  %981 = vrot.lane.b32.xlu0 %v924, 112
  %v982 = vpop.permute.xlu0 %981
  %985 = vrot.lane.b32.xlu0 %v967, 80
  %v986 = vpop.permute.xlu0 %985
  %v988 = vsel %vm211, %v982, %v986
  %v990 = vsel %vm32, %v988, 0
  %992 = vmatprep.subr.mxu0 0.0
  %993 = vmatpush1.msra.mxu0 %v21
  %994 = vmatprep.subr.mxu0 0.0
  %995 = vmatpush1.msra.mxu0 %v22
  %996 = vmatprep.subr.mxu0 0.0
  %997 = vmatpush1.msra.mxu0 %v23
  %998 = vmatprep.subr.mxu0 0.0
  %999 = vmatpush1.msra.mxu0 %v24
  %1000 = vmatprep.subr.mxu0 0.0
  %1001 = vmatpush1.msra.mxu0 0.0
  %1002 = vmatprep.subr.mxu0 0.0
  %1003 = vmatpush1.msra.mxu0 0.0
  %1004 = vmatprep.subr.mxu0 0.0
  %1005 = vmatpush1.msra.mxu0 0.0
  %1006 = vmatprep.subr.mxu0 0.0
  %1007 = vmatpush1.msra.mxu0 0.0
  %1008 = vmatprep.subr.mxu0 0.0
  %1009 = vmatpush1.msra.mxu0 0.0
  %1010 = vmatprep.subr.mxu0 0.0
  %1011 = vmatpush1.msra.mxu0 0.0
  %1012 = vmatprep.subr.mxu0 0.0
  %1013 = vmatpush1.msra.mxu0 0.0
  %1014 = vmatprep.subr.mxu0 0.0
  %1015 = vmatpush1.msra.mxu0 0.0
  %1016 = vmatprep.subr.mxu0 0.0
  %1017 = vmatpush1.msra.mxu0 0.0
  %1018 = vmatprep.subr.mxu0 0.0
  %1019 = vmatpush1.msra.mxu0 0.0
  %1020 = vmatprep.subr.mxu0 0.0
  %1021 = vmatpush1.msra.mxu0 0.0
  %1022 = vmatprep.subr.mxu0 0.0
  %1023 = vmatpush1.msra.mxu0 0.0
  %1024 = vmatprep.subr.mxu0 0.0
  %1025 = vmatpush1.msra.mxu0 0.0
  %1026 = vmatprep.subr.mxu0 0.0
  %1027 = vmatpush1.msra.mxu0 0.0
  %1028 = vmatprep.subr.mxu0 0.0
  %1029 = vmatpush1.msra.mxu0 0.0
  %1030 = vmatprep.subr.mxu0 0.0
  %1031 = vmatpush1.msra.mxu0 0.0
  %1032 = vmatprep.subr.mxu0 0.0
  %1033 = vmatpush1.msra.mxu0 0.0
  %1034 = vmatprep.subr.mxu0 0.0
  %1035 = vmatpush1.msra.mxu0 0.0
  %1036 = vmatprep.subr.mxu0 0.0
  %1037 = vmatpush1.msra.mxu0 0.0
  %1038 = vmatprep.subr.mxu0 0.0
  %1039 = vmatpush1.msra.mxu0 0.0
  %1040 = vmatprep.subr.mxu0 0.0
  %1041 = vmatpush1.msra.mxu0 0.0
  %1042 = vmatprep.subr.mxu0 0.0
  %1043 = vmatpush1.msra.mxu0 0.0
  %1044 = vmatprep.subr.mxu0 0.0
  %1045 = vmatpush1.msra.mxu0 0.0
  %1046 = vmatprep.subr.mxu0 0.0
  %1047 = vmatpush1.msra.mxu0 0.0
  %1048 = vmatprep.subr.mxu0 0.0
  %1049 = vmatpush1.msra.mxu0 0.0
  %1050 = vmatprep.subr.mxu0 0.0
  %1051 = vmatpush1.msra.mxu0 0.0
  %1052 = vmatprep.subr.mxu0 0.0
  %1053 = vmatpush1.msra.mxu0 0.0
  %1054 = vmatprep.subr.mxu0 0.0
  %1055 = vmatpush1.msra.mxu0 0.0
  %1056 = vmatprep.mubr.f32.mxu0 0.0
  %1057 = vmatmul.mubr.f32.gmra.mrb[0].mxu0 %v990
  %v1058 = vpop.f32.mrb[0].mxu0
  %v1059 = vadd.f32 %v30, %v1058
  %v1060 = vpop.f32.mrb[0].mxu0
  %1061 = vdwg.mxu0
  %v1062 = vld [vmem:[%s870] sm:$0xf]
  %v1063 = vld [vmem:[%s868] sm:$0xf]
  %v1064 = vadd.f32 %v1062, %v1059
  %v1065 = vxor.u32 %v1064, 2147483648
  %v1066 = vmul.f32 %v1065, 1.442695
  %v1067 = vpow.pop %v1066
  %v1068 = vadd.f32 %v1067, 1.0
  %v1069 = vrcp.pop %v1068
  %v1070 = vmul.f32 1.0, %v1069
  %1072 = vrot.lane.b32.xlu0 %v1059, 96
  %v1073 = vpop.permute.xlu0 %1072
  %v1075 = vmul.f32 %v1070, %v1073
  %1077 = vrot.lane.b32.xlu0 %v1075, 32
  %v1078 = vpop.permute.xlu0 %1077
  %v1080 = vadd.f32 %v1062, %v1078
  %v1081 = vtanh.pop %v1080
  %v1082 = vsub.f32 1.0, %v1070
  %1084 = vrot.lane.b32.xlu0 %v1081, 112
  %v1085 = vpop.permute.xlu0 %1084
  %v1087 = vmul.f32 %v1082, %v1085
  %1088 = vrot.lane.b32.xlu0 %v988, 16
  %v1089 = vpop.permute.xlu0 %1088
  %v1091 = vmul.f32 %v1070, %v1089
  %v1092 = vadd.f32 %v1087, %v1091
  %v1093 = vmul.f32 %v953, %v1092
  %v1094 = vmul.f32 %v960, %v988
  %1096 = vrot.lane.b32.xlu0 %v1094, 16
  %v1097 = vpop.permute.xlu0 %1096
  %v1099 = vadd.f32 %v1093, %v1097
  %v1100 = vadd.f32 %v1063, %v1059
  %v1101 = vxor.u32 %v1100, 2147483648
  %v1102 = vmul.f32 %v1101, 1.442695
  %v1103 = vpow.pop %v1102
  %v1104 = vadd.f32 %v1103, 1.0
  %v1105 = vrcp.pop %v1104
  %v1106 = vmul.f32 1.0, %v1105
  %v1107 = vmul.f32 %v1106, %v1073
  %1109 = vrot.lane.b32.xlu0 %v1107, 32
  %v1110 = vpop.permute.xlu0 %1109
  %v1112 = vadd.f32 %v1063, %v1110
  %v1113 = vtanh.pop %v1112
  %v1114 = vsub.f32 1.0, %v1106
  %1116 = vrot.lane.b32.xlu0 %v1113, 112
  %v1117 = vpop.permute.xlu0 %1116
  %v1119 = vmul.f32 %v1114, %v1117
  %1120 = vrot.lane.b32.xlu0 %v988, 48
  %v1121 = vpop.permute.xlu0 %1120
  %v1123 = vmul.f32 %v1106, %v1121
  %v1124 = vadd.f32 %v1119, %v1123
  %v1125 = vmul.f32 %v910, %v1124
  %v1126 = vmul.f32 %v917, %v988
  %1128 = vrot.lane.b32.xlu0 %v1126, 48
  %v1129 = vpop.permute.xlu0 %1128
  %v1131 = vadd.f32 %v1125, %v1129
  %1133 = vrot.lane.b32.xlu0 %v1093, 112
  %v1134 = vpop.permute.xlu0 %1133
  %s1136 = scalar_lea.vmem %s4, 20
  %1137 = vst.msk [vmem:[%s1136] sm:$0xf] %vm195, %v1134
  %1139 = vrot.lane.b32.xlu0 %v1125, 64
  %v1140 = vpop.permute.xlu0 %1139
  %s1142 = scalar_lea.vmem %s5, 16
  %1143 = vst.msk [vmem:[%s1142] sm:$0xf] %vm195, %v1140
  %1145 = vrot.lane.b32.xlu0 %v1099, 112
  %v1146 = vpop.permute.xlu0 %1145
  %1149 = vrot.lane.b32.xlu0 %v1131, 80
  %v1150 = vpop.permute.xlu0 %1149
  %v1152 = vsel %vm211, %v1146, %v1150
  %v1154 = vsel %vm32, %v1152, 0
  %1156 = vmatprep.subr.mxu0 0.0
  %1157 = vmatpush1.msra.mxu0 %v21
  %1158 = vmatprep.subr.mxu0 0.0
  %1159 = vmatpush1.msra.mxu0 %v22
  %1160 = vmatprep.subr.mxu0 0.0
  %1161 = vmatpush1.msra.mxu0 %v23
  %1162 = vmatprep.subr.mxu0 0.0
  %1163 = vmatpush1.msra.mxu0 %v24
  %1164 = vmatprep.subr.mxu0 0.0
  %1165 = vmatpush1.msra.mxu0 0.0
  %1166 = vmatprep.subr.mxu0 0.0
  %1167 = vmatpush1.msra.mxu0 0.0
  %1168 = vmatprep.subr.mxu0 0.0
  %1169 = vmatpush1.msra.mxu0 0.0
  %1170 = vmatprep.subr.mxu0 0.0
  %1171 = vmatpush1.msra.mxu0 0.0
  %1172 = vmatprep.subr.mxu0 0.0
  %1173 = vmatpush1.msra.mxu0 0.0
  %1174 = vmatprep.subr.mxu0 0.0
  %1175 = vmatpush1.msra.mxu0 0.0
  %1176 = vmatprep.subr.mxu0 0.0
  %1177 = vmatpush1.msra.mxu0 0.0
  %1178 = vmatprep.subr.mxu0 0.0
  %1179 = vmatpush1.msra.mxu0 0.0
  %1180 = vmatprep.subr.mxu0 0.0
  %1181 = vmatpush1.msra.mxu0 0.0
  %1182 = vmatprep.subr.mxu0 0.0
  %1183 = vmatpush1.msra.mxu0 0.0
  %1184 = vmatprep.subr.mxu0 0.0
  %1185 = vmatpush1.msra.mxu0 0.0
  %1186 = vmatprep.subr.mxu0 0.0
  %1187 = vmatpush1.msra.mxu0 0.0
  %1188 = vmatprep.subr.mxu0 0.0
  %1189 = vmatpush1.msra.mxu0 0.0
  %1190 = vmatprep.subr.mxu0 0.0
  %1191 = vmatpush1.msra.mxu0 0.0
  %1192 = vmatprep.subr.mxu0 0.0
  %1193 = vmatpush1.msra.mxu0 0.0
  %1194 = vmatprep.subr.mxu0 0.0
  %1195 = vmatpush1.msra.mxu0 0.0
  %1196 = vmatprep.subr.mxu0 0.0
  %1197 = vmatpush1.msra.mxu0 0.0
  %1198 = vmatprep.subr.mxu0 0.0
  %1199 = vmatpush1.msra.mxu0 0.0
  %1200 = vmatprep.subr.mxu0 0.0
  %1201 = vmatpush1.msra.mxu0 0.0
  %1202 = vmatprep.subr.mxu0 0.0
  %1203 = vmatpush1.msra.mxu0 0.0
  %1204 = vmatprep.subr.mxu0 0.0
  %1205 = vmatpush1.msra.mxu0 0.0
  %1206 = vmatprep.subr.mxu0 0.0
  %1207 = vmatpush1.msra.mxu0 0.0
  %1208 = vmatprep.subr.mxu0 0.0
  %1209 = vmatpush1.msra.mxu0 0.0
  %1210 = vmatprep.subr.mxu0 0.0
  %1211 = vmatpush1.msra.mxu0 0.0
  %1212 = vmatprep.subr.mxu0 0.0
  %1213 = vmatpush1.msra.mxu0 0.0
  %1214 = vmatprep.subr.mxu0 0.0
  %1215 = vmatpush1.msra.mxu0 0.0
  %1216 = vmatprep.subr.mxu0 0.0
  %1217 = vmatpush1.msra.mxu0 0.0
  %1218 = vmatprep.subr.mxu0 0.0
  %1219 = vmatpush1.msra.mxu0 0.0
  %1220 = vmatprep.mubr.f32.mxu0 0.0
  %1221 = vmatmul.mubr.f32.gmra.mrb[0].mxu0 %v1154
  %v1222 = vpop.f32.mrb[0].mxu0
  %v1223 = vadd.f32 %v30, %v1222
  %v1224 = vpop.f32.mrb[0].mxu0
  %1225 = vdwg.mxu0
  %v1226 = vld [vmem:[%s676] sm:$0xf]
  %v1227 = vld [vmem:[%s674] sm:$0xf]
  %v1228 = vadd.f32 %v1226, %v1223
  %v1229 = vxor.u32 %v1228, 2147483648
  %v1230 = vmul.f32 %v1229, 1.442695
  %v1231 = vpow.pop %v1230
  %v1232 = vadd.f32 %v1231, 1.0
  %v1233 = vrcp.pop %v1232
  %v1234 = vmul.f32 1.0, %v1233
  %1236 = vrot.lane.b32.xlu0 %v1223, 96
  %v1237 = vpop.permute.xlu0 %1236
  %v1239 = vmul.f32 %v1234, %v1237
  %1241 = vrot.lane.b32.xlu0 %v1239, 32
  %v1242 = vpop.permute.xlu0 %1241
  %v1244 = vadd.f32 %v1226, %v1242
  %v1245 = vtanh.pop %v1244
  %v1246 = vsub.f32 1.0, %v1234
  %1248 = vrot.lane.b32.xlu0 %v1245, 112
  %v1249 = vpop.permute.xlu0 %1248
  %v1251 = vmul.f32 %v1246, %v1249
  %1252 = vrot.lane.b32.xlu0 %v1152, 16
  %v1253 = vpop.permute.xlu0 %1252
  %v1255 = vmul.f32 %v1234, %v1253
  %v1256 = vadd.f32 %v1251, %v1255
  %v1257 = vmul.f32 %v759, %v1256
  %v1258 = vmul.f32 %v766, %v1152
  %1260 = vrot.lane.b32.xlu0 %v1258, 16
  %v1261 = vpop.permute.xlu0 %1260
  %v1263 = vadd.f32 %v1257, %v1261
  %v1264 = vadd.f32 %v1227, %v1223
  %v1265 = vxor.u32 %v1264, 2147483648
  %v1266 = vmul.f32 %v1265, 1.442695
  %v1267 = vpow.pop %v1266
  %v1268 = vadd.f32 %v1267, 1.0
  %v1269 = vrcp.pop %v1268
  %v1270 = vmul.f32 1.0, %v1269
  %v1271 = vmul.f32 %v1270, %v1237
  %1273 = vrot.lane.b32.xlu0 %v1271, 32
  %v1274 = vpop.permute.xlu0 %1273
  %v1276 = vadd.f32 %v1227, %v1274
  %v1277 = vtanh.pop %v1276
  %v1278 = vsub.f32 1.0, %v1270
  %1280 = vrot.lane.b32.xlu0 %v1277, 112
  %v1281 = vpop.permute.xlu0 %1280
  %v1283 = vmul.f32 %v1278, %v1281
  %1284 = vrot.lane.b32.xlu0 %v1152, 48
  %v1285 = vpop.permute.xlu0 %1284
  %v1287 = vmul.f32 %v1270, %v1285
  %v1288 = vadd.f32 %v1283, %v1287
  %v1289 = vmul.f32 %v716, %v1288
  %v1290 = vmul.f32 %v723, %v1152
  %1292 = vrot.lane.b32.xlu0 %v1290, 48
  %v1293 = vpop.permute.xlu0 %1292
  %v1295 = vadd.f32 %v1289, %v1293
  %1297 = vrot.lane.b32.xlu0 %v1257, 112
  %v1298 = vpop.permute.xlu0 %1297
  %s1300 = scalar_lea.vmem %s4, 24
  %1301 = vst.msk [vmem:[%s1300] sm:$0xf] %vm195, %v1298
  %1303 = vrot.lane.b32.xlu0 %v1289, 64
  %v1304 = vpop.permute.xlu0 %1303
  %s1306 = scalar_lea.vmem %s5, 12
  %1307 = vst.msk [vmem:[%s1306] sm:$0xf] %vm195, %v1304
  %1309 = vrot.lane.b32.xlu0 %v1263, 112
  %v1310 = vpop.permute.xlu0 %1309
  %1313 = vrot.lane.b32.xlu0 %v1295, 80
  %v1314 = vpop.permute.xlu0 %1313
  %v1316 = vsel %vm211, %v1310, %v1314
  %v1318 = vsel %vm32, %v1316, 0
  %1320 = vmatprep.subr.mxu0 0.0
  %1321 = vmatpush1.msra.mxu0 %v21
  %1322 = vmatprep.subr.mxu0 0.0
  %1323 = vmatpush1.msra.mxu0 %v22
  %1324 = vmatprep.subr.mxu0 0.0
  %1325 = vmatpush1.msra.mxu0 %v23
  %1326 = vmatprep.subr.mxu0 0.0
  %1327 = vmatpush1.msra.mxu0 %v24
  %1328 = vmatprep.subr.mxu0 0.0
  %1329 = vmatpush1.msra.mxu0 0.0
  %1330 = vmatprep.subr.mxu0 0.0
  %1331 = vmatpush1.msra.mxu0 0.0
  %1332 = vmatprep.subr.mxu0 0.0
  %1333 = vmatpush1.msra.mxu0 0.0
  %1334 = vmatprep.subr.mxu0 0.0
  %1335 = vmatpush1.msra.mxu0 0.0
  %1336 = vmatprep.subr.mxu0 0.0
  %1337 = vmatpush1.msra.mxu0 0.0
  %1338 = vmatprep.subr.mxu0 0.0
  %1339 = vmatpush1.msra.mxu0 0.0
  %1340 = vmatprep.subr.mxu0 0.0
  %1341 = vmatpush1.msra.mxu0 0.0
  %1342 = vmatprep.subr.mxu0 0.0
  %1343 = vmatpush1.msra.mxu0 0.0
  %1344 = vmatprep.subr.mxu0 0.0
  %1345 = vmatpush1.msra.mxu0 0.0
  %1346 = vmatprep.subr.mxu0 0.0
  %1347 = vmatpush1.msra.mxu0 0.0
  %1348 = vmatprep.subr.mxu0 0.0
  %1349 = vmatpush1.msra.mxu0 0.0
  %1350 = vmatprep.subr.mxu0 0.0
  %1351 = vmatpush1.msra.mxu0 0.0
  %1352 = vmatprep.subr.mxu0 0.0
  %1353 = vmatpush1.msra.mxu0 0.0
  %1354 = vmatprep.subr.mxu0 0.0
  %1355 = vmatpush1.msra.mxu0 0.0
  %1356 = vmatprep.subr.mxu0 0.0
  %1357 = vmatpush1.msra.mxu0 0.0
  %1358 = vmatprep.subr.mxu0 0.0
  %1359 = vmatpush1.msra.mxu0 0.0
  %1360 = vmatprep.subr.mxu0 0.0
  %1361 = vmatpush1.msra.mxu0 0.0
  %1362 = vmatprep.subr.mxu0 0.0
  %1363 = vmatpush1.msra.mxu0 0.0
  %1364 = vmatprep.subr.mxu0 0.0
  %1365 = vmatpush1.msra.mxu0 0.0
  %1366 = vmatprep.subr.mxu0 0.0
  %1367 = vmatpush1.msra.mxu0 0.0
  %1368 = vmatprep.subr.mxu0 0.0
  %1369 = vmatpush1.msra.mxu0 0.0
  %1370 = vmatprep.subr.mxu0 0.0
  %1371 = vmatpush1.msra.mxu0 0.0
  %1372 = vmatprep.subr.mxu0 0.0
  %1373 = vmatpush1.msra.mxu0 0.0
  %1374 = vmatprep.subr.mxu0 0.0
  %1375 = vmatpush1.msra.mxu0 0.0
  %1376 = vmatprep.subr.mxu0 0.0
  %1377 = vmatpush1.msra.mxu0 0.0
  %1378 = vmatprep.subr.mxu0 0.0
  %1379 = vmatpush1.msra.mxu0 0.0
  %1380 = vmatprep.subr.mxu0 0.0
  %1381 = vmatpush1.msra.mxu0 0.0
  %1382 = vmatprep.subr.mxu0 0.0
  %1383 = vmatpush1.msra.mxu0 0.0
  %1384 = vmatprep.mubr.f32.mxu0 0.0
  %1385 = vmatmul.mubr.f32.gmra.mrb[0].mxu0 %v1318
  %v1386 = vpop.f32.mrb[0].mxu0
  %v1387 = vadd.f32 %v30, %v1386
  %v1388 = vpop.f32.mrb[0].mxu0
  %1389 = vdwg.mxu0
  %v1390 = vld [vmem:[%s482] sm:$0xf]
  %v1391 = vld [vmem:[%s480] sm:$0xf]
  %v1392 = vadd.f32 %v1390, %v1387
  %v1393 = vxor.u32 %v1392, 2147483648
  %v1394 = vmul.f32 %v1393, 1.442695
  %v1395 = vpow.pop %v1394
  %v1396 = vadd.f32 %v1395, 1.0
  %v1397 = vrcp.pop %v1396
  %v1398 = vmul.f32 1.0, %v1397
  %1400 = vrot.lane.b32.xlu0 %v1387, 96
  %v1401 = vpop.permute.xlu0 %1400
  %v1403 = vmul.f32 %v1398, %v1401
  %1405 = vrot.lane.b32.xlu0 %v1403, 32
  %v1406 = vpop.permute.xlu0 %1405
  %v1408 = vadd.f32 %v1390, %v1406
  %v1409 = vtanh.pop %v1408
  %v1410 = vsub.f32 1.0, %v1398
  %1412 = vrot.lane.b32.xlu0 %v1409, 112
  %v1413 = vpop.permute.xlu0 %1412
  %v1415 = vmul.f32 %v1410, %v1413
  %1416 = vrot.lane.b32.xlu0 %v1316, 16
  %v1417 = vpop.permute.xlu0 %1416
  %v1419 = vmul.f32 %v1398, %v1417
  %v1420 = vadd.f32 %v1415, %v1419
  %v1421 = vmul.f32 %v565, %v1420
  %v1422 = vmul.f32 %v572, %v1316
  %1424 = vrot.lane.b32.xlu0 %v1422, 16
  %v1425 = vpop.permute.xlu0 %1424
  %v1427 = vadd.f32 %v1421, %v1425
  %v1428 = vadd.f32 %v1391, %v1387
  %v1429 = vxor.u32 %v1428, 2147483648
  %v1430 = vmul.f32 %v1429, 1.442695
  %v1431 = vpow.pop %v1430
  %v1432 = vadd.f32 %v1431, 1.0
  %v1433 = vrcp.pop %v1432
  %v1434 = vmul.f32 1.0, %v1433
  %v1435 = vmul.f32 %v1434, %v1401
  %1437 = vrot.lane.b32.xlu0 %v1435, 32
  %v1438 = vpop.permute.xlu0 %1437
  %v1440 = vadd.f32 %v1391, %v1438
  %v1441 = vtanh.pop %v1440
  %v1442 = vsub.f32 1.0, %v1434
  %1444 = vrot.lane.b32.xlu0 %v1441, 112
  %v1445 = vpop.permute.xlu0 %1444
  %v1447 = vmul.f32 %v1442, %v1445
  %1448 = vrot.lane.b32.xlu0 %v1316, 48
  %v1449 = vpop.permute.xlu0 %1448
  %v1451 = vmul.f32 %v1434, %v1449
  %v1452 = vadd.f32 %v1447, %v1451
  %v1453 = vmul.f32 %v522, %v1452
  %v1454 = vmul.f32 %v529, %v1316
  %1456 = vrot.lane.b32.xlu0 %v1454, 48
  %v1457 = vpop.permute.xlu0 %1456
  %v1459 = vadd.f32 %v1453, %v1457
  %1461 = vrot.lane.b32.xlu0 %v1421, 112
  %v1462 = vpop.permute.xlu0 %1461
  %s1464 = scalar_lea.vmem %s4, 28
  %1465 = vst.msk [vmem:[%s1464] sm:$0xf] %vm195, %v1462
  %1467 = vrot.lane.b32.xlu0 %v1453, 64
  %v1468 = vpop.permute.xlu0 %1467
  %s1470 = scalar_lea.vmem %s5, 8
  %1471 = vst.msk [vmem:[%s1470] sm:$0xf] %vm195, %v1468
  %1473 = vrot.lane.b32.xlu0 %v1427, 112
  %v1474 = vpop.permute.xlu0 %1473
  %1477 = vrot.lane.b32.xlu0 %v1459, 80
  %v1478 = vpop.permute.xlu0 %1477
  %v1480 = vsel %vm211, %v1474, %v1478
  %v1482 = vsel %vm32, %v1480, 0
  %1484 = vmatprep.subr.mxu0 0.0
  %1485 = vmatpush1.msra.mxu0 %v21
  %1486 = vmatprep.subr.mxu0 0.0
  %1487 = vmatpush1.msra.mxu0 %v22
  %1488 = vmatprep.subr.mxu0 0.0
  %1489 = vmatpush1.msra.mxu0 %v23
  %1490 = vmatprep.subr.mxu0 0.0
  %1491 = vmatpush1.msra.mxu0 %v24
  %1492 = vmatprep.subr.mxu0 0.0
  %1493 = vmatpush1.msra.mxu0 0.0
  %1494 = vmatprep.subr.mxu0 0.0
  %1495 = vmatpush1.msra.mxu0 0.0
  %1496 = vmatprep.subr.mxu0 0.0
  %1497 = vmatpush1.msra.mxu0 0.0
  %1498 = vmatprep.subr.mxu0 0.0
  %1499 = vmatpush1.msra.mxu0 0.0
  %1500 = vmatprep.subr.mxu0 0.0
  %1501 = vmatpush1.msra.mxu0 0.0
  %1502 = vmatprep.subr.mxu0 0.0
  %1503 = vmatpush1.msra.mxu0 0.0
  %1504 = vmatprep.subr.mxu0 0.0
  %1505 = vmatpush1.msra.mxu0 0.0
  %1506 = vmatprep.subr.mxu0 0.0
  %1507 = vmatpush1.msra.mxu0 0.0
  %1508 = vmatprep.subr.mxu0 0.0
  %1509 = vmatpush1.msra.mxu0 0.0
  %1510 = vmatprep.subr.mxu0 0.0
  %1511 = vmatpush1.msra.mxu0 0.0
  %1512 = vmatprep.subr.mxu0 0.0
  %1513 = vmatpush1.msra.mxu0 0.0
  %1514 = vmatprep.subr.mxu0 0.0
  %1515 = vmatpush1.msra.mxu0 0.0
  %1516 = vmatprep.subr.mxu0 0.0
  %1517 = vmatpush1.msra.mxu0 0.0
  %1518 = vmatprep.subr.mxu0 0.0
  %1519 = vmatpush1.msra.mxu0 0.0
  %1520 = vmatprep.subr.mxu0 0.0
  %1521 = vmatpush1.msra.mxu0 0.0
  %1522 = vmatprep.subr.mxu0 0.0
  %1523 = vmatpush1.msra.mxu0 0.0
  %1524 = vmatprep.subr.mxu0 0.0
  %1525 = vmatpush1.msra.mxu0 0.0
  %1526 = vmatprep.subr.mxu0 0.0
  %1527 = vmatpush1.msra.mxu0 0.0
  %1528 = vmatprep.subr.mxu0 0.0
  %1529 = vmatpush1.msra.mxu0 0.0
  %1530 = vmatprep.subr.mxu0 0.0
  %1531 = vmatpush1.msra.mxu0 0.0
  %1532 = vmatprep.subr.mxu0 0.0
  %1533 = vmatpush1.msra.mxu0 0.0
  %1534 = vmatprep.subr.mxu0 0.0
  %1535 = vmatpush1.msra.mxu0 0.0
  %1536 = vmatprep.subr.mxu0 0.0
  %1537 = vmatpush1.msra.mxu0 0.0
  %1538 = vmatprep.subr.mxu0 0.0
  %1539 = vmatpush1.msra.mxu0 0.0
  %1540 = vmatprep.subr.mxu0 0.0
  %1541 = vmatpush1.msra.mxu0 0.0
  %1542 = vmatprep.subr.mxu0 0.0
  %1543 = vmatpush1.msra.mxu0 0.0
  %1544 = vmatprep.subr.mxu0 0.0
  %1545 = vmatpush1.msra.mxu0 0.0
  %1546 = vmatprep.subr.mxu0 0.0
  %1547 = vmatpush1.msra.mxu0 0.0
  %1548 = vmatprep.mubr.f32.mxu0 0.0
  %1549 = vmatmul.mubr.f32.gmra.mrb[0].mxu0 %v1482
  %v1550 = vpop.f32.mrb[0].mxu0
  %v1551 = vadd.f32 %v30, %v1550
  %v1552 = vpop.f32.mrb[0].mxu0
  %1553 = vdwg.mxu0
  %v1554 = vld [vmem:[%s288] sm:$0xf]
  %v1555 = vld [vmem:[%s286] sm:$0xf]
  %v1556 = vadd.f32 %v1554, %v1551
  %v1557 = vxor.u32 %v1556, 2147483648
  %v1558 = vmul.f32 %v1557, 1.442695
  %v1559 = vpow.pop %v1558
  %v1560 = vadd.f32 %v1559, 1.0
  %v1561 = vrcp.pop %v1560
  %v1562 = vmul.f32 1.0, %v1561
  %1564 = vrot.lane.b32.xlu0 %v1551, 96
  %v1565 = vpop.permute.xlu0 %1564
  %v1567 = vmul.f32 %v1562, %v1565
  %1569 = vrot.lane.b32.xlu0 %v1567, 32
  %v1570 = vpop.permute.xlu0 %1569
  %v1572 = vadd.f32 %v1554, %v1570
  %v1573 = vtanh.pop %v1572
  %v1574 = vsub.f32 1.0, %v1562
  %1576 = vrot.lane.b32.xlu0 %v1573, 112
  %v1577 = vpop.permute.xlu0 %1576
  %v1579 = vmul.f32 %v1574, %v1577
  %1580 = vrot.lane.b32.xlu0 %v1480, 16
  %v1581 = vpop.permute.xlu0 %1580
  %v1583 = vmul.f32 %v1562, %v1581
  %v1584 = vadd.f32 %v1579, %v1583
  %v1585 = vmul.f32 %v371, %v1584
  %v1586 = vmul.f32 %v378, %v1480
  %1588 = vrot.lane.b32.xlu0 %v1586, 16
  %v1589 = vpop.permute.xlu0 %1588
  %v1591 = vadd.f32 %v1585, %v1589
  %v1592 = vadd.f32 %v1555, %v1551
  %v1593 = vxor.u32 %v1592, 2147483648
  %v1594 = vmul.f32 %v1593, 1.442695
  %v1595 = vpow.pop %v1594
  %v1596 = vadd.f32 %v1595, 1.0
  %v1597 = vrcp.pop %v1596
  %v1598 = vmul.f32 1.0, %v1597
  %v1599 = vmul.f32 %v1598, %v1565
  %1601 = vrot.lane.b32.xlu0 %v1599, 32
  %v1602 = vpop.permute.xlu0 %1601
  %v1604 = vadd.f32 %v1555, %v1602
  %v1605 = vtanh.pop %v1604
  %v1606 = vsub.f32 1.0, %v1598
  %1608 = vrot.lane.b32.xlu0 %v1605, 112
  %v1609 = vpop.permute.xlu0 %1608
  %v1611 = vmul.f32 %v1606, %v1609
  %1612 = vrot.lane.b32.xlu0 %v1480, 48
  %v1613 = vpop.permute.xlu0 %1612
  %v1615 = vmul.f32 %v1598, %v1613
  %v1616 = vadd.f32 %v1611, %v1615
  %v1617 = vmul.f32 %v328, %v1616
  %v1618 = vmul.f32 %v335, %v1480
  %1620 = vrot.lane.b32.xlu0 %v1618, 48
  %v1621 = vpop.permute.xlu0 %1620
  %v1623 = vadd.f32 %v1617, %v1621
  %1625 = vrot.lane.b32.xlu0 %v1585, 112
  %v1626 = vpop.permute.xlu0 %1625
  %s1628 = scalar_lea.vmem %s4, 32
  %1629 = vst.msk [vmem:[%s1628] sm:$0xf] %vm195, %v1626
  %1631 = vrot.lane.b32.xlu0 %v1617, 64
  %v1632 = vpop.permute.xlu0 %1631
  %s1634 = scalar_lea.vmem %s5, 4
  %1635 = vst.msk [vmem:[%s1634] sm:$0xf] %vm195, %v1632
  %1637 = vrot.lane.b32.xlu0 %v1591, 112
  %v1638 = vpop.permute.xlu0 %1637
  %1641 = vrot.lane.b32.xlu0 %v1623, 80
  %v1642 = vpop.permute.xlu0 %1641
  %v1644 = vsel %vm211, %v1638, %v1642
  %v1646 = vsel %vm32, %v1644, 0
  %1648 = vmatprep.subr.mxu0 0.0
  %1649 = vmatpush1.msra.mxu0 %v21
  %1650 = vmatprep.subr.mxu0 0.0
  %1651 = vmatpush1.msra.mxu0 %v22
  %1652 = vmatprep.subr.mxu0 0.0
  %1653 = vmatpush1.msra.mxu0 %v23
  %1654 = vmatprep.subr.mxu0 0.0
  %1655 = vmatpush1.msra.mxu0 %v24
  %1656 = vmatprep.subr.mxu0 0.0
  %1657 = vmatpush1.msra.mxu0 0.0
  %1658 = vmatprep.subr.mxu0 0.0
  %1659 = vmatpush1.msra.mxu0 0.0
  %1660 = vmatprep.subr.mxu0 0.0
  %1661 = vmatpush1.msra.mxu0 0.0
  %1662 = vmatprep.subr.mxu0 0.0
  %1663 = vmatpush1.msra.mxu0 0.0
  %1664 = vmatprep.subr.mxu0 0.0
  %1665 = vmatpush1.msra.mxu0 0.0
  %1666 = vmatprep.subr.mxu0 0.0
  %1667 = vmatpush1.msra.mxu0 0.0
  %1668 = vmatprep.subr.mxu0 0.0
  %1669 = vmatpush1.msra.mxu0 0.0
  %1670 = vmatprep.subr.mxu0 0.0
  %1671 = vmatpush1.msra.mxu0 0.0
  %1672 = vmatprep.subr.mxu0 0.0
  %1673 = vmatpush1.msra.mxu0 0.0
  %1674 = vmatprep.subr.mxu0 0.0
  %1675 = vmatpush1.msra.mxu0 0.0
  %1676 = vmatprep.subr.mxu0 0.0
  %1677 = vmatpush1.msra.mxu0 0.0
  %1678 = vmatprep.subr.mxu0 0.0
  %1679 = vmatpush1.msra.mxu0 0.0
  %1680 = vmatprep.subr.mxu0 0.0
  %1681 = vmatpush1.msra.mxu0 0.0
  %1682 = vmatprep.subr.mxu0 0.0
  %1683 = vmatpush1.msra.mxu0 0.0
  %1684 = vmatprep.subr.mxu0 0.0
  %1685 = vmatpush1.msra.mxu0 0.0
  %1686 = vmatprep.subr.mxu0 0.0
  %1687 = vmatpush1.msra.mxu0 0.0
  %1688 = vmatprep.subr.mxu0 0.0
  %1689 = vmatpush1.msra.mxu0 0.0
  %1690 = vmatprep.subr.mxu0 0.0
  %1691 = vmatpush1.msra.mxu0 0.0
  %1692 = vmatprep.subr.mxu0 0.0
  %1693 = vmatpush1.msra.mxu0 0.0
  %1694 = vmatprep.subr.mxu0 0.0
  %1695 = vmatpush1.msra.mxu0 0.0
  %1696 = vmatprep.subr.mxu0 0.0
  %1697 = vmatpush1.msra.mxu0 0.0
  %1698 = vmatprep.subr.mxu0 0.0
  %1699 = vmatpush1.msra.mxu0 0.0
  %1700 = vmatprep.subr.mxu0 0.0
  %1701 = vmatpush1.msra.mxu0 0.0
  %1702 = vmatprep.subr.mxu0 0.0
  %1703 = vmatpush1.msra.mxu0 0.0
  %1704 = vmatprep.subr.mxu0 0.0
  %1705 = vmatpush1.msra.mxu0 0.0
  %1706 = vmatprep.subr.mxu0 0.0
  %1707 = vmatpush1.msra.mxu0 0.0
  %1708 = vmatprep.subr.mxu0 0.0
  %1709 = vmatpush1.msra.mxu0 0.0
  %1710 = vmatprep.subr.mxu0 0.0
  %1711 = vmatpush1.msra.mxu0 0.0
  %1712 = vmatprep.mubr.f32.mxu0 0.0
  %1713 = vmatmul.mubr.f32.gmra.mrb[0].mxu0 %v1646
  %v1714 = vpop.f32.mrb[0].mxu0
  %v1715 = vadd.f32 %v30, %v1714
  %v1716 = vpop.f32.mrb[0].mxu0
  %1717 = vdwg.mxu0
  %v1718 = vld [vmem:[%s107] sm:$0xf]
  %v1719 = vld [vmem:[%s1] sm:$0xf]
  %v1720 = vadd.f32 %v1718, %v1715
  %v1721 = vxor.u32 %v1720, 2147483648
  %v1722 = vmul.f32 %v1721, 1.442695
  %v1723 = vpow.pop %v1722
  %v1724 = vadd.f32 %v1723, 1.0
  %v1725 = vrcp.pop %v1724
  %v1726 = vmul.f32 1.0, %v1725
  %1728 = vrot.lane.b32.xlu0 %v1715, 96
  %v1729 = vpop.permute.xlu0 %1728
  %v1731 = vmul.f32 %v1726, %v1729
  %1733 = vrot.lane.b32.xlu0 %v1731, 32
  %v1734 = vpop.permute.xlu0 %1733
  %v1736 = vadd.f32 %v1718, %v1734
  %v1737 = vtanh.pop %v1736
  %v1738 = vsub.f32 1.0, %v1726
  %1740 = vrot.lane.b32.xlu0 %v1737, 112
  %v1741 = vpop.permute.xlu0 %1740
  %v1743 = vmul.f32 %v1738, %v1741
  %1744 = vrot.lane.b32.xlu0 %v1644, 16
  %v1745 = vpop.permute.xlu0 %1744
  %v1747 = vmul.f32 %v1726, %v1745
  %v1748 = vadd.f32 %v1743, %v1747
  %v1749 = vmul.f32 %v180, %v1748
  %v1750 = vmul.f32 %v187, %v1644
  %1752 = vrot.lane.b32.xlu0 %v1750, 16
  %v1753 = vpop.permute.xlu0 %1752
  %v1755 = vadd.f32 %v1749, %v1753
  %v1756 = vadd.f32 %v1719, %v1715
  %v1757 = vxor.u32 %v1756, 2147483648
  %v1758 = vmul.f32 %v1757, 1.442695
  %v1759 = vpow.pop %v1758
  %v1760 = vadd.f32 %v1759, 1.0
  %v1761 = vrcp.pop %v1760
  %v1762 = vmul.f32 1.0, %v1761
  %v1763 = vmul.f32 %v1762, %v1729
  %1765 = vrot.lane.b32.xlu0 %v1763, 32
  %v1766 = vpop.permute.xlu0 %1765
  %v1768 = vadd.f32 %v1719, %v1766
  %v1769 = vtanh.pop %v1768
  %v1770 = vsub.f32 1.0, %v1762
  %1772 = vrot.lane.b32.xlu0 %v1769, 112
  %v1773 = vpop.permute.xlu0 %1772
  %v1775 = vmul.f32 %v1770, %v1773
  %1776 = vrot.lane.b32.xlu0 %v1644, 48
  %v1777 = vpop.permute.xlu0 %1776
  %v1779 = vmul.f32 %v1762, %v1777
  %v1780 = vadd.f32 %v1775, %v1779
  %v1781 = vmul.f32 %v144, %v1780
  %v1782 = vmul.f32 %v151, %v1644
  %1784 = vrot.lane.b32.xlu0 %v1782, 48
  %v1785 = vpop.permute.xlu0 %1784
  %v1787 = vadd.f32 %v1781, %v1785
  %1789 = vrot.lane.b32.xlu0 %v1749, 112
  %v1790 = vpop.permute.xlu0 %1789
  %s1792 = scalar_lea.vmem %s4, 36
  %1793 = vst.msk [vmem:[%s1792] sm:$0xf] %vm195, %v1790
  %1795 = vrot.lane.b32.xlu0 %v1781, 64
  %v1796 = vpop.permute.xlu0 %1795
  %1798 = vst.msk [vmem:[%s5] sm:$0xf] %vm195, %v1796
  %1800 = vrot.lane.b32.xlu0 %v1755, 112
  %v1801 = vpop.permute.xlu0 %1800
  %1804 = vrot.lane.b32.xlu0 %v1787, 80
  %v1805 = vpop.permute.xlu0 %1804
  %v1807 = vsel %vm211, %v1801, %v1805
  %vm1808 = vcmask 257024
  %1809 = vst.msk [vmem:[%s6] sm:$0xf] %vm1808, %v1807
  // Predicated region
  $region18: #{biatt_encoder_forward.5} parent=0 // pred_check
    _
  $region19: #{biatt_encoder_forward.5} parent=0 // pred_check_branch
    %1811 = sbr.rel (0) target = $region21
  $region20: #{biatt_encoder_forward.5} parent=0 // pred_region
    _
  $region21: #{biatt_encoder_forward.5} parent=0 // pred_fallthru
    _
  // Predicated region
  $region22: #{biatt_encoder_forward.5} parent=0 // pred_check
    _
  $region23: #{biatt_encoder_forward.5} parent=0 // pred_check_branch
    %1813 = sbr.rel (0) target = $region25
  $region24: #{biatt_encoder_forward.5} parent=0 // pred_region
    _
  $region25: #{biatt_encoder_forward.5} parent=0 // pred_fallthru
    _
  // Predicated region
  $region26: #{biatt_encoder_forward.5} parent=0 // pred_check
    _
  $region27: #{biatt_encoder_forward.5} parent=0 // pred_check_branch
    %1815 = sbr.rel (0) target = $region29
  $region28: #{biatt_encoder_forward.5} parent=0 // pred_region
    _
  $region29: #{biatt_encoder_forward.5} parent=0 // pred_fallthru
    _
  // Predicated region
  $region30: #{biatt_encoder_forward.5} parent=0 // pred_check
    _
  $region31: #{biatt_encoder_forward.5} parent=0 // pred_check_branch
    %1817 = sbr.rel (0) target = $region33
  $region32: #{biatt_encoder_forward.5} parent=0 // pred_region
    _
  $region33: #{biatt_encoder_forward.5} parent=0 // pred_fallthru
    _
  // Predicated region
  $region34: #{biatt_encoder_forward.5} parent=0 // pred_check
    _
  $region35: #{biatt_encoder_forward.5} parent=0 // pred_check_branch
    %1819 = sbr.rel (0) target = $region37
  $region36: #{biatt_encoder_forward.5} parent=0 // pred_region
    _
  $region37: #{biatt_encoder_forward.5} parent=0 // pred_fallthru
    _
  // Predicated region
  $region38: #{biatt_encoder_forward.5} parent=0 // pred_check
    _
  $region39: #{biatt_encoder_forward.5} parent=0 // pred_check_branch
    %1821 = sbr.rel (0) target = $region41
  $region40: #{biatt_encoder_forward.5} parent=0 // pred_region
    _
  $region41: #{biatt_encoder_forward.5} parent=0 // pred_fallthru
    _

</llo_original>
